<compile_context>
chip_gen: v7x
topology: tpu7x:2x2x1
jax: 0.10.0
libtpu: 0.0.40
codegen_flags: <defaults>
</compile_context>

<pallas_src>
import jax
import jax.numpy as jnp
from jax.experimental import pallas as pl
from jax.experimental.pallas import tpu as pltpu

LANES = 128                  # TPU lane width: pad narrow heads / output to this
MXU_DTYPE = jnp.bfloat16     # matmul-operand dtype (f32 accumulation everywhere)


def _mm(a, b):
    """MXU matmul: (bf16) operands, f32 accumulation."""
    return jnp.dot(a.astype(MXU_DTYPE), b.astype(MXU_DTYPE),
                   preferred_element_type=jnp.float32)


def _full_spec(shape):
    """Whole-array VMEM block (everything here is tiny, single block, no grid)."""
    return pl.BlockSpec(shape, lambda: (0,) * len(shape))


# ----------------------------------------------------------------------------
# Parameters (stored pre-transposed for x @ W, biases as (1, N), narrow heads
# pre-padded to 128 lanes so the kernel is fully lane-dense).
# ----------------------------------------------------------------------------
def init_params(key, mods, dims, embed_dim, hidden_dim, attn_len):
    dims = dict(zip(mods, dims))
    E, H, K = embed_dim, hidden_dim, attn_len
    n_in = len(mods) * E
    keys = jax.random.split(key, 4 * len(mods) + 16)
    ki = iter(range(len(keys)))

    def nrm(shape, scale=0.1):
        return scale * jax.random.normal(keys[next(ki)], shape, dtype=jnp.float32)

    params = {'embed': {}}
    for m in mods:
        params['embed'][m] = {'w': nrm((dims[m], E)), 'b': nrm((1, E))}
    params['attn1_w'] = nrm((n_in, E))
    params['attn1_b'] = nrm((1, E))
    # Attention head: pad K=attn_len columns to 128 lanes; padded columns get a
    # -1e9 bias so their softmax weight is exactly 0.
    attn2_w = nrm((E, K))
    attn2_b = nrm((1, K))
    params['attn2_w_pad'] = jnp.zeros((E, LANES), jnp.float32).at[:, :K].set(attn2_w)
    params['attn2_b_pad'] = jnp.full((1, LANES), -1e9, jnp.float32).at[:, :K].set(attn2_b)
    # LSTM: weights transposed for x @ W; gate column order i, f, g, o (PyTorch);
    # b_ih + b_hh combined.
    params['w_ih'] = nrm((n_in, 4 * H))
    params['w_hh'] = nrm((H, 4 * H))
    params['b_lstm'] = nrm((1, 4 * H)) + nrm((1, 4 * H))
    params['dec1_w'] = nrm((H, E))
    params['dec1_b'] = nrm((1, E))
    # Decoder head: 1 real output column, zero-padded to 128 lanes.
    dec2_w = nrm((E, 1))
    dec2_b = nrm((1, 1))
    params['dec2_w_pad'] = jnp.zeros((E, LANES), jnp.float32).at[:, :1].set(dec2_w)
    params['dec2_b_pad'] = jnp.zeros((1, LANES), jnp.float32).at[:, :1].set(dec2_b)
    return params


# ----------------------------------------------------------------------------
# Fused forward pass: one pallas_call.
# ----------------------------------------------------------------------------
def combined_lstm_forward(params, inputs, mask, lengths, *,
                          mods, embed_dim, hidden_dim, attn_len):
    B, T = inputs[mods[0]].shape[:2]
    E, H, K = embed_dim, hidden_dim, attn_len
    n_mods = len(mods)
    BT = B * T
    assert K <= LANES

    # Free metadata reshapes only (no HBM transposes / concatenations).
    xs = [inputs[m].reshape(BT, -1) for m in mods]
    lengths_f = lengths.astype(jnp.float32).reshape(B, 1)
    mask_flat = mask.astype(jnp.float32).reshape(BT, 1)

    def kernel(*refs):
        it = iter(refs[:-1])
        x_refs = [next(it) for _ in range(n_mods)]
        len_ref = next(it)                         # (B, 1)  float lengths
        mask_ref = next(it)                        # (BT, 1) final mask
        emb_w = [next(it) for _ in range(n_mods)]
        emb_b = [next(it) for _ in range(n_mods)]
        a1w_ref = next(it); a1b_ref = next(it)
        a2w_ref = next(it); a2b_ref = next(it)     # lane-padded attention head
        wih_ref = next(it); blstm_ref = next(it)
        whh_ref = next(it)
        d1w_ref = next(it); d1b_ref = next(it)
        d2w_ref = next(it); d2b_ref = next(it)     # lane-padded decoder head
        out_ref = refs[-1]                         # (BT, 128) lane-dense output

        # ---- Phase 1: embeds accumulated straight into gx / attn hidden ----
        # (the concatenated embedding never materializes; w_ih / attn1_w are
        #  consumed as per-modality row blocks)
        gx = None   # (BT, 4H)  x @ W_ih^T contribution
        a1 = None   # (BT, E)   attention hidden pre-activation
        for i in range(n_mods):
            e_m = jnp.maximum(_mm(x_refs[i][...], emb_w[i][...]) + emb_b[i][...], 0.0)
            r0 = i * E
            gx_p = _mm(e_m, wih_ref[r0:r0 + E, :])
            a1_p = _mm(e_m, a1w_ref[r0:r0 + E, :])
            gx = gx_p if gx is None else gx + gx_p
            a1 = a1_p if a1 is None else a1 + a1_p
        gx = gx + blstm_ref[...]
        a1 = jnp.maximum(a1 + a1b_ref[...], 0.0)

        # Attention softmax over attn_len (padded lanes: -1e9 bias -> exp == 0).
        logits = _mm(a1, a2w_ref[...]) + a2b_ref[...]
        lmax = jnp.max(logits, axis=-1, keepdims=True)
        ex = jnp.exp(logits - lmax)
        attn = ex * pl.reciprocal(jnp.sum(ex, axis=-1, keepdims=True), approx=True)
        attn3 = attn.reshape(B, T, LANES)          # tile-aligned reshape (free)

        # ---- Phase 2: LSTM recurrence, fully unrolled over T (static) ----
        gx3 = gx.reshape(B, T, 4 * H)              # tile-aligned reshape (free)
        whh = whh_ref[...].astype(MXU_DTYPE)       # hoisted: load + cast once
        len_col = len_ref[...]                     # (B, 1)
        h = jnp.zeros((B, H), jnp.float32)
        c = jnp.zeros((B, H), jnp.float32)
        h_seq = []
        for t in range(T):
            gates = gx3[:, t, :] + jnp.dot(h.astype(MXU_DTYPE), whh,
                                           preferred_element_type=jnp.float32)
            i_g = jax.nn.sigmoid(gates[:, 0:H])
            f_g = jax.nn.sigmoid(gates[:, H:2 * H])
            g_g = jnp.tanh(gates[:, 2 * H:3 * H])
            o_g = jax.nn.sigmoid(gates[:, 3 * H:4 * H])
            c = f_g * c + i_g * g_g
            h = o_g * jnp.tanh(c)
            # pack_padded/pad_packed emulation: stored h is zero past length[b].
            h_seq.append(h * (len_col > t).astype(jnp.float32))

        # ---- Phase 3: temporal attention over time-shifted hidden states ----
        # context[b,t] = sum_k attn[b,t,k] * h[b,t-k]  (zero for t-k < 0)
        ctx = []
        for t in range(T):
            acc = attn3[:, t, 0:1] * h_seq[t]
            for k in range(1, K):
                if t - k >= 0:
                    acc = acc + attn3[:, t, k:k + 1] * h_seq[t - k]
            ctx.append(acc)
        ctx_flat = jnp.stack(ctx, axis=1).reshape(BT, H)

        # ---- Phase 4: decoder head + final mask, lane-dense store ----
        d1 = jnp.maximum(_mm(ctx_flat, d1w_ref[...]) + d1b_ref[...], 0.0)
        tgt = _mm(d1, d2w_ref[...]) + d2b_ref[...]   # (BT, 128); col 0 = target
        out_ref[...] = tgt * mask_ref[...]

    in_arrays = (
        *xs, lengths_f, mask_flat,
        *[params['embed'][m]['w'] for m in mods],
        *[params['embed'][m]['b'] for m in mods],
        params['attn1_w'], params['attn1_b'],
        params['attn2_w_pad'], params['attn2_b_pad'],
        params['w_ih'], params['b_lstm'],
        params['w_hh'],
        params['dec1_w'], params['dec1_b'],
        params['dec2_w_pad'], params['dec2_b_pad'],
    )

    # Single block, no grid: all weights + activations total well under 1 MiB,
    # far inside VMEM on v5e/v6e (128 MiB) and v7x (64 MiB).
    # TODO(synk): for non-toy B*T, tile the (B*T) axis with a grid, mark it
    # "parallel" (megacore / 2 TCs on v7x) and keep this kernel as the per-tile body.
    out = pl.pallas_call(
        kernel,
        out_shape=jax.ShapeDtypeStruct((BT, LANES), jnp.float32),
        in_specs=[_full_spec(a.shape) for a in in_arrays],
        out_specs=_full_spec((BT, LANES)),
        compiler_params=pltpu.CompilerParams(vmem_limit_bytes=32 * 1024 * 1024),
    )(*in_arrays)

    # Only lane 0 of the padded decoder head is the real target.
    return out[:, 0:1].reshape(B, T, 1)


# ----------------------------------------------------------------------------
if __name__ == "__main__":
    mods = ('audio', 'text', 'v_sub', 'v_act')
    dims = (16, 12, 24, 20)        # small synthetic feature dims
    embed_dim = 32
    hidden_dim = 128
    attn_len = 3
    B, T = 2, 8
    lengths = jnp.array([8, 6], dtype=jnp.int32)   # sorted descending, max == T

    key = jax.random.PRNGKey(0)
    k_par, k_in = jax.random.split(key)
    params = init_params(k_par, mods, dims, embed_dim, hidden_dim, attn_len)

    in_keys = jax.random.split(k_in, len(mods))
    inputs = {m: jax.random.normal(in_keys[i], (B, T, dims[i]), dtype=jnp.float32)
              for i, m in enumerate(mods)}
    mask = (jnp.arange(T)[None, :] < lengths[:, None]).astype(jnp.float32)[:, :, None]

    out = combined_lstm_forward(
        params, inputs, mask, lengths,
        mods=mods, embed_dim=embed_dim, hidden_dim=hidden_dim, attn_len=attn_len)
    out = jax.block_until_ready(out)
    assert out.shape == (B, T, 1)
    print("KERNEL_OK")
</pallas_src>

<mosaic_0001>
module attributes {stable_mosaic.version = 11 : i64} {
  func.func @kernel(%arg0: memref<16x16xf32, #tpu.memory_space<vmem>>, %arg1: memref<16x12xf32, #tpu.memory_space<vmem>>, %arg2: memref<16x24xf32, #tpu.memory_space<vmem>>, %arg3: memref<16x20xf32, #tpu.memory_space<vmem>>, %arg4: memref<2x1xf32, #tpu.memory_space<vmem>>, %arg5: memref<16x1xf32, #tpu.memory_space<vmem>>, %arg6: memref<16x32xf32, #tpu.memory_space<vmem>>, %arg7: memref<12x32xf32, #tpu.memory_space<vmem>>, %arg8: memref<24x32xf32, #tpu.memory_space<vmem>>, %arg9: memref<20x32xf32, #tpu.memory_space<vmem>>, %arg10: memref<1x32xf32, #tpu.memory_space<vmem>>, %arg11: memref<1x32xf32, #tpu.memory_space<vmem>>, %arg12: memref<1x32xf32, #tpu.memory_space<vmem>>, %arg13: memref<1x32xf32, #tpu.memory_space<vmem>>, %arg14: memref<128x32xf32, #tpu.memory_space<vmem>>, %arg15: memref<1x32xf32, #tpu.memory_space<vmem>>, %arg16: memref<32x128xf32, #tpu.memory_space<vmem>>, %arg17: memref<1x128xf32, #tpu.memory_space<vmem>>, %arg18: memref<128x512xf32, #tpu.memory_space<vmem>>, %arg19: memref<1x512xf32, #tpu.memory_space<vmem>>, %arg20: memref<128x512xf32, #tpu.memory_space<vmem>>, %arg21: memref<128x32xf32, #tpu.memory_space<vmem>>, %arg22: memref<1x32xf32, #tpu.memory_space<vmem>>, %arg23: memref<32x128xf32, #tpu.memory_space<vmem>>, %arg24: memref<1x128xf32, #tpu.memory_space<vmem>>, %arg25: memref<16x128xf32, #tpu.memory_space<vmem>>) attributes {dimension_semantics = [], scalar_prefetch = 0 : i64, scratch_operands = 0 : i64, tpu.core_type = #tpu.core_type<tc>} {
    %c0 = arith.constant 0 : index
    %c0_0 = arith.constant 0 : index
    %0 = vector.load %arg0[%c0, %c0_0] : memref<16x16xf32, #tpu.memory_space<vmem>>, vector<16x16xf32>
    %c0_1 = arith.constant 0 : index
    %c0_2 = arith.constant 0 : index
    %1 = vector.load %arg6[%c0_1, %c0_2] : memref<16x32xf32, #tpu.memory_space<vmem>>, vector<16x32xf32>
    %2 = arith.truncf %0 : vector<16x16xf32> to vector<16x16xbf16>
    %3 = arith.truncf %1 : vector<16x32xf32> to vector<16x32xbf16>
    %cst = arith.constant dense<0.000000e+00> : vector<16x32xf32>
    %4 = tpu.matmul %2, %3, %cst {dimension_numbers = #tpu.dot_dimension_numbers<[1], [0], [0], [1], [0, 0, 1, 1], [], []>} : vector<16x16xbf16>, vector<16x32xbf16>, vector<16x32xf32> -> vector<16x32xf32>
    %c0_3 = arith.constant 0 : index
    %c0_4 = arith.constant 0 : index
    %5 = vector.load %arg10[%c0_3, %c0_4] : memref<1x32xf32, #tpu.memory_space<vmem>>, vector<1x32xf32>
    %6 = vector.broadcast %5 : vector<1x32xf32> to vector<16x32xf32>
    %7 = arith.addf %4, %6 : vector<16x32xf32>
    %cst_5 = arith.constant 0.000000e+00 : f32
    %8 = vector.broadcast %cst_5 : f32 to vector<16x32xf32>
    %9 = arith.maximumf %7, %8 : vector<16x32xf32>
    %c0_6 = arith.constant 0 : index
    %c0_7 = arith.constant 0 : index
    %10 = vector.load %arg18[%c0_6, %c0_7] : memref<128x512xf32, #tpu.memory_space<vmem>>, vector<32x512xf32>
    %11 = arith.truncf %9 : vector<16x32xf32> to vector<16x32xbf16>
    %12 = arith.truncf %10 : vector<32x512xf32> to vector<32x512xbf16>
    %cst_8 = arith.constant dense<0.000000e+00> : vector<16x512xf32>
    %13 = tpu.matmul %11, %12, %cst_8 {dimension_numbers = #tpu.dot_dimension_numbers<[1], [0], [0], [1], [0, 0, 1, 1], [], []>} : vector<16x32xbf16>, vector<32x512xbf16>, vector<16x512xf32> -> vector<16x512xf32>
    %c0_9 = arith.constant 0 : index
    %c0_10 = arith.constant 0 : index
    %14 = vector.load %arg14[%c0_9, %c0_10] : memref<128x32xf32, #tpu.memory_space<vmem>>, vector<32x32xf32>
    %15 = arith.truncf %9 : vector<16x32xf32> to vector<16x32xbf16>
    %16 = arith.truncf %14 : vector<32x32xf32> to vector<32x32xbf16>
    %cst_11 = arith.constant dense<0.000000e+00> : vector<16x32xf32>
    %17 = tpu.matmul %15, %16, %cst_11 {dimension_numbers = #tpu.dot_dimension_numbers<[1], [0], [0], [1], [0, 0, 1, 1], [], []>} : vector<16x32xbf16>, vector<32x32xbf16>, vector<16x32xf32> -> vector<16x32xf32>
    %c0_12 = arith.constant 0 : index
    %c0_13 = arith.constant 0 : index
    %18 = vector.load %arg1[%c0_12, %c0_13] : memref<16x12xf32, #tpu.memory_space<vmem>>, vector<16x12xf32>
    %c0_14 = arith.constant 0 : index
    %c0_15 = arith.constant 0 : index
    %19 = vector.load %arg7[%c0_14, %c0_15] : memref<12x32xf32, #tpu.memory_space<vmem>>, vector<12x32xf32>
    %20 = arith.truncf %18 : vector<16x12xf32> to vector<16x12xbf16>
    %21 = arith.truncf %19 : vector<12x32xf32> to vector<12x32xbf16>
    %cst_16 = arith.constant dense<0.000000e+00> : vector<16x32xf32>
    %22 = tpu.matmul %20, %21, %cst_16 {dimension_numbers = #tpu.dot_dimension_numbers<[1], [0], [0], [1], [0, 0, 1, 1], [], []>} : vector<16x12xbf16>, vector<12x32xbf16>, vector<16x32xf32> -> vector<16x32xf32>
    %c0_17 = arith.constant 0 : index
    %c0_18 = arith.constant 0 : index
    %23 = vector.load %arg11[%c0_17, %c0_18] : memref<1x32xf32, #tpu.memory_space<vmem>>, vector<1x32xf32>
    %24 = vector.broadcast %23 : vector<1x32xf32> to vector<16x32xf32>
    %25 = arith.addf %22, %24 : vector<16x32xf32>
    %cst_19 = arith.constant 0.000000e+00 : f32
    %26 = vector.broadcast %cst_19 : f32 to vector<16x32xf32>
    %27 = arith.maximumf %25, %26 : vector<16x32xf32>
    %c32 = arith.constant 32 : index
    %c0_20 = arith.constant 0 : index
    %28 = vector.load %arg18[%c32, %c0_20] : memref<128x512xf32, #tpu.memory_space<vmem>>, vector<32x512xf32>
    %29 = arith.truncf %27 : vector<16x32xf32> to vector<16x32xbf16>
    %30 = arith.truncf %28 : vector<32x512xf32> to vector<32x512xbf16>
    %cst_21 = arith.constant dense<0.000000e+00> : vector<16x512xf32>
    %31 = tpu.matmul %29, %30, %cst_21 {dimension_numbers = #tpu.dot_dimension_numbers<[1], [0], [0], [1], [0, 0, 1, 1], [], []>} : vector<16x32xbf16>, vector<32x512xbf16>, vector<16x512xf32> -> vector<16x512xf32>
    %c32_22 = arith.constant 32 : index
    %c0_23 = arith.constant 0 : index
    %32 = vector.load %arg14[%c32_22, %c0_23] : memref<128x32xf32, #tpu.memory_space<vmem>>, vector<32x32xf32>
    %33 = arith.truncf %27 : vector<16x32xf32> to vector<16x32xbf16>
    %34 = arith.truncf %32 : vector<32x32xf32> to vector<32x32xbf16>
    %cst_24 = arith.constant dense<0.000000e+00> : vector<16x32xf32>
    %35 = tpu.matmul %33, %34, %cst_24 {dimension_numbers = #tpu.dot_dimension_numbers<[1], [0], [0], [1], [0, 0, 1, 1], [], []>} : vector<16x32xbf16>, vector<32x32xbf16>, vector<16x32xf32> -> vector<16x32xf32>
    %36 = arith.addf %13, %31 : vector<16x512xf32>
    %37 = arith.addf %17, %35 : vector<16x32xf32>
    %c0_25 = arith.constant 0 : index
    %c0_26 = arith.constant 0 : index
    %38 = vector.load %arg2[%c0_25, %c0_26] : memref<16x24xf32, #tpu.memory_space<vmem>>, vector<16x24xf32>
    %c0_27 = arith.constant 0 : index
    %c0_28 = arith.constant 0 : index
    %39 = vector.load %arg8[%c0_27, %c0_28] : memref<24x32xf32, #tpu.memory_space<vmem>>, vector<24x32xf32>
    %40 = arith.truncf %38 : vector<16x24xf32> to vector<16x24xbf16>
    %41 = arith.truncf %39 : vector<24x32xf32> to vector<24x32xbf16>
    %cst_29 = arith.constant dense<0.000000e+00> : vector<16x32xf32>
    %42 = tpu.matmul %40, %41, %cst_29 {dimension_numbers = #tpu.dot_dimension_numbers<[1], [0], [0], [1], [0, 0, 1, 1], [], []>} : vector<16x24xbf16>, vector<24x32xbf16>, vector<16x32xf32> -> vector<16x32xf32>
    %c0_30 = arith.constant 0 : index
    %c0_31 = arith.constant 0 : index
    %43 = vector.load %arg12[%c0_30, %c0_31] : memref<1x32xf32, #tpu.memory_space<vmem>>, vector<1x32xf32>
    %44 = vector.broadcast %43 : vector<1x32xf32> to vector<16x32xf32>
    %45 = arith.addf %42, %44 : vector<16x32xf32>
    %cst_32 = arith.constant 0.000000e+00 : f32
    %46 = vector.broadcast %cst_32 : f32 to vector<16x32xf32>
    %47 = arith.maximumf %45, %46 : vector<16x32xf32>
    %c64 = arith.constant 64 : index
    %c0_33 = arith.constant 0 : index
    %48 = vector.load %arg18[%c64, %c0_33] : memref<128x512xf32, #tpu.memory_space<vmem>>, vector<32x512xf32>
    %49 = arith.truncf %47 : vector<16x32xf32> to vector<16x32xbf16>
    %50 = arith.truncf %48 : vector<32x512xf32> to vector<32x512xbf16>
    %cst_34 = arith.constant dense<0.000000e+00> : vector<16x512xf32>
    %51 = tpu.matmul %49, %50, %cst_34 {dimension_numbers = #tpu.dot_dimension_numbers<[1], [0], [0], [1], [0, 0, 1, 1], [], []>} : vector<16x32xbf16>, vector<32x512xbf16>, vector<16x512xf32> -> vector<16x512xf32>
    %c64_35 = arith.constant 64 : index
    %c0_36 = arith.constant 0 : index
    %52 = vector.load %arg14[%c64_35, %c0_36] : memref<128x32xf32, #tpu.memory_space<vmem>>, vector<32x32xf32>
    %53 = arith.truncf %47 : vector<16x32xf32> to vector<16x32xbf16>
    %54 = arith.truncf %52 : vector<32x32xf32> to vector<32x32xbf16>
    %cst_37 = arith.constant dense<0.000000e+00> : vector<16x32xf32>
    %55 = tpu.matmul %53, %54, %cst_37 {dimension_numbers = #tpu.dot_dimension_numbers<[1], [0], [0], [1], [0, 0, 1, 1], [], []>} : vector<16x32xbf16>, vector<32x32xbf16>, vector<16x32xf32> -> vector<16x32xf32>
    %56 = arith.addf %36, %51 : vector<16x512xf32>
    %57 = arith.addf %37, %55 : vector<16x32xf32>
    %c0_38 = arith.constant 0 : index
    %c0_39 = arith.constant 0 : index
    %58 = vector.load %arg3[%c0_38, %c0_39] : memref<16x20xf32, #tpu.memory_space<vmem>>, vector<16x20xf32>
    %c0_40 = arith.constant 0 : index
    %c0_41 = arith.constant 0 : index
    %59 = vector.load %arg9[%c0_40, %c0_41] : memref<20x32xf32, #tpu.memory_space<vmem>>, vector<20x32xf32>
    %60 = arith.truncf %58 : vector<16x20xf32> to vector<16x20xbf16>
    %61 = arith.truncf %59 : vector<20x32xf32> to vector<20x32xbf16>
    %cst_42 = arith.constant dense<0.000000e+00> : vector<16x32xf32>
    %62 = tpu.matmul %60, %61, %cst_42 {dimension_numbers = #tpu.dot_dimension_numbers<[1], [0], [0], [1], [0, 0, 1, 1], [], []>} : vector<16x20xbf16>, vector<20x32xbf16>, vector<16x32xf32> -> vector<16x32xf32>
    %c0_43 = arith.constant 0 : index
    %c0_44 = arith.constant 0 : index
    %63 = vector.load %arg13[%c0_43, %c0_44] : memref<1x32xf32, #tpu.memory_space<vmem>>, vector<1x32xf32>
    %64 = vector.broadcast %63 : vector<1x32xf32> to vector<16x32xf32>
    %65 = arith.addf %62, %64 : vector<16x32xf32>
    %cst_45 = arith.constant 0.000000e+00 : f32
    %66 = vector.broadcast %cst_45 : f32 to vector<16x32xf32>
    %67 = arith.maximumf %65, %66 : vector<16x32xf32>
    %c96 = arith.constant 96 : index
    %c0_46 = arith.constant 0 : index
    %68 = vector.load %arg18[%c96, %c0_46] : memref<128x512xf32, #tpu.memory_space<vmem>>, vector<32x512xf32>
    %69 = arith.truncf %67 : vector<16x32xf32> to vector<16x32xbf16>
    %70 = arith.truncf %68 : vector<32x512xf32> to vector<32x512xbf16>
    %cst_47 = arith.constant dense<0.000000e+00> : vector<16x512xf32>
    %71 = tpu.matmul %69, %70, %cst_47 {dimension_numbers = #tpu.dot_dimension_numbers<[1], [0], [0], [1], [0, 0, 1, 1], [], []>} : vector<16x32xbf16>, vector<32x512xbf16>, vector<16x512xf32> -> vector<16x512xf32>
    %c96_48 = arith.constant 96 : index
    %c0_49 = arith.constant 0 : index
    %72 = vector.load %arg14[%c96_48, %c0_49] : memref<128x32xf32, #tpu.memory_space<vmem>>, vector<32x32xf32>
    %73 = arith.truncf %67 : vector<16x32xf32> to vector<16x32xbf16>
    %74 = arith.truncf %72 : vector<32x32xf32> to vector<32x32xbf16>
    %cst_50 = arith.constant dense<0.000000e+00> : vector<16x32xf32>
    %75 = tpu.matmul %73, %74, %cst_50 {dimension_numbers = #tpu.dot_dimension_numbers<[1], [0], [0], [1], [0, 0, 1, 1], [], []>} : vector<16x32xbf16>, vector<32x32xbf16>, vector<16x32xf32> -> vector<16x32xf32>
    %76 = arith.addf %56, %71 : vector<16x512xf32>
    %77 = arith.addf %57, %75 : vector<16x32xf32>
    %c0_51 = arith.constant 0 : index
    %c0_52 = arith.constant 0 : index
    %78 = vector.load %arg19[%c0_51, %c0_52] : memref<1x512xf32, #tpu.memory_space<vmem>>, vector<1x512xf32>
    %79 = vector.broadcast %78 : vector<1x512xf32> to vector<16x512xf32>
    %80 = arith.addf %76, %79 : vector<16x512xf32>
    %c0_53 = arith.constant 0 : index
    %c0_54 = arith.constant 0 : index
    %81 = vector.load %arg15[%c0_53, %c0_54] : memref<1x32xf32, #tpu.memory_space<vmem>>, vector<1x32xf32>
    %82 = vector.broadcast %81 : vector<1x32xf32> to vector<16x32xf32>
    %83 = arith.addf %77, %82 : vector<16x32xf32>
    %cst_55 = arith.constant 0.000000e+00 : f32
    %84 = vector.broadcast %cst_55 : f32 to vector<16x32xf32>
    %85 = arith.maximumf %83, %84 : vector<16x32xf32>
    %c0_56 = arith.constant 0 : index
    %c0_57 = arith.constant 0 : index
    %86 = vector.load %arg16[%c0_56, %c0_57] : memref<32x128xf32, #tpu.memory_space<vmem>>, vector<32x128xf32>
    %87 = arith.truncf %85 : vector<16x32xf32> to vector<16x32xbf16>
    %88 = arith.truncf %86 : vector<32x128xf32> to vector<32x128xbf16>
    %cst_58 = arith.constant dense<0.000000e+00> : vector<16x128xf32>
    %89 = tpu.matmul %87, %88, %cst_58 {dimension_numbers = #tpu.dot_dimension_numbers<[1], [0], [0], [1], [0, 0, 1, 1], [], []>} : vector<16x32xbf16>, vector<32x128xbf16>, vector<16x128xf32> -> vector<16x128xf32>
    %c0_59 = arith.constant 0 : index
    %c0_60 = arith.constant 0 : index
    %90 = vector.load %arg17[%c0_59, %c0_60] : memref<1x128xf32, #tpu.memory_space<vmem>>, vector<1x128xf32>
    %91 = vector.broadcast %90 : vector<1x128xf32> to vector<16x128xf32>
    %92 = arith.addf %89, %91 : vector<16x128xf32>
    %cst_61 = arith.constant dense<0xFF800000> : vector<16xf32>
    %93 = vector.multi_reduction <maximumf>, %92, %cst_61 [1] : vector<16x128xf32> to vector<16xf32>
    %94 = vector.shape_cast %93 : vector<16xf32> to vector<16x1xf32>
    %95 = vector.broadcast %94 : vector<16x1xf32> to vector<16x128xf32>
    %96 = arith.subf %92, %95 : vector<16x128xf32>
    %97 = math.exp %96 : vector<16x128xf32>
    %cst_62 = arith.constant dense<0.000000e+00> : vector<16xf32>
    %98 = vector.multi_reduction <add>, %97, %cst_62 [1] : vector<16x128xf32> to vector<16xf32>
    %99 = vector.shape_cast %98 : vector<16xf32> to vector<16x1xf32>
    %100 = tpu.reciprocal %99 {approx = true} : vector<16x1xf32> -> vector<16x1xf32>
    %101 = vector.broadcast %100 : vector<16x1xf32> to vector<16x128xf32>
    %102 = arith.mulf %97, %101 : vector<16x128xf32>
    %103 = vector.shape_cast %102 : vector<16x128xf32> to vector<2x8x128xf32>
    %104 = vector.shape_cast %80 : vector<16x512xf32> to vector<2x8x512xf32>
    %c0_63 = arith.constant 0 : index
    %c0_64 = arith.constant 0 : index
    %105 = vector.load %arg20[%c0_63, %c0_64] : memref<128x512xf32, #tpu.memory_space<vmem>>, vector<128x512xf32>
    %106 = arith.truncf %105 : vector<128x512xf32> to vector<128x512xbf16>
    %c0_65 = arith.constant 0 : index
    %c0_66 = arith.constant 0 : index
    %107 = vector.load %arg4[%c0_65, %c0_66] : memref<2x1xf32, #tpu.memory_space<vmem>>, vector<2x1xf32>
    %cst_67 = arith.constant 0.000000e+00 : f32
    %108 = vector.broadcast %cst_67 : f32 to vector<2x128xf32>
    %cst_68 = arith.constant 0.000000e+00 : f32
    %109 = vector.broadcast %cst_68 : f32 to vector<2x128xf32>
    %110 = vector.extract_strided_slice %104 {offsets = [0, 0, 0], sizes = [2, 1, 512], strides = [1, 1, 1]} : vector<2x8x512xf32> to vector<2x1x512xf32>
    %111 = vector.shape_cast %110 : vector<2x1x512xf32> to vector<2x512xf32>
    %112 = arith.truncf %108 : vector<2x128xf32> to vector<2x128xbf16>
    %cst_69 = arith.constant dense<0.000000e+00> : vector<2x512xf32>
    %113 = tpu.matmul %112, %106, %cst_69 {dimension_numbers = #tpu.dot_dimension_numbers<[1], [0], [0], [1], [0, 0, 1, 1], [], []>} : vector<2x128xbf16>, vector<128x512xbf16>, vector<2x512xf32> -> vector<2x512xf32>
    %114 = arith.addf %111, %113 : vector<2x512xf32>
    %115 = vector.extract_strided_slice %114 {offsets = [0, 0], sizes = [2, 128], strides = [1, 1]} : vector<2x512xf32> to vector<2x128xf32>
    %116 = arith.negf %115 : vector<2x128xf32>
    %117 = math.exp %116 : vector<2x128xf32>
    %cst_70 = arith.constant 1.000000e+00 : f32
    %118 = vector.broadcast %cst_70 : f32 to vector<2x128xf32>
    %119 = arith.addf %118, %117 : vector<2x128xf32>
    %120 = arith.divf %118, %119 : vector<2x128xf32>
    %121 = vector.extract_strided_slice %114 {offsets = [0, 128], sizes = [2, 128], strides = [1, 1]} : vector<2x512xf32> to vector<2x128xf32>
    %122 = arith.negf %121 : vector<2x128xf32>
    %123 = math.exp %122 : vector<2x128xf32>
    %cst_71 = arith.constant 1.000000e+00 : f32
    %124 = vector.broadcast %cst_71 : f32 to vector<2x128xf32>
    %125 = arith.addf %124, %123 : vector<2x128xf32>
    %126 = arith.divf %124, %125 : vector<2x128xf32>
    %127 = vector.extract_strided_slice %114 {offsets = [0, 256], sizes = [2, 128], strides = [1, 1]} : vector<2x512xf32> to vector<2x128xf32>
    %128 = math.tanh %127 : vector<2x128xf32>
    %129 = vector.extract_strided_slice %114 {offsets = [0, 384], sizes = [2, 128], strides = [1, 1]} : vector<2x512xf32> to vector<2x128xf32>
    %130 = arith.negf %129 : vector<2x128xf32>
    %131 = math.exp %130 : vector<2x128xf32>
    %cst_72 = arith.constant 1.000000e+00 : f32
    %132 = vector.broadcast %cst_72 : f32 to vector<2x128xf32>
    %133 = arith.addf %132, %131 : vector<2x128xf32>
    %134 = arith.divf %132, %133 : vector<2x128xf32>
    %135 = arith.mulf %126, %109 : vector<2x128xf32>
    %136 = arith.mulf %120, %128 : vector<2x128xf32>
    %137 = arith.addf %135, %136 : vector<2x128xf32>
    %138 = math.tanh %137 : vector<2x128xf32>
    %139 = arith.mulf %134, %138 : vector<2x128xf32>
    %cst_73 = arith.constant 0.000000e+00 : f32
    %140 = vector.broadcast %cst_73 : f32 to vector<2x1xf32>
    %141 = arith.cmpf ogt, %107, %140 : vector<2x1xf32>
    %142 = arith.extui %141 : vector<2x1xi1> to vector<2x1xi32>
    %143 = arith.sitofp %142 : vector<2x1xi32> to vector<2x1xf32>
    %144 = vector.broadcast %143 : vector<2x1xf32> to vector<2x128xf32>
    %145 = arith.mulf %139, %144 : vector<2x128xf32>
    %146 = vector.extract_strided_slice %104 {offsets = [0, 1, 0], sizes = [2, 1, 512], strides = [1, 1, 1]} : vector<2x8x512xf32> to vector<2x1x512xf32>
    %147 = vector.shape_cast %146 : vector<2x1x512xf32> to vector<2x512xf32>
    %148 = arith.truncf %139 : vector<2x128xf32> to vector<2x128xbf16>
    %cst_74 = arith.constant dense<0.000000e+00> : vector<2x512xf32>
    %149 = tpu.matmul %148, %106, %cst_74 {dimension_numbers = #tpu.dot_dimension_numbers<[1], [0], [0], [1], [0, 0, 1, 1], [], []>} : vector<2x128xbf16>, vector<128x512xbf16>, vector<2x512xf32> -> vector<2x512xf32>
    %150 = arith.addf %147, %149 : vector<2x512xf32>
    %151 = vector.extract_strided_slice %150 {offsets = [0, 0], sizes = [2, 128], strides = [1, 1]} : vector<2x512xf32> to vector<2x128xf32>
    %152 = arith.negf %151 : vector<2x128xf32>
    %153 = math.exp %152 : vector<2x128xf32>
    %cst_75 = arith.constant 1.000000e+00 : f32
    %154 = vector.broadcast %cst_75 : f32 to vector<2x128xf32>
    %155 = arith.addf %154, %153 : vector<2x128xf32>
    %156 = arith.divf %154, %155 : vector<2x128xf32>
    %157 = vector.extract_strided_slice %150 {offsets = [0, 128], sizes = [2, 128], strides = [1, 1]} : vector<2x512xf32> to vector<2x128xf32>
    %158 = arith.negf %157 : vector<2x128xf32>
    %159 = math.exp %158 : vector<2x128xf32>
    %cst_76 = arith.constant 1.000000e+00 : f32
    %160 = vector.broadcast %cst_76 : f32 to vector<2x128xf32>
    %161 = arith.addf %160, %159 : vector<2x128xf32>
    %162 = arith.divf %160, %161 : vector<2x128xf32>
    %163 = vector.extract_strided_slice %150 {offsets = [0, 256], sizes = [2, 128], strides = [1, 1]} : vector<2x512xf32> to vector<2x128xf32>
    %164 = math.tanh %163 : vector<2x128xf32>
    %165 = vector.extract_strided_slice %150 {offsets = [0, 384], sizes = [2, 128], strides = [1, 1]} : vector<2x512xf32> to vector<2x128xf32>
    %166 = arith.negf %165 : vector<2x128xf32>
    %167 = math.exp %166 : vector<2x128xf32>
    %cst_77 = arith.constant 1.000000e+00 : f32
    %168 = vector.broadcast %cst_77 : f32 to vector<2x128xf32>
    %169 = arith.addf %168, %167 : vector<2x128xf32>
    %170 = arith.divf %168, %169 : vector<2x128xf32>
    %171 = arith.mulf %162, %137 : vector<2x128xf32>
    %172 = arith.mulf %156, %164 : vector<2x128xf32>
    %173 = arith.addf %171, %172 : vector<2x128xf32>
    %174 = math.tanh %173 : vector<2x128xf32>
    %175 = arith.mulf %170, %174 : vector<2x128xf32>
    %cst_78 = arith.constant 1.000000e+00 : f32
    %176 = vector.broadcast %cst_78 : f32 to vector<2x1xf32>
    %177 = arith.cmpf ogt, %107, %176 : vector<2x1xf32>
    %178 = arith.extui %177 : vector<2x1xi1> to vector<2x1xi32>
    %179 = arith.sitofp %178 : vector<2x1xi32> to vector<2x1xf32>
    %180 = vector.broadcast %179 : vector<2x1xf32> to vector<2x128xf32>
    %181 = arith.mulf %175, %180 : vector<2x128xf32>
    %182 = vector.extract_strided_slice %104 {offsets = [0, 2, 0], sizes = [2, 1, 512], strides = [1, 1, 1]} : vector<2x8x512xf32> to vector<2x1x512xf32>
    %183 = vector.shape_cast %182 : vector<2x1x512xf32> to vector<2x512xf32>
    %184 = arith.truncf %175 : vector<2x128xf32> to vector<2x128xbf16>
    %cst_79 = arith.constant dense<0.000000e+00> : vector<2x512xf32>
    %185 = tpu.matmul %184, %106, %cst_79 {dimension_numbers = #tpu.dot_dimension_numbers<[1], [0], [0], [1], [0, 0, 1, 1], [], []>} : vector<2x128xbf16>, vector<128x512xbf16>, vector<2x512xf32> -> vector<2x512xf32>
    %186 = arith.addf %183, %185 : vector<2x512xf32>
    %187 = vector.extract_strided_slice %186 {offsets = [0, 0], sizes = [2, 128], strides = [1, 1]} : vector<2x512xf32> to vector<2x128xf32>
    %188 = arith.negf %187 : vector<2x128xf32>
    %189 = math.exp %188 : vector<2x128xf32>
    %cst_80 = arith.constant 1.000000e+00 : f32
    %190 = vector.broadcast %cst_80 : f32 to vector<2x128xf32>
    %191 = arith.addf %190, %189 : vector<2x128xf32>
    %192 = arith.divf %190, %191 : vector<2x128xf32>
    %193 = vector.extract_strided_slice %186 {offsets = [0, 128], sizes = [2, 128], strides = [1, 1]} : vector<2x512xf32> to vector<2x128xf32>
    %194 = arith.negf %193 : vector<2x128xf32>
    %195 = math.exp %194 : vector<2x128xf32>
    %cst_81 = arith.constant 1.000000e+00 : f32
    %196 = vector.broadcast %cst_81 : f32 to vector<2x128xf32>
    %197 = arith.addf %196, %195 : vector<2x128xf32>
    %198 = arith.divf %196, %197 : vector<2x128xf32>
    %199 = vector.extract_strided_slice %186 {offsets = [0, 256], sizes = [2, 128], strides = [1, 1]} : vector<2x512xf32> to vector<2x128xf32>
    %200 = math.tanh %199 : vector<2x128xf32>
    %201 = vector.extract_strided_slice %186 {offsets = [0, 384], sizes = [2, 128], strides = [1, 1]} : vector<2x512xf32> to vector<2x128xf32>
    %202 = arith.negf %201 : vector<2x128xf32>
    %203 = math.exp %202 : vector<2x128xf32>
    %cst_82 = arith.constant 1.000000e+00 : f32
    %204 = vector.broadcast %cst_82 : f32 to vector<2x128xf32>
    %205 = arith.addf %204, %203 : vector<2x128xf32>
    %206 = arith.divf %204, %205 : vector<2x128xf32>
    %207 = arith.mulf %198, %173 : vector<2x128xf32>
    %208 = arith.mulf %192, %200 : vector<2x128xf32>
    %209 = arith.addf %207, %208 : vector<2x128xf32>
    %210 = math.tanh %209 : vector<2x128xf32>
    %211 = arith.mulf %206, %210 : vector<2x128xf32>
    %cst_83 = arith.constant 2.000000e+00 : f32
    %212 = vector.broadcast %cst_83 : f32 to vector<2x1xf32>
    %213 = arith.cmpf ogt, %107, %212 : vector<2x1xf32>
    %214 = arith.extui %213 : vector<2x1xi1> to vector<2x1xi32>
    %215 = arith.sitofp %214 : vector<2x1xi32> to vector<2x1xf32>
    %216 = vector.broadcast %215 : vector<2x1xf32> to vector<2x128xf32>
    %217 = arith.mulf %211, %216 : vector<2x128xf32>
    %218 = vector.extract_strided_slice %104 {offsets = [0, 3, 0], sizes = [2, 1, 512], strides = [1, 1, 1]} : vector<2x8x512xf32> to vector<2x1x512xf32>
    %219 = vector.shape_cast %218 : vector<2x1x512xf32> to vector<2x512xf32>
    %220 = arith.truncf %211 : vector<2x128xf32> to vector<2x128xbf16>
    %cst_84 = arith.constant dense<0.000000e+00> : vector<2x512xf32>
    %221 = tpu.matmul %220, %106, %cst_84 {dimension_numbers = #tpu.dot_dimension_numbers<[1], [0], [0], [1], [0, 0, 1, 1], [], []>} : vector<2x128xbf16>, vector<128x512xbf16>, vector<2x512xf32> -> vector<2x512xf32>
    %222 = arith.addf %219, %221 : vector<2x512xf32>
    %223 = vector.extract_strided_slice %222 {offsets = [0, 0], sizes = [2, 128], strides = [1, 1]} : vector<2x512xf32> to vector<2x128xf32>
    %224 = arith.negf %223 : vector<2x128xf32>
    %225 = math.exp %224 : vector<2x128xf32>
    %cst_85 = arith.constant 1.000000e+00 : f32
    %226 = vector.broadcast %cst_85 : f32 to vector<2x128xf32>
    %227 = arith.addf %226, %225 : vector<2x128xf32>
    %228 = arith.divf %226, %227 : vector<2x128xf32>
    %229 = vector.extract_strided_slice %222 {offsets = [0, 128], sizes = [2, 128], strides = [1, 1]} : vector<2x512xf32> to vector<2x128xf32>
    %230 = arith.negf %229 : vector<2x128xf32>
    %231 = math.exp %230 : vector<2x128xf32>
    %cst_86 = arith.constant 1.000000e+00 : f32
    %232 = vector.broadcast %cst_86 : f32 to vector<2x128xf32>
    %233 = arith.addf %232, %231 : vector<2x128xf32>
    %234 = arith.divf %232, %233 : vector<2x128xf32>
    %235 = vector.extract_strided_slice %222 {offsets = [0, 256], sizes = [2, 128], strides = [1, 1]} : vector<2x512xf32> to vector<2x128xf32>
    %236 = math.tanh %235 : vector<2x128xf32>
    %237 = vector.extract_strided_slice %222 {offsets = [0, 384], sizes = [2, 128], strides = [1, 1]} : vector<2x512xf32> to vector<2x128xf32>
    %238 = arith.negf %237 : vector<2x128xf32>
    %239 = math.exp %238 : vector<2x128xf32>
    %cst_87 = arith.constant 1.000000e+00 : f32
    %240 = vector.broadcast %cst_87 : f32 to vector<2x128xf32>
    %241 = arith.addf %240, %239 : vector<2x128xf32>
    %242 = arith.divf %240, %241 : vector<2x128xf32>
    %243 = arith.mulf %234, %209 : vector<2x128xf32>
    %244 = arith.mulf %228, %236 : vector<2x128xf32>
    %245 = arith.addf %243, %244 : vector<2x128xf32>
    %246 = math.tanh %245 : vector<2x128xf32>
    %247 = arith.mulf %242, %246 : vector<2x128xf32>
    %cst_88 = arith.constant 3.000000e+00 : f32
    %248 = vector.broadcast %cst_88 : f32 to vector<2x1xf32>
    %249 = arith.cmpf ogt, %107, %248 : vector<2x1xf32>
    %250 = arith.extui %249 : vector<2x1xi1> to vector<2x1xi32>
    %251 = arith.sitofp %250 : vector<2x1xi32> to vector<2x1xf32>
    %252 = vector.broadcast %251 : vector<2x1xf32> to vector<2x128xf32>
    %253 = arith.mulf %247, %252 : vector<2x128xf32>
    %254 = vector.extract_strided_slice %104 {offsets = [0, 4, 0], sizes = [2, 1, 512], strides = [1, 1, 1]} : vector<2x8x512xf32> to vector<2x1x512xf32>
    %255 = vector.shape_cast %254 : vector<2x1x512xf32> to vector<2x512xf32>
    %256 = arith.truncf %247 : vector<2x128xf32> to vector<2x128xbf16>
    %cst_89 = arith.constant dense<0.000000e+00> : vector<2x512xf32>
    %257 = tpu.matmul %256, %106, %cst_89 {dimension_numbers = #tpu.dot_dimension_numbers<[1], [0], [0], [1], [0, 0, 1, 1], [], []>} : vector<2x128xbf16>, vector<128x512xbf16>, vector<2x512xf32> -> vector<2x512xf32>
    %258 = arith.addf %255, %257 : vector<2x512xf32>
    %259 = vector.extract_strided_slice %258 {offsets = [0, 0], sizes = [2, 128], strides = [1, 1]} : vector<2x512xf32> to vector<2x128xf32>
    %260 = arith.negf %259 : vector<2x128xf32>
    %261 = math.exp %260 : vector<2x128xf32>
    %cst_90 = arith.constant 1.000000e+00 : f32
    %262 = vector.broadcast %cst_90 : f32 to vector<2x128xf32>
    %263 = arith.addf %262, %261 : vector<2x128xf32>
    %264 = arith.divf %262, %263 : vector<2x128xf32>
    %265 = vector.extract_strided_slice %258 {offsets = [0, 128], sizes = [2, 128], strides = [1, 1]} : vector<2x512xf32> to vector<2x128xf32>
    %266 = arith.negf %265 : vector<2x128xf32>
    %267 = math.exp %266 : vector<2x128xf32>
    %cst_91 = arith.constant 1.000000e+00 : f32
    %268 = vector.broadcast %cst_91 : f32 to vector<2x128xf32>
    %269 = arith.addf %268, %267 : vector<2x128xf32>
    %270 = arith.divf %268, %269 : vector<2x128xf32>
    %271 = vector.extract_strided_slice %258 {offsets = [0, 256], sizes = [2, 128], strides = [1, 1]} : vector<2x512xf32> to vector<2x128xf32>
    %272 = math.tanh %271 : vector<2x128xf32>
    %273 = vector.extract_strided_slice %258 {offsets = [0, 384], sizes = [2, 128], strides = [1, 1]} : vector<2x512xf32> to vector<2x128xf32>
    %274 = arith.negf %273 : vector<2x128xf32>
    %275 = math.exp %274 : vector<2x128xf32>
    %cst_92 = arith.constant 1.000000e+00 : f32
    %276 = vector.broadcast %cst_92 : f32 to vector<2x128xf32>
    %277 = arith.addf %276, %275 : vector<2x128xf32>
    %278 = arith.divf %276, %277 : vector<2x128xf32>
    %279 = arith.mulf %270, %245 : vector<2x128xf32>
    %280 = arith.mulf %264, %272 : vector<2x128xf32>
    %281 = arith.addf %279, %280 : vector<2x128xf32>
    %282 = math.tanh %281 : vector<2x128xf32>
    %283 = arith.mulf %278, %282 : vector<2x128xf32>
    %cst_93 = arith.constant 4.000000e+00 : f32
    %284 = vector.broadcast %cst_93 : f32 to vector<2x1xf32>
    %285 = arith.cmpf ogt, %107, %284 : vector<2x1xf32>
    %286 = arith.extui %285 : vector<2x1xi1> to vector<2x1xi32>
    %287 = arith.sitofp %286 : vector<2x1xi32> to vector<2x1xf32>
    %288 = vector.broadcast %287 : vector<2x1xf32> to vector<2x128xf32>
    %289 = arith.mulf %283, %288 : vector<2x128xf32>
    %290 = vector.extract_strided_slice %104 {offsets = [0, 5, 0], sizes = [2, 1, 512], strides = [1, 1, 1]} : vector<2x8x512xf32> to vector<2x1x512xf32>
    %291 = vector.shape_cast %290 : vector<2x1x512xf32> to vector<2x512xf32>
    %292 = arith.truncf %283 : vector<2x128xf32> to vector<2x128xbf16>
    %cst_94 = arith.constant dense<0.000000e+00> : vector<2x512xf32>
    %293 = tpu.matmul %292, %106, %cst_94 {dimension_numbers = #tpu.dot_dimension_numbers<[1], [0], [0], [1], [0, 0, 1, 1], [], []>} : vector<2x128xbf16>, vector<128x512xbf16>, vector<2x512xf32> -> vector<2x512xf32>
    %294 = arith.addf %291, %293 : vector<2x512xf32>
    %295 = vector.extract_strided_slice %294 {offsets = [0, 0], sizes = [2, 128], strides = [1, 1]} : vector<2x512xf32> to vector<2x128xf32>
    %296 = arith.negf %295 : vector<2x128xf32>
    %297 = math.exp %296 : vector<2x128xf32>
    %cst_95 = arith.constant 1.000000e+00 : f32
    %298 = vector.broadcast %cst_95 : f32 to vector<2x128xf32>
    %299 = arith.addf %298, %297 : vector<2x128xf32>
    %300 = arith.divf %298, %299 : vector<2x128xf32>
    %301 = vector.extract_strided_slice %294 {offsets = [0, 128], sizes = [2, 128], strides = [1, 1]} : vector<2x512xf32> to vector<2x128xf32>
    %302 = arith.negf %301 : vector<2x128xf32>
    %303 = math.exp %302 : vector<2x128xf32>
    %cst_96 = arith.constant 1.000000e+00 : f32
    %304 = vector.broadcast %cst_96 : f32 to vector<2x128xf32>
    %305 = arith.addf %304, %303 : vector<2x128xf32>
    %306 = arith.divf %304, %305 : vector<2x128xf32>
    %307 = vector.extract_strided_slice %294 {offsets = [0, 256], sizes = [2, 128], strides = [1, 1]} : vector<2x512xf32> to vector<2x128xf32>
    %308 = math.tanh %307 : vector<2x128xf32>
    %309 = vector.extract_strided_slice %294 {offsets = [0, 384], sizes = [2, 128], strides = [1, 1]} : vector<2x512xf32> to vector<2x128xf32>
    %310 = arith.negf %309 : vector<2x128xf32>
    %311 = math.exp %310 : vector<2x128xf32>
    %cst_97 = arith.constant 1.000000e+00 : f32
    %312 = vector.broadcast %cst_97 : f32 to vector<2x128xf32>
    %313 = arith.addf %312, %311 : vector<2x128xf32>
    %314 = arith.divf %312, %313 : vector<2x128xf32>
    %315 = arith.mulf %306, %281 : vector<2x128xf32>
    %316 = arith.mulf %300, %308 : vector<2x128xf32>
    %317 = arith.addf %315, %316 : vector<2x128xf32>
    %318 = math.tanh %317 : vector<2x128xf32>
    %319 = arith.mulf %314, %318 : vector<2x128xf32>
    %cst_98 = arith.constant 5.000000e+00 : f32
    %320 = vector.broadcast %cst_98 : f32 to vector<2x1xf32>
    %321 = arith.cmpf ogt, %107, %320 : vector<2x1xf32>
    %322 = arith.extui %321 : vector<2x1xi1> to vector<2x1xi32>
    %323 = arith.sitofp %322 : vector<2x1xi32> to vector<2x1xf32>
    %324 = vector.broadcast %323 : vector<2x1xf32> to vector<2x128xf32>
    %325 = arith.mulf %319, %324 : vector<2x128xf32>
    %326 = vector.extract_strided_slice %104 {offsets = [0, 6, 0], sizes = [2, 1, 512], strides = [1, 1, 1]} : vector<2x8x512xf32> to vector<2x1x512xf32>
    %327 = vector.shape_cast %326 : vector<2x1x512xf32> to vector<2x512xf32>
    %328 = arith.truncf %319 : vector<2x128xf32> to vector<2x128xbf16>
    %cst_99 = arith.constant dense<0.000000e+00> : vector<2x512xf32>
    %329 = tpu.matmul %328, %106, %cst_99 {dimension_numbers = #tpu.dot_dimension_numbers<[1], [0], [0], [1], [0, 0, 1, 1], [], []>} : vector<2x128xbf16>, vector<128x512xbf16>, vector<2x512xf32> -> vector<2x512xf32>
    %330 = arith.addf %327, %329 : vector<2x512xf32>
    %331 = vector.extract_strided_slice %330 {offsets = [0, 0], sizes = [2, 128], strides = [1, 1]} : vector<2x512xf32> to vector<2x128xf32>
    %332 = arith.negf %331 : vector<2x128xf32>
    %333 = math.exp %332 : vector<2x128xf32>
    %cst_100 = arith.constant 1.000000e+00 : f32
    %334 = vector.broadcast %cst_100 : f32 to vector<2x128xf32>
    %335 = arith.addf %334, %333 : vector<2x128xf32>
    %336 = arith.divf %334, %335 : vector<2x128xf32>
    %337 = vector.extract_strided_slice %330 {offsets = [0, 128], sizes = [2, 128], strides = [1, 1]} : vector<2x512xf32> to vector<2x128xf32>
    %338 = arith.negf %337 : vector<2x128xf32>
    %339 = math.exp %338 : vector<2x128xf32>
    %cst_101 = arith.constant 1.000000e+00 : f32
    %340 = vector.broadcast %cst_101 : f32 to vector<2x128xf32>
    %341 = arith.addf %340, %339 : vector<2x128xf32>
    %342 = arith.divf %340, %341 : vector<2x128xf32>
    %343 = vector.extract_strided_slice %330 {offsets = [0, 256], sizes = [2, 128], strides = [1, 1]} : vector<2x512xf32> to vector<2x128xf32>
    %344 = math.tanh %343 : vector<2x128xf32>
    %345 = vector.extract_strided_slice %330 {offsets = [0, 384], sizes = [2, 128], strides = [1, 1]} : vector<2x512xf32> to vector<2x128xf32>
    %346 = arith.negf %345 : vector<2x128xf32>
    %347 = math.exp %346 : vector<2x128xf32>
    %cst_102 = arith.constant 1.000000e+00 : f32
    %348 = vector.broadcast %cst_102 : f32 to vector<2x128xf32>
    %349 = arith.addf %348, %347 : vector<2x128xf32>
    %350 = arith.divf %348, %349 : vector<2x128xf32>
    %351 = arith.mulf %342, %317 : vector<2x128xf32>
    %352 = arith.mulf %336, %344 : vector<2x128xf32>
    %353 = arith.addf %351, %352 : vector<2x128xf32>
    %354 = math.tanh %353 : vector<2x128xf32>
    %355 = arith.mulf %350, %354 : vector<2x128xf32>
    %cst_103 = arith.constant 6.000000e+00 : f32
    %356 = vector.broadcast %cst_103 : f32 to vector<2x1xf32>
    %357 = arith.cmpf ogt, %107, %356 : vector<2x1xf32>
    %358 = arith.extui %357 : vector<2x1xi1> to vector<2x1xi32>
    %359 = arith.sitofp %358 : vector<2x1xi32> to vector<2x1xf32>
    %360 = vector.broadcast %359 : vector<2x1xf32> to vector<2x128xf32>
    %361 = arith.mulf %355, %360 : vector<2x128xf32>
    %362 = vector.extract_strided_slice %104 {offsets = [0, 7, 0], sizes = [2, 1, 512], strides = [1, 1, 1]} : vector<2x8x512xf32> to vector<2x1x512xf32>
    %363 = vector.shape_cast %362 : vector<2x1x512xf32> to vector<2x512xf32>
    %364 = arith.truncf %355 : vector<2x128xf32> to vector<2x128xbf16>
    %cst_104 = arith.constant dense<0.000000e+00> : vector<2x512xf32>
    %365 = tpu.matmul %364, %106, %cst_104 {dimension_numbers = #tpu.dot_dimension_numbers<[1], [0], [0], [1], [0, 0, 1, 1], [], []>} : vector<2x128xbf16>, vector<128x512xbf16>, vector<2x512xf32> -> vector<2x512xf32>
    %366 = arith.addf %363, %365 : vector<2x512xf32>
    %367 = vector.extract_strided_slice %366 {offsets = [0, 0], sizes = [2, 128], strides = [1, 1]} : vector<2x512xf32> to vector<2x128xf32>
    %368 = arith.negf %367 : vector<2x128xf32>
    %369 = math.exp %368 : vector<2x128xf32>
    %cst_105 = arith.constant 1.000000e+00 : f32
    %370 = vector.broadcast %cst_105 : f32 to vector<2x128xf32>
    %371 = arith.addf %370, %369 : vector<2x128xf32>
    %372 = arith.divf %370, %371 : vector<2x128xf32>
    %373 = vector.extract_strided_slice %366 {offsets = [0, 128], sizes = [2, 128], strides = [1, 1]} : vector<2x512xf32> to vector<2x128xf32>
    %374 = arith.negf %373 : vector<2x128xf32>
    %375 = math.exp %374 : vector<2x128xf32>
    %cst_106 = arith.constant 1.000000e+00 : f32
    %376 = vector.broadcast %cst_106 : f32 to vector<2x128xf32>
    %377 = arith.addf %376, %375 : vector<2x128xf32>
    %378 = arith.divf %376, %377 : vector<2x128xf32>
    %379 = vector.extract_strided_slice %366 {offsets = [0, 256], sizes = [2, 128], strides = [1, 1]} : vector<2x512xf32> to vector<2x128xf32>
    %380 = math.tanh %379 : vector<2x128xf32>
    %381 = vector.extract_strided_slice %366 {offsets = [0, 384], sizes = [2, 128], strides = [1, 1]} : vector<2x512xf32> to vector<2x128xf32>
    %382 = arith.negf %381 : vector<2x128xf32>
    %383 = math.exp %382 : vector<2x128xf32>
    %cst_107 = arith.constant 1.000000e+00 : f32
    %384 = vector.broadcast %cst_107 : f32 to vector<2x128xf32>
    %385 = arith.addf %384, %383 : vector<2x128xf32>
    %386 = arith.divf %384, %385 : vector<2x128xf32>
    %387 = arith.mulf %378, %353 : vector<2x128xf32>
    %388 = arith.mulf %372, %380 : vector<2x128xf32>
    %389 = arith.addf %387, %388 : vector<2x128xf32>
    %390 = math.tanh %389 : vector<2x128xf32>
    %391 = arith.mulf %386, %390 : vector<2x128xf32>
    %cst_108 = arith.constant 7.000000e+00 : f32
    %392 = vector.broadcast %cst_108 : f32 to vector<2x1xf32>
    %393 = arith.cmpf ogt, %107, %392 : vector<2x1xf32>
    %394 = arith.extui %393 : vector<2x1xi1> to vector<2x1xi32>
    %395 = arith.sitofp %394 : vector<2x1xi32> to vector<2x1xf32>
    %396 = vector.broadcast %395 : vector<2x1xf32> to vector<2x128xf32>
    %397 = arith.mulf %391, %396 : vector<2x128xf32>
    %398 = vector.extract_strided_slice %103 {offsets = [0, 0, 0], sizes = [2, 1, 1], strides = [1, 1, 1]} : vector<2x8x128xf32> to vector<2x1x1xf32>
    %399 = vector.shape_cast %398 : vector<2x1x1xf32> to vector<2x1xf32>
    %400 = vector.broadcast %399 : vector<2x1xf32> to vector<2x128xf32>
    %401 = arith.mulf %400, %145 : vector<2x128xf32>
    %402 = vector.extract_strided_slice %103 {offsets = [0, 1, 0], sizes = [2, 1, 1], strides = [1, 1, 1]} : vector<2x8x128xf32> to vector<2x1x1xf32>
    %403 = vector.shape_cast %402 : vector<2x1x1xf32> to vector<2x1xf32>
    %404 = vector.broadcast %403 : vector<2x1xf32> to vector<2x128xf32>
    %405 = arith.mulf %404, %181 : vector<2x128xf32>
    %406 = vector.extract_strided_slice %103 {offsets = [0, 1, 1], sizes = [2, 1, 1], strides = [1, 1, 1]} : vector<2x8x128xf32> to vector<2x1x1xf32>
    %407 = vector.shape_cast %406 : vector<2x1x1xf32> to vector<2x1xf32>
    %408 = vector.broadcast %407 : vector<2x1xf32> to vector<2x128xf32>
    %409 = arith.mulf %408, %145 : vector<2x128xf32>
    %410 = arith.addf %405, %409 : vector<2x128xf32>
    %411 = vector.extract_strided_slice %103 {offsets = [0, 2, 0], sizes = [2, 1, 1], strides = [1, 1, 1]} : vector<2x8x128xf32> to vector<2x1x1xf32>
    %412 = vector.shape_cast %411 : vector<2x1x1xf32> to vector<2x1xf32>
    %413 = vector.broadcast %412 : vector<2x1xf32> to vector<2x128xf32>
    %414 = arith.mulf %413, %217 : vector<2x128xf32>
    %415 = vector.extract_strided_slice %103 {offsets = [0, 2, 1], sizes = [2, 1, 1], strides = [1, 1, 1]} : vector<2x8x128xf32> to vector<2x1x1xf32>
    %416 = vector.shape_cast %415 : vector<2x1x1xf32> to vector<2x1xf32>
    %417 = vector.broadcast %416 : vector<2x1xf32> to vector<2x128xf32>
    %418 = arith.mulf %417, %181 : vector<2x128xf32>
    %419 = arith.addf %414, %418 : vector<2x128xf32>
    %420 = vector.extract_strided_slice %103 {offsets = [0, 2, 2], sizes = [2, 1, 1], strides = [1, 1, 1]} : vector<2x8x128xf32> to vector<2x1x1xf32>
    %421 = vector.shape_cast %420 : vector<2x1x1xf32> to vector<2x1xf32>
    %422 = vector.broadcast %421 : vector<2x1xf32> to vector<2x128xf32>
    %423 = arith.mulf %422, %145 : vector<2x128xf32>
    %424 = arith.addf %419, %423 : vector<2x128xf32>
    %425 = vector.extract_strided_slice %103 {offsets = [0, 3, 0], sizes = [2, 1, 1], strides = [1, 1, 1]} : vector<2x8x128xf32> to vector<2x1x1xf32>
    %426 = vector.shape_cast %425 : vector<2x1x1xf32> to vector<2x1xf32>
    %427 = vector.broadcast %426 : vector<2x1xf32> to vector<2x128xf32>
    %428 = arith.mulf %427, %253 : vector<2x128xf32>
    %429 = vector.extract_strided_slice %103 {offsets = [0, 3, 1], sizes = [2, 1, 1], strides = [1, 1, 1]} : vector<2x8x128xf32> to vector<2x1x1xf32>
    %430 = vector.shape_cast %429 : vector<2x1x1xf32> to vector<2x1xf32>
    %431 = vector.broadcast %430 : vector<2x1xf32> to vector<2x128xf32>
    %432 = arith.mulf %431, %217 : vector<2x128xf32>
    %433 = arith.addf %428, %432 : vector<2x128xf32>
    %434 = vector.extract_strided_slice %103 {offsets = [0, 3, 2], sizes = [2, 1, 1], strides = [1, 1, 1]} : vector<2x8x128xf32> to vector<2x1x1xf32>
    %435 = vector.shape_cast %434 : vector<2x1x1xf32> to vector<2x1xf32>
    %436 = vector.broadcast %435 : vector<2x1xf32> to vector<2x128xf32>
    %437 = arith.mulf %436, %181 : vector<2x128xf32>
    %438 = arith.addf %433, %437 : vector<2x128xf32>
    %439 = vector.extract_strided_slice %103 {offsets = [0, 4, 0], sizes = [2, 1, 1], strides = [1, 1, 1]} : vector<2x8x128xf32> to vector<2x1x1xf32>
    %440 = vector.shape_cast %439 : vector<2x1x1xf32> to vector<2x1xf32>
    %441 = vector.broadcast %440 : vector<2x1xf32> to vector<2x128xf32>
    %442 = arith.mulf %441, %289 : vector<2x128xf32>
    %443 = vector.extract_strided_slice %103 {offsets = [0, 4, 1], sizes = [2, 1, 1], strides = [1, 1, 1]} : vector<2x8x128xf32> to vector<2x1x1xf32>
    %444 = vector.shape_cast %443 : vector<2x1x1xf32> to vector<2x1xf32>
    %445 = vector.broadcast %444 : vector<2x1xf32> to vector<2x128xf32>
    %446 = arith.mulf %445, %253 : vector<2x128xf32>
    %447 = arith.addf %442, %446 : vector<2x128xf32>
    %448 = vector.extract_strided_slice %103 {offsets = [0, 4, 2], sizes = [2, 1, 1], strides = [1, 1, 1]} : vector<2x8x128xf32> to vector<2x1x1xf32>
    %449 = vector.shape_cast %448 : vector<2x1x1xf32> to vector<2x1xf32>
    %450 = vector.broadcast %449 : vector<2x1xf32> to vector<2x128xf32>
    %451 = arith.mulf %450, %217 : vector<2x128xf32>
    %452 = arith.addf %447, %451 : vector<2x128xf32>
    %453 = vector.extract_strided_slice %103 {offsets = [0, 5, 0], sizes = [2, 1, 1], strides = [1, 1, 1]} : vector<2x8x128xf32> to vector<2x1x1xf32>
    %454 = vector.shape_cast %453 : vector<2x1x1xf32> to vector<2x1xf32>
    %455 = vector.broadcast %454 : vector<2x1xf32> to vector<2x128xf32>
    %456 = arith.mulf %455, %325 : vector<2x128xf32>
    %457 = vector.extract_strided_slice %103 {offsets = [0, 5, 1], sizes = [2, 1, 1], strides = [1, 1, 1]} : vector<2x8x128xf32> to vector<2x1x1xf32>
    %458 = vector.shape_cast %457 : vector<2x1x1xf32> to vector<2x1xf32>
    %459 = vector.broadcast %458 : vector<2x1xf32> to vector<2x128xf32>
    %460 = arith.mulf %459, %289 : vector<2x128xf32>
    %461 = arith.addf %456, %460 : vector<2x128xf32>
    %462 = vector.extract_strided_slice %103 {offsets = [0, 5, 2], sizes = [2, 1, 1], strides = [1, 1, 1]} : vector<2x8x128xf32> to vector<2x1x1xf32>
    %463 = vector.shape_cast %462 : vector<2x1x1xf32> to vector<2x1xf32>
    %464 = vector.broadcast %463 : vector<2x1xf32> to vector<2x128xf32>
    %465 = arith.mulf %464, %253 : vector<2x128xf32>
    %466 = arith.addf %461, %465 : vector<2x128xf32>
    %467 = vector.extract_strided_slice %103 {offsets = [0, 6, 0], sizes = [2, 1, 1], strides = [1, 1, 1]} : vector<2x8x128xf32> to vector<2x1x1xf32>
    %468 = vector.shape_cast %467 : vector<2x1x1xf32> to vector<2x1xf32>
    %469 = vector.broadcast %468 : vector<2x1xf32> to vector<2x128xf32>
    %470 = arith.mulf %469, %361 : vector<2x128xf32>
    %471 = vector.extract_strided_slice %103 {offsets = [0, 6, 1], sizes = [2, 1, 1], strides = [1, 1, 1]} : vector<2x8x128xf32> to vector<2x1x1xf32>
    %472 = vector.shape_cast %471 : vector<2x1x1xf32> to vector<2x1xf32>
    %473 = vector.broadcast %472 : vector<2x1xf32> to vector<2x128xf32>
    %474 = arith.mulf %473, %325 : vector<2x128xf32>
    %475 = arith.addf %470, %474 : vector<2x128xf32>
    %476 = vector.extract_strided_slice %103 {offsets = [0, 6, 2], sizes = [2, 1, 1], strides = [1, 1, 1]} : vector<2x8x128xf32> to vector<2x1x1xf32>
    %477 = vector.shape_cast %476 : vector<2x1x1xf32> to vector<2x1xf32>
    %478 = vector.broadcast %477 : vector<2x1xf32> to vector<2x128xf32>
    %479 = arith.mulf %478, %289 : vector<2x128xf32>
    %480 = arith.addf %475, %479 : vector<2x128xf32>
    %481 = vector.extract_strided_slice %103 {offsets = [0, 7, 0], sizes = [2, 1, 1], strides = [1, 1, 1]} : vector<2x8x128xf32> to vector<2x1x1xf32>
    %482 = vector.shape_cast %481 : vector<2x1x1xf32> to vector<2x1xf32>
    %483 = vector.broadcast %482 : vector<2x1xf32> to vector<2x128xf32>
    %484 = arith.mulf %483, %397 : vector<2x128xf32>
    %485 = vector.extract_strided_slice %103 {offsets = [0, 7, 1], sizes = [2, 1, 1], strides = [1, 1, 1]} : vector<2x8x128xf32> to vector<2x1x1xf32>
    %486 = vector.shape_cast %485 : vector<2x1x1xf32> to vector<2x1xf32>
    %487 = vector.broadcast %486 : vector<2x1xf32> to vector<2x128xf32>
    %488 = arith.mulf %487, %361 : vector<2x128xf32>
    %489 = arith.addf %484, %488 : vector<2x128xf32>
    %490 = vector.extract_strided_slice %103 {offsets = [0, 7, 2], sizes = [2, 1, 1], strides = [1, 1, 1]} : vector<2x8x128xf32> to vector<2x1x1xf32>
    %491 = vector.shape_cast %490 : vector<2x1x1xf32> to vector<2x1xf32>
    %492 = vector.broadcast %491 : vector<2x1xf32> to vector<2x128xf32>
    %493 = arith.mulf %492, %325 : vector<2x128xf32>
    %494 = arith.addf %489, %493 : vector<2x128xf32>
    %495 = vector.shape_cast %401 : vector<2x128xf32> to vector<2x1x128xf32>
    %496 = vector.shape_cast %410 : vector<2x128xf32> to vector<2x1x128xf32>
    %497 = vector.shape_cast %424 : vector<2x128xf32> to vector<2x1x128xf32>
    %498 = vector.shape_cast %438 : vector<2x128xf32> to vector<2x1x128xf32>
    %499 = vector.shape_cast %452 : vector<2x128xf32> to vector<2x1x128xf32>
    %500 = vector.shape_cast %466 : vector<2x128xf32> to vector<2x1x128xf32>
    %501 = vector.shape_cast %480 : vector<2x128xf32> to vector<2x1x128xf32>
    %502 = vector.shape_cast %494 : vector<2x128xf32> to vector<2x1x128xf32>
    %503 = tpu.concatenate %495, %496, %497, %498, %499, %500, %501, %502 in 1 : vector<2x1x128xf32>, vector<2x1x128xf32>, vector<2x1x128xf32>, vector<2x1x128xf32>, vector<2x1x128xf32>, vector<2x1x128xf32>, vector<2x1x128xf32>, vector<2x1x128xf32> -> vector<2x8x128xf32>
    %504 = vector.shape_cast %503 : vector<2x8x128xf32> to vector<16x128xf32>
    %c0_109 = arith.constant 0 : index
    %c0_110 = arith.constant 0 : index
    %505 = vector.load %arg21[%c0_109, %c0_110] : memref<128x32xf32, #tpu.memory_space<vmem>>, vector<128x32xf32>
    %506 = arith.truncf %504 : vector<16x128xf32> to vector<16x128xbf16>
    %507 = arith.truncf %505 : vector<128x32xf32> to vector<128x32xbf16>
    %cst_111 = arith.constant dense<0.000000e+00> : vector<16x32xf32>
    %508 = tpu.matmul %506, %507, %cst_111 {dimension_numbers = #tpu.dot_dimension_numbers<[1], [0], [0], [1], [0, 0, 1, 1], [], []>} : vector<16x128xbf16>, vector<128x32xbf16>, vector<16x32xf32> -> vector<16x32xf32>
    %c0_112 = arith.constant 0 : index
    %c0_113 = arith.constant 0 : index
    %509 = vector.load %arg22[%c0_112, %c0_113] : memref<1x32xf32, #tpu.memory_space<vmem>>, vector<1x32xf32>
    %510 = vector.broadcast %509 : vector<1x32xf32> to vector<16x32xf32>
    %511 = arith.addf %508, %510 : vector<16x32xf32>
    %cst_114 = arith.constant 0.000000e+00 : f32
    %512 = vector.broadcast %cst_114 : f32 to vector<16x32xf32>
    %513 = arith.maximumf %511, %512 : vector<16x32xf32>
    %c0_115 = arith.constant 0 : index
    %c0_116 = arith.constant 0 : index
    %514 = vector.load %arg23[%c0_115, %c0_116] : memref<32x128xf32, #tpu.memory_space<vmem>>, vector<32x128xf32>
    %515 = arith.truncf %513 : vector<16x32xf32> to vector<16x32xbf16>
    %516 = arith.truncf %514 : vector<32x128xf32> to vector<32x128xbf16>
    %cst_117 = arith.constant dense<0.000000e+00> : vector<16x128xf32>
    %517 = tpu.matmul %515, %516, %cst_117 {dimension_numbers = #tpu.dot_dimension_numbers<[1], [0], [0], [1], [0, 0, 1, 1], [], []>} : vector<16x32xbf16>, vector<32x128xbf16>, vector<16x128xf32> -> vector<16x128xf32>
    %c0_118 = arith.constant 0 : index
    %c0_119 = arith.constant 0 : index
    %518 = vector.load %arg24[%c0_118, %c0_119] : memref<1x128xf32, #tpu.memory_space<vmem>>, vector<1x128xf32>
    %519 = vector.broadcast %518 : vector<1x128xf32> to vector<16x128xf32>
    %520 = arith.addf %517, %519 : vector<16x128xf32>
    %c0_120 = arith.constant 0 : index
    %c0_121 = arith.constant 0 : index
    %521 = vector.load %arg5[%c0_120, %c0_121] : memref<16x1xf32, #tpu.memory_space<vmem>>, vector<16x1xf32>
    %522 = vector.broadcast %521 : vector<16x1xf32> to vector<16x128xf32>
    %523 = arith.mulf %520, %522 : vector<16x128xf32>
    %c0_122 = arith.constant 0 : index
    %c0_123 = arith.constant 0 : index
    %524 = vector.load %arg25[%c0_122, %c0_123] : memref<16x128xf32, #tpu.memory_space<vmem>>, vector<16x128xf32>
    tpu.vector_store %arg25[%c0_122, %c0_123], %523 {strides = array<i32>} : memref<16x128xf32, #tpu.memory_space<vmem>>, vector<16x128xf32>,
    return
  }
}

</mosaic_0001>

<llo_original>
// kernel: tpu_custom_call.1
$region0: #{tpu_custom_call.1}
  #allocation0 [shape = 'u32[]', space=smem, size = 0x4, offset = 0x4, fixed_abs, tag = 'smem constant byte address 0x4 - core index']
  #allocation1 [shape = 'u32[144,128]{1,0:T(1,128)}', space=vmem, size = 0x12000, scoped, tag = 'internal scratch']
  %s0 = inlined_call_operand.vmem [shape: f32[16,16], index: 0, kind: input, shape index: {}]
  %s1 = inlined_call_operand.vmem [shape: f32[16,12], index: 1, kind: input, shape index: {}]
  %s2 = inlined_call_operand.vmem [shape: f32[16,24], index: 2, kind: input, shape index: {}]
  %s3 = inlined_call_operand.vmem [shape: f32[16,20], index: 3, kind: input, shape index: {}]
  %s4 = inlined_call_operand.vmem [shape: f32[2,1], index: 4, kind: input, shape index: {}]
  %s5 = inlined_call_operand.vmem [shape: f32[16,1], index: 5, kind: input, shape index: {}]
  %s6 = inlined_call_operand.vmem [shape: f32[16,32], index: 6, kind: input, shape index: {}]
  %s7 = inlined_call_operand.vmem [shape: f32[12,32], index: 7, kind: input, shape index: {}]
  %s8 = inlined_call_operand.vmem [shape: f32[24,32], index: 8, kind: input, shape index: {}]
  %s9 = inlined_call_operand.vmem [shape: f32[20,32], index: 9, kind: input, shape index: {}]
  %s10 = inlined_call_operand.vmem [shape: f32[1,32], index: 10, kind: input, shape index: {}]
  %s11 = inlined_call_operand.vmem [shape: f32[1,32], index: 11, kind: input, shape index: {}]
  %s12 = inlined_call_operand.vmem [shape: f32[1,32], index: 12, kind: input, shape index: {}]
  %s13 = inlined_call_operand.vmem [shape: f32[1,32], index: 13, kind: input, shape index: {}]
  %s14 = inlined_call_operand.vmem [shape: f32[128,32], index: 14, kind: input, shape index: {}]
  %s15 = inlined_call_operand.vmem [shape: f32[1,32], index: 15, kind: input, shape index: {}]
  %s16 = inlined_call_operand.vmem [shape: f32[32,128], index: 16, kind: input, shape index: {}]
  %s17 = inlined_call_operand.vmem [shape: f32[1,128], index: 17, kind: input, shape index: {}]
  %s18 = inlined_call_operand.hbm [shape: f32[128,512], index: 18, kind: input, shape index: {}]
  %s19 = inlined_call_operand.vmem [shape: f32[1,512], index: 19, kind: input, shape index: {}]
  %s20 = inlined_call_operand.hbm [shape: f32[128,512], index: 20, kind: input, shape index: {}]
  %s21 = inlined_call_operand.vmem [shape: f32[128,32], index: 21, kind: input, shape index: {}]
  %s22 = inlined_call_operand.vmem [shape: f32[1,32], index: 22, kind: input, shape index: {}]
  %s23 = inlined_call_operand.vmem [shape: f32[32,128], index: 23, kind: input, shape index: {}]
  %s24 = inlined_call_operand.vmem [shape: f32[1,128], index: 24, kind: input, shape index: {}]
  %s25 = inlined_call_operand.hbm [shape: f32[16,128], index: 25, kind: output, shape index: {}]
  %s26 = sld [smem:[#allocation0]]
  $region118: #{tpu_custom_call.1} parent=0
    _
  %s28 = ssub.s32 1, %s26
  %s29 = scalar_select 0, %s28, %s26
  $region1: #{tpu_custom_call.1} parent=0
    #allocation2 [shape = 'u8[262144]{0}', space=vmem, size = 0x40000, scoped, tag = 'input window, operand 18, single buffered']
    #allocation3 [shape = 's32[1]{0}', space=sflag, size = 0x4, scoped, tag = 'scoped memory for tpu_custom_call.1']
    #allocation4 [shape = 's32[1]{0}', space=sflag, size = 0x4, scoped, tag = 'scoped memory for tpu_custom_call.1']
    #allocation5 [shape = 'u8[262144]{0}', space=vmem, size = 0x40000, scoped, tag = 'input window, operand 20, single buffered']
    #allocation6 [shape = 's32[1]{0}', space=sflag, size = 0x4, scoped, tag = 'scoped memory for tpu_custom_call.1']
    #allocation7 [shape = 'u8[8192]{0}', space=vmem, size = 0x2000, scoped, tag = 'output window, operand 0, single buffered']
    %30 = vsyncpa [#allocation3], 0
    %31 = vsyncpa [#allocation6], 0
    %32 = vsyncpa [#allocation4], 0
    // Predicated region
    $region2: #{tpu_custom_call.1} parent=1 // pred_check
      _
    $region3: #{tpu_custom_call.1} parent=1 // pred_check_branch
      %34 = sbr.rel (0) target = $region5
    $region4: #{tpu_custom_call.1} parent=1 // pred_region
      _
    $region5: #{tpu_custom_call.1} parent=1 // pred_fallthru
      _
    // Predicated region
    $region6: #{tpu_custom_call.1} parent=1 // pred_check
      _
    $region7: #{tpu_custom_call.1} parent=1 // pred_check_branch
      %36 = sbr.rel (0) target = $region9
    $region8: #{tpu_custom_call.1} parent=1 // pred_region
      _
    $region9: #{tpu_custom_call.1} parent=1 // pred_fallthru
      _
    // Predicated region
    $region10: #{tpu_custom_call.1} parent=1 // pred_check
      _
    $region11: #{tpu_custom_call.1} parent=1 // pred_check_branch
      %38 = sbr.rel (0) target = $region13
    $region12: #{tpu_custom_call.1} parent=1 // pred_region
      _
    $region13: #{tpu_custom_call.1} parent=1 // pred_fallthru
      _
    // Predicated region
    $region14: #{tpu_custom_call.1} parent=1 // pred_check
      _
    $region15: #{tpu_custom_call.1} parent=1 // pred_check_branch
      %40 = sbr.rel (0) target = $region17
    $region16: #{tpu_custom_call.1} parent=1 // pred_region
      _
    $region17: #{tpu_custom_call.1} parent=1 // pred_fallthru
      _
    // Predicated region
    $region18: #{tpu_custom_call.1} parent=1 // pred_check
      _
    $region19: #{tpu_custom_call.1} parent=1 // pred_check_branch
      %42 = sbr.rel (0) target = $region21
    $region20: #{tpu_custom_call.1} parent=1 // pred_region
      _
    $region21: #{tpu_custom_call.1} parent=1 // pred_fallthru
      _
    // Predicated region
    $region22: #{tpu_custom_call.1} parent=1 // pred_check
      _
    $region23: #{tpu_custom_call.1} parent=1 // pred_check_branch
      %44 = sbr.rel (0) target = $region25
    $region24: #{tpu_custom_call.1} parent=1 // pred_region
      _
    $region25: #{tpu_custom_call.1} parent=1 // pred_fallthru
      _
    // Predicated region
    $region26: #{tpu_custom_call.1} parent=1 // pred_check
      _
    $region27: #{tpu_custom_call.1} parent=1 // pred_check_branch
      %46 = sbr.rel (0) target = $region29
    $region28: #{tpu_custom_call.1} parent=1 // pred_region
      _
    $region29: #{tpu_custom_call.1} parent=1 // pred_fallthru
      _
    // Predicated region
    $region30: #{tpu_custom_call.1} parent=1 // pred_check
      _
    $region31: #{tpu_custom_call.1} parent=1 // pred_check_branch
      %48 = sbr.rel (0) target = $region33
    $region32: #{tpu_custom_call.1} parent=1 // pred_region
      _
    $region33: #{tpu_custom_call.1} parent=1 // pred_fallthru
      _
    // Predicated region
    $region34: #{tpu_custom_call.1} parent=1 // pred_check
      _
    $region35: #{tpu_custom_call.1} parent=1 // pred_check_branch
      %50 = sbr.rel (0) target = $region37
    $region36: #{tpu_custom_call.1} parent=1 // pred_region
      _
    $region37: #{tpu_custom_call.1} parent=1 // pred_fallthru
      _
    // Predicated region
    $region38: #{tpu_custom_call.1} parent=1 // pred_check
      _
    $region39: #{tpu_custom_call.1} parent=1 // pred_check_branch
      %52 = sbr.rel (0) target = $region41
    $region40: #{tpu_custom_call.1} parent=1 // pred_region
      _
    $region41: #{tpu_custom_call.1} parent=1 // pred_fallthru
      _
    // Predicated region
    $region42: #{tpu_custom_call.1} parent=1 // pred_check
      _
    $region43: #{tpu_custom_call.1} parent=1 // pred_check_branch
      %54 = sbr.rel (0) target = $region45
    $region44: #{tpu_custom_call.1} parent=1 // pred_region
      _
    $region45: #{tpu_custom_call.1} parent=1 // pred_fallthru
      _
    // Predicated region
    $region46: #{tpu_custom_call.1} parent=1 // pred_check
      _
    $region47: #{tpu_custom_call.1} parent=1 // pred_check_branch
      %56 = sbr.rel (0) target = $region49
    $region48: #{tpu_custom_call.1} parent=1 // pred_region
      _
    $region49: #{tpu_custom_call.1} parent=1 // pred_fallthru
      _
    // Predicated region
    $region50: #{tpu_custom_call.1} parent=1 // pred_check
      _
    $region51: #{tpu_custom_call.1} parent=1 // pred_check_branch
      %58 = sbr.rel (0) target = $region53
    $region52: #{tpu_custom_call.1} parent=1 // pred_region
      _
    $region53: #{tpu_custom_call.1} parent=1 // pred_fallthru
      _
    // Predicated region
    $region54: #{tpu_custom_call.1} parent=1 // pred_check
      _
    $region55: #{tpu_custom_call.1} parent=1 // pred_check_branch
      %60 = sbr.rel (0) target = $region57
    $region56: #{tpu_custom_call.1} parent=1 // pred_region
      _
    $region57: #{tpu_custom_call.1} parent=1 // pred_fallthru
      _
    // Predicated region
    $region58: #{tpu_custom_call.1} parent=1 // pred_check
      _
    $region59: #{tpu_custom_call.1} parent=1 // pred_check_branch
      %62 = sbr.rel (0) target = $region61
    $region60: #{tpu_custom_call.1} parent=1 // pred_region
      _
    $region61: #{tpu_custom_call.1} parent=1 // pred_fallthru
      _
    // Predicated region
    $region62: #{tpu_custom_call.1} parent=1 // pred_check
      _
    $region63: #{tpu_custom_call.1} parent=1 // pred_check_branch
      %64 = sbr.rel (0) target = $region65
    $region64: #{tpu_custom_call.1} parent=1 // pred_region
      _
    $region65: #{tpu_custom_call.1} parent=1 // pred_fallthru
      _
    // Predicated region
    $region66: #{tpu_custom_call.1} parent=1 // pred_check
      _
    $region67: #{tpu_custom_call.1} parent=1 // pred_check_branch
      %66 = sbr.rel (0) target = $region69
    $region68: #{tpu_custom_call.1} parent=1 // pred_region
      _
    $region69: #{tpu_custom_call.1} parent=1 // pred_fallthru
      _
    // Predicated region
    $region70: #{tpu_custom_call.1} parent=1 // pred_check
      _
    $region71: #{tpu_custom_call.1} parent=1 // pred_check_branch
      %68 = sbr.rel (0) target = $region73
    $region72: #{tpu_custom_call.1} parent=1 // pred_region
      _
    $region73: #{tpu_custom_call.1} parent=1 // pred_fallthru
      _
    // Predicated region
    $region74: #{tpu_custom_call.1} parent=1 // pred_check
      _
    $region75: #{tpu_custom_call.1} parent=1 // pred_check_branch
      %70 = sbr.rel (0) target = $region77
    $region76: #{tpu_custom_call.1} parent=1 // pred_region
      %s72 = ssub.s32 8192, 8192
      %73 = vsyncadd [#allocation3], %s72
      %s74 = sshll.u32 [#allocation2], 4
      %s75 = int_to_ptr.vmem [resolvable:$true] %s74
      %80 = dma.hbm_to_vmem [thread:$0]  %s18, 8192, %s75, [#allocation3], 512, 512, 32
    $region77: #{tpu_custom_call.1} parent=1 // pred_fallthru
      _
    // Predicated region
    $region78: #{tpu_custom_call.1} parent=1 // pred_check
      _
    $region79: #{tpu_custom_call.1} parent=1 // pred_check_branch
      %82 = sbr.rel (0) target = $region81
    $region80: #{tpu_custom_call.1} parent=1 // pred_region
      _
    $region81: #{tpu_custom_call.1} parent=1 // pred_fallthru
      _
    // Predicated region
    $region82: #{tpu_custom_call.1} parent=1 // pred_check
      _
    $region83: #{tpu_custom_call.1} parent=1 // pred_check_branch
      %84 = sbr.rel (0) target = $region85
    $region84: #{tpu_custom_call.1} parent=1 // pred_region
      %s86 = ssub.s32 8192, 8192
      %87 = vsyncadd [#allocation6], %s86
      %s88 = sshll.u32 [#allocation5], 4
      %s89 = int_to_ptr.vmem [resolvable:$true] %s88
      %94 = dma.hbm_to_vmem [thread:$0]  %s20, 8192, %s89, [#allocation6], 512, 512, 32
    $region85: #{tpu_custom_call.1} parent=1 // pred_fallthru
      _
    // Predicated region
    $region86: #{tpu_custom_call.1} parent=1 // pred_check
      _
    $region87: #{tpu_custom_call.1} parent=1 // pred_check_branch
      %96 = sbr.rel (0) target = $region89
    $region88: #{tpu_custom_call.1} parent=1 // pred_region
      _
    $region89: #{tpu_custom_call.1} parent=1 // pred_fallthru
      _
    // Predicated region
    $region90: #{tpu_custom_call.1} parent=1 // pred_check
      _
    $region91: #{tpu_custom_call.1} parent=1 // pred_check_branch
      %98 = sbr.rel (0) target = $region93
    $region92: #{tpu_custom_call.1} parent=1 // pred_region
      _
    $region93: #{tpu_custom_call.1} parent=1 // pred_fallthru
      _
    // Predicated region
    $region94: #{tpu_custom_call.1} parent=1 // pred_check
      _
    $region95: #{tpu_custom_call.1} parent=1 // pred_check_branch
      %100 = sbr.rel (0) target = $region97
    $region96: #{tpu_custom_call.1} parent=1 // pred_region
      _
    $region97: #{tpu_custom_call.1} parent=1 // pred_fallthru
      _
    // Predicated region
    $region98: #{tpu_custom_call.1} parent=1 // pred_check
      _
    $region99: #{tpu_custom_call.1} parent=1 // pred_check_branch
      %102 = sbr.rel (0) target = $region101
    $region100: #{tpu_custom_call.1} parent=1 // pred_region
      _
    $region101: #{tpu_custom_call.1} parent=1 // pred_fallthru
      _
    // Predicated region
    $region102: #{tpu_custom_call.1} parent=1 // pred_check
      _
    $region103: #{tpu_custom_call.1} parent=1 // pred_check_branch
      %104 = sbr.rel (0) target = $region105
    $region104: #{tpu_custom_call.1} parent=1 // pred_region
      %105 = dma.done [#allocation3], 8192
    $region105: #{tpu_custom_call.1} parent=1 // pred_fallthru
      _
    // Predicated region
    $region106: #{tpu_custom_call.1} parent=1 // pred_check
      _
    $region107: #{tpu_custom_call.1} parent=1 // pred_check_branch
      %107 = sbr.rel (0) target = $region109
    $region108: #{tpu_custom_call.1} parent=1 // pred_region
      %108 = dma.done [#allocation6], 8192
    $region109: #{tpu_custom_call.1} parent=1 // pred_fallthru
      _
    %v110 = vld [vmem:[%s0] sm:$0xff]
    %v111 = vld [vmem:[%s0 + $0x8] sm:$0xff]
    %v112 = vld [vmem:[%s6] sm:$0xff]
    %v113 = vld [vmem:[%s6 + $0x8] sm:$0xff]
    %v114 = vpack.c.bf16 %v111, %v110
    %v115 = vpack.c.bf16 %v113, %v112
    %v116 = vld [vmem:[%s10] sm:$0x1]
    %v118 = vlaneseq
    %v119 = vshrl.u32 %v118, 7
    %v120 = vsub.s32 0, %v119
    %v121 = vrot.slane %v116, %v120
    %vm123 = vcmask 130048
    %v125 = vsel %vm123, %v114, 0
    %127 = vmatprep.subr.bf16.mxu0 0
    %128 = vmatpush1.bf16.msra.mxu0 %v115
    %129 = vmatprep.subr.bf16.mxu0 0
    %130 = vmatpush1.bf16.msra.mxu0 0
    %131 = vmatprep.subr.bf16.mxu0 0
    %132 = vmatpush1.bf16.msra.mxu0 0
    %133 = vmatprep.subr.bf16.mxu0 0
    %134 = vmatpush1.bf16.msra.mxu0 0
    %135 = vmatprep.subr.bf16.mxu0 0
    %136 = vmatpush1.bf16.msra.mxu0 0
    %137 = vmatprep.subr.bf16.mxu0 0
    %138 = vmatpush1.bf16.msra.mxu0 0
    %139 = vmatprep.subr.bf16.mxu0 0
    %140 = vmatpush1.bf16.msra.mxu0 0
    %141 = vmatprep.subr.bf16.mxu0 0
    %142 = vmatpush1.bf16.msra.mxu0 0
    %143 = vmatprep.subr.bf16.mxu0 0
    %144 = vmatpush1.bf16.msra.mxu0 0
    %145 = vmatprep.subr.bf16.mxu0 0
    %146 = vmatpush1.bf16.msra.mxu0 0
    %147 = vmatprep.subr.bf16.mxu0 0
    %148 = vmatpush1.bf16.msra.mxu0 0
    %149 = vmatprep.subr.bf16.mxu0 0
    %150 = vmatpush1.bf16.msra.mxu0 0
    %151 = vmatprep.subr.bf16.mxu0 0
    %152 = vmatpush1.bf16.msra.mxu0 0
    %153 = vmatprep.subr.bf16.mxu0 0
    %154 = vmatpush1.bf16.msra.mxu0 0
    %155 = vmatprep.subr.bf16.mxu0 0
    %156 = vmatpush1.bf16.msra.mxu0 0
    %157 = vmatprep.subr.bf16.mxu0 0
    %158 = vmatpush1.bf16.msra.mxu0 0
    %159 = vmatprep.mubr.bf16.mxu0 0
    %160 = vmatmul.mubr.bf16.gmra.mrb[0].mxu0 %v125
    %v161 = vpop.f32.mrb[0].mxu0
    %v162 = vadd.f32 %v121, %v161
    %v163 = vpop.f32.mrb[0].mxu0
    %v164 = vpop.f32.mrb[0].mxu0
    %v165 = vadd.f32 %v121, %v164
    %v166 = vpop.f32.mrb[0].mxu0
    %167 = vdwg.mxu0
    %v168 = vmax.f32 %v162, 0.0
    %v169 = vmax.f32 %v165, 0.0
    %v170 = vld [vmem:[#allocation2] sm:$0xff]
    %v171 = vld [vmem:[#allocation2 + $0x8] sm:$0xff]
    %v172 = vld [vmem:[#allocation2 + $0x10] sm:$0xff]
    %v173 = vld [vmem:[#allocation2 + $0x18] sm:$0xff]
    %v174 = vld [vmem:[#allocation2 + $0x20] sm:$0xff]
    %v175 = vld [vmem:[#allocation2 + $0x28] sm:$0xff]
    %v176 = vld [vmem:[#allocation2 + $0x30] sm:$0xff]
    %v177 = vld [vmem:[#allocation2 + $0x38] sm:$0xff]
    %v178 = vld [vmem:[#allocation2 + $0x40] sm:$0xff]
    %v179 = vld [vmem:[#allocation2 + $0x48] sm:$0xff]
    %v180 = vld [vmem:[#allocation2 + $0x50] sm:$0xff]
    %v181 = vld [vmem:[#allocation2 + $0x58] sm:$0xff]
    %v182 = vld [vmem:[#allocation2 + $0x60] sm:$0xff]
    %v183 = vld [vmem:[#allocation2 + $0x68] sm:$0xff]
    %v184 = vld [vmem:[#allocation2 + $0x70] sm:$0xff]
    %v185 = vld [vmem:[#allocation2 + $0x78] sm:$0xff]
    %v186 = vpack.c.bf16 %v169, %v168
    %v187 = vpack.c.bf16 %v174, %v170
    %v188 = vpack.c.bf16 %v175, %v171
    %v189 = vpack.c.bf16 %v176, %v172
    %v190 = vpack.c.bf16 %v177, %v173
    %v191 = vpack.c.bf16 %v182, %v178
    %v192 = vpack.c.bf16 %v183, %v179
    %v193 = vpack.c.bf16 %v184, %v180
    %v194 = vpack.c.bf16 %v185, %v181
    %v195 = vld [vmem:[%s14] sm:$0xff]
    %v196 = vld [vmem:[%s14 + $0x8] sm:$0xff]
    %v197 = vld [vmem:[%s14 + $0x10] sm:$0xff]
    %v198 = vld [vmem:[%s14 + $0x18] sm:$0xff]
    %v199 = vpack.c.bf16 %v196, %v195
    %v200 = vpack.c.bf16 %v198, %v197
    %v201 = vld [vmem:[%s1] sm:$0xff]
    %v202 = vld [vmem:[%s1 + $0x8] sm:$0xff]
    %v203 = vld [vmem:[%s7] sm:$0xff]
    %v204 = vld [vmem:[%s7 + $0x8] sm:$0xf]
    %v205 = vpack.c.bf16 %v202, %v201
    %v206 = vpack.c.bf16 %v204, %v203
    %v207 = vld [vmem:[%s11] sm:$0x1]
    %v209 = vlaneseq
    %v210 = vshrl.u32 %v209, 7
    %v211 = vsub.s32 0, %v210
    %v212 = vrot.slane %v207, %v211
    %vm214 = vcmask 97280
    %v216 = vsel %vm214, %v205, 0
    %vm218 = vcmask 1045504
    %v220 = vsel %vm218, %v206, 0
    %222 = vmatprep.subr.bf16.mxu0 0
    %223 = vmatpush1.bf16.msra.mxu0 %v220
    %224 = vmatprep.subr.bf16.mxu0 0
    %225 = vmatpush1.bf16.msra.mxu0 0
    %226 = vmatprep.subr.bf16.mxu0 0
    %227 = vmatpush1.bf16.msra.mxu0 0
    %228 = vmatprep.subr.bf16.mxu0 0
    %229 = vmatpush1.bf16.msra.mxu0 0
    %230 = vmatprep.subr.bf16.mxu0 0
    %231 = vmatpush1.bf16.msra.mxu0 0
    %232 = vmatprep.subr.bf16.mxu0 0
    %233 = vmatpush1.bf16.msra.mxu0 0
    %234 = vmatprep.subr.bf16.mxu0 0
    %235 = vmatpush1.bf16.msra.mxu0 0
    %236 = vmatprep.subr.bf16.mxu0 0
    %237 = vmatpush1.bf16.msra.mxu0 0
    %238 = vmatprep.subr.bf16.mxu0 0
    %239 = vmatpush1.bf16.msra.mxu0 0
    %240 = vmatprep.subr.bf16.mxu0 0
    %241 = vmatpush1.bf16.msra.mxu0 0
    %242 = vmatprep.subr.bf16.mxu0 0
    %243 = vmatpush1.bf16.msra.mxu0 0
    %244 = vmatprep.subr.bf16.mxu0 0
    %245 = vmatpush1.bf16.msra.mxu0 0
    %246 = vmatprep.subr.bf16.mxu0 0
    %247 = vmatpush1.bf16.msra.mxu0 0
    %248 = vmatprep.subr.bf16.mxu0 0
    %249 = vmatpush1.bf16.msra.mxu0 0
    %250 = vmatprep.subr.bf16.mxu0 0
    %251 = vmatpush1.bf16.msra.mxu0 0
    %252 = vmatprep.subr.bf16.mxu0 0
    %253 = vmatpush1.bf16.msra.mxu0 0
    %254 = vmatprep.mubr.bf16.mxu0 0
    %255 = vmatmul.mubr.bf16.gmra.mrb[0].mxu0 %v216
    %v256 = vpop.f32.mrb[0].mxu0
    %v257 = vadd.f32 %v212, %v256
    %v258 = vpop.f32.mrb[0].mxu0
    %v259 = vpop.f32.mrb[0].mxu0
    %v260 = vadd.f32 %v212, %v259
    %v261 = vpop.f32.mrb[0].mxu0
    %262 = vdwg.mxu0
    %v263 = vmax.f32 %v257, 0.0
    %v264 = vmax.f32 %v260, 0.0
    %v265 = vld [vmem:[#allocation2 + $0x80] sm:$0xff]
    %v266 = vld [vmem:[#allocation2 + $0x88] sm:$0xff]
    %v267 = vld [vmem:[#allocation2 + $0x90] sm:$0xff]
    %v268 = vld [vmem:[#allocation2 + $0x98] sm:$0xff]
    %v269 = vld [vmem:[#allocation2 + $0xa0] sm:$0xff]
    %v270 = vld [vmem:[#allocation2 + $0xa8] sm:$0xff]
    %v271 = vld [vmem:[#allocation2 + $0xb0] sm:$0xff]
    %v272 = vld [vmem:[#allocation2 + $0xb8] sm:$0xff]
    %v273 = vld [vmem:[#allocation2 + $0xc0] sm:$0xff]
    %v274 = vld [vmem:[#allocation2 + $0xc8] sm:$0xff]
    %v275 = vld [vmem:[#allocation2 + $0xd0] sm:$0xff]
    %v276 = vld [vmem:[#allocation2 + $0xd8] sm:$0xff]
    %v277 = vld [vmem:[#allocation2 + $0xe0] sm:$0xff]
    %v278 = vld [vmem:[#allocation2 + $0xe8] sm:$0xff]
    %v279 = vld [vmem:[#allocation2 + $0xf0] sm:$0xff]
    %v280 = vld [vmem:[#allocation2 + $0xf8] sm:$0xff]
    %v281 = vpack.c.bf16 %v264, %v263
    %v282 = vpack.c.bf16 %v269, %v265
    %v283 = vpack.c.bf16 %v270, %v266
    %v284 = vpack.c.bf16 %v271, %v267
    %v285 = vpack.c.bf16 %v272, %v268
    %v286 = vpack.c.bf16 %v277, %v273
    %v287 = vpack.c.bf16 %v278, %v274
    %v288 = vpack.c.bf16 %v279, %v275
    %v289 = vpack.c.bf16 %v280, %v276
    %vm290 = vcmask 261120
    %v292 = vsel %vm290, %v281, 0
    %294 = vmatprep.subr.bf16.mxu0 %v283
    %295 = vmatpush1.bf16.msra.mxu0 %v282
    %296 = vmatprep.subr.bf16.mxu0 %v287
    %297 = vmatpush1.bf16.msra.mxu0 %v286
    %298 = vmatprep.subr.bf16.mxu0 0
    %299 = vmatpush1.bf16.msra.mxu0 0
    %300 = vmatprep.subr.bf16.mxu0 0
    %301 = vmatpush1.bf16.msra.mxu0 0
    %302 = vmatprep.subr.bf16.mxu0 0
    %303 = vmatpush1.bf16.msra.mxu0 0
    %304 = vmatprep.subr.bf16.mxu0 0
    %305 = vmatpush1.bf16.msra.mxu0 0
    %306 = vmatprep.subr.bf16.mxu0 0
    %307 = vmatpush1.bf16.msra.mxu0 0
    %308 = vmatprep.subr.bf16.mxu0 0
    %309 = vmatpush1.bf16.msra.mxu0 0
    %310 = vmatprep.subr.bf16.mxu0 0
    %311 = vmatpush1.bf16.msra.mxu0 0
    %312 = vmatprep.subr.bf16.mxu0 0
    %313 = vmatpush1.bf16.msra.mxu0 0
    %314 = vmatprep.subr.bf16.mxu0 0
    %315 = vmatpush1.bf16.msra.mxu0 0
    %316 = vmatprep.subr.bf16.mxu0 0
    %317 = vmatpush1.bf16.msra.mxu0 0
    %318 = vmatprep.subr.bf16.mxu0 0
    %319 = vmatpush1.bf16.msra.mxu0 0
    %320 = vmatprep.subr.bf16.mxu0 0
    %321 = vmatpush1.bf16.msra.mxu0 0
    %322 = vmatprep.subr.bf16.mxu0 0
    %323 = vmatpush1.bf16.msra.mxu0 0
    %324 = vmatprep.subr.bf16.mxu0 0
    %325 = vmatpush1.bf16.msra.mxu0 0
    %326 = vmatprep.mubr.bf16.mxu0 0
    %327 = vmatmul.mubr.bf16.gmra.mrb[0].mxu0 %v292
    %v328 = vpop.f32.mrb[0].mxu0
    %v329 = vadd.f32 0.0, %v328
    %v330 = vpop.f32.mrb[0].mxu0
    %v331 = vadd.f32 0.0, %v330
    %v332 = vpop.f32.mrb[0].mxu0
    %v333 = vadd.f32 0.0, %v332
    %v334 = vpop.f32.mrb[0].mxu0
    %v335 = vadd.f32 0.0, %v334
    %336 = vdwg.mxu0
    %337 = vmatprep.subr.bf16.mxu0 %v285
    %338 = vmatpush1.bf16.msra.mxu0 %v284
    %339 = vmatprep.subr.bf16.mxu0 %v289
    %340 = vmatpush1.bf16.msra.mxu0 %v288
    %341 = vmatprep.subr.bf16.mxu0 0
    %342 = vmatpush1.bf16.msra.mxu0 0
    %343 = vmatprep.subr.bf16.mxu0 0
    %344 = vmatpush1.bf16.msra.mxu0 0
    %345 = vmatprep.subr.bf16.mxu0 0
    %346 = vmatpush1.bf16.msra.mxu0 0
    %347 = vmatprep.subr.bf16.mxu0 0
    %348 = vmatpush1.bf16.msra.mxu0 0
    %349 = vmatprep.subr.bf16.mxu0 0
    %350 = vmatpush1.bf16.msra.mxu0 0
    %351 = vmatprep.subr.bf16.mxu0 0
    %352 = vmatpush1.bf16.msra.mxu0 0
    %353 = vmatprep.subr.bf16.mxu0 0
    %354 = vmatpush1.bf16.msra.mxu0 0
    %355 = vmatprep.subr.bf16.mxu0 0
    %356 = vmatpush1.bf16.msra.mxu0 0
    %357 = vmatprep.subr.bf16.mxu0 0
    %358 = vmatpush1.bf16.msra.mxu0 0
    %359 = vmatprep.subr.bf16.mxu0 0
    %360 = vmatpush1.bf16.msra.mxu0 0
    %361 = vmatprep.subr.bf16.mxu0 0
    %362 = vmatpush1.bf16.msra.mxu0 0
    %363 = vmatprep.subr.bf16.mxu0 0
    %364 = vmatpush1.bf16.msra.mxu0 0
    %365 = vmatprep.subr.bf16.mxu0 0
    %366 = vmatpush1.bf16.msra.mxu0 0
    %367 = vmatprep.subr.bf16.mxu0 0
    %368 = vmatpush1.bf16.msra.mxu0 0
    %369 = vmatprep.mubr.bf16.mxu0 0
    %370 = vmatmul.mubr.bf16.gmra.mrb[0].mxu0 %v292
    %v371 = vpop.f32.mrb[0].mxu0
    %v372 = vadd.f32 0.0, %v371
    %v373 = vpop.f32.mrb[0].mxu0
    %v374 = vadd.f32 0.0, %v373
    %v375 = vpop.f32.mrb[0].mxu0
    %v376 = vadd.f32 0.0, %v375
    %v377 = vpop.f32.mrb[0].mxu0
    %v378 = vadd.f32 0.0, %v377
    %379 = vdwg.mxu0
    %v380 = vld [vmem:[%s14 + $0x20] sm:$0xff]
    %v381 = vld [vmem:[%s14 + $0x28] sm:$0xff]
    %v382 = vld [vmem:[%s14 + $0x30] sm:$0xff]
    %v383 = vld [vmem:[%s14 + $0x38] sm:$0xff]
    %v384 = vpack.c.bf16 %v381, %v380
    %v385 = vpack.c.bf16 %v383, %v382
    %386 = vmatprep.subr.bf16.mxu0 0
    %387 = vmatpush1.bf16.msra.mxu0 %v384
    %388 = vmatprep.subr.bf16.mxu0 0
    %389 = vmatpush1.bf16.msra.mxu0 %v385
    %390 = vmatprep.subr.bf16.mxu0 0
    %391 = vmatpush1.bf16.msra.mxu0 0
    %392 = vmatprep.subr.bf16.mxu0 0
    %393 = vmatpush1.bf16.msra.mxu0 0
    %394 = vmatprep.subr.bf16.mxu0 0
    %395 = vmatpush1.bf16.msra.mxu0 0
    %396 = vmatprep.subr.bf16.mxu0 0
    %397 = vmatpush1.bf16.msra.mxu0 0
    %398 = vmatprep.subr.bf16.mxu0 0
    %399 = vmatpush1.bf16.msra.mxu0 0
    %400 = vmatprep.subr.bf16.mxu0 0
    %401 = vmatpush1.bf16.msra.mxu0 0
    %402 = vmatprep.subr.bf16.mxu0 0
    %403 = vmatpush1.bf16.msra.mxu0 0
    %404 = vmatprep.subr.bf16.mxu0 0
    %405 = vmatpush1.bf16.msra.mxu0 0
    %406 = vmatprep.subr.bf16.mxu0 0
    %407 = vmatpush1.bf16.msra.mxu0 0
    %408 = vmatprep.subr.bf16.mxu0 0
    %409 = vmatpush1.bf16.msra.mxu0 0
    %410 = vmatprep.subr.bf16.mxu0 0
    %411 = vmatpush1.bf16.msra.mxu0 0
    %412 = vmatprep.subr.bf16.mxu0 0
    %413 = vmatpush1.bf16.msra.mxu0 0
    %414 = vmatprep.subr.bf16.mxu0 0
    %415 = vmatpush1.bf16.msra.mxu0 0
    %416 = vmatprep.subr.bf16.mxu0 0
    %417 = vmatpush1.bf16.msra.mxu0 0
    %418 = vmatprep.mubr.bf16.mxu0 0
    %419 = vmatmul.mubr.bf16.gmra.mrb[0].mxu0 %v292
    %v420 = vpop.f32.mrb[0].mxu0
    %v421 = vadd.f32 0.0, %v420
    %v422 = vpop.f32.mrb[0].mxu0
    %v423 = vpop.f32.mrb[0].mxu0
    %v424 = vadd.f32 0.0, %v423
    %v425 = vpop.f32.mrb[0].mxu0
    %426 = vdwg.mxu0
    %v428 = vsel %vm290, %v186, 0
    %430 = vmatprep.subr.bf16.mxu0 %v188
    %431 = vmatpush1.bf16.msra.mxu0 %v187
    %432 = vmatprep.subr.bf16.mxu0 %v192
    %433 = vmatpush1.bf16.msra.mxu0 %v191
    %434 = vmatprep.subr.bf16.mxu0 0
    %435 = vmatpush1.bf16.msra.mxu0 0
    %436 = vmatprep.subr.bf16.mxu0 0
    %437 = vmatpush1.bf16.msra.mxu0 0
    %438 = vmatprep.subr.bf16.mxu0 0
    %439 = vmatpush1.bf16.msra.mxu0 0
    %440 = vmatprep.subr.bf16.mxu0 0
    %441 = vmatpush1.bf16.msra.mxu0 0
    %442 = vmatprep.subr.bf16.mxu0 0
    %443 = vmatpush1.bf16.msra.mxu0 0
    %444 = vmatprep.subr.bf16.mxu0 0
    %445 = vmatpush1.bf16.msra.mxu0 0
    %446 = vmatprep.subr.bf16.mxu0 0
    %447 = vmatpush1.bf16.msra.mxu0 0
    %448 = vmatprep.subr.bf16.mxu0 0
    %449 = vmatpush1.bf16.msra.mxu0 0
    %450 = vmatprep.subr.bf16.mxu0 0
    %451 = vmatpush1.bf16.msra.mxu0 0
    %452 = vmatprep.subr.bf16.mxu0 0
    %453 = vmatpush1.bf16.msra.mxu0 0
    %454 = vmatprep.subr.bf16.mxu0 0
    %455 = vmatpush1.bf16.msra.mxu0 0
    %456 = vmatprep.subr.bf16.mxu0 0
    %457 = vmatpush1.bf16.msra.mxu0 0
    %458 = vmatprep.subr.bf16.mxu0 0
    %459 = vmatpush1.bf16.msra.mxu0 0
    %460 = vmatprep.subr.bf16.mxu0 0
    %461 = vmatpush1.bf16.msra.mxu0 0
    %462 = vmatprep.mubr.bf16.mxu0 0
    %463 = vmatmul.mubr.bf16.gmra.mrb[0].mxu0 %v428
    %v464 = vpop.f32.mrb[0].mxu0
    %v465 = vadd.f32 %v329, %v464
    %v466 = vpop.f32.mrb[0].mxu0
    %v467 = vadd.f32 %v331, %v466
    %v468 = vpop.f32.mrb[0].mxu0
    %v469 = vadd.f32 %v333, %v468
    %v470 = vpop.f32.mrb[0].mxu0
    %v471 = vadd.f32 %v335, %v470
    %472 = vdwg.mxu0
    %473 = vmatprep.subr.bf16.mxu0 %v190
    %474 = vmatpush1.bf16.msra.mxu0 %v189
    %475 = vmatprep.subr.bf16.mxu0 %v194
    %476 = vmatpush1.bf16.msra.mxu0 %v193
    %477 = vmatprep.subr.bf16.mxu0 0
    %478 = vmatpush1.bf16.msra.mxu0 0
    %479 = vmatprep.subr.bf16.mxu0 0
    %480 = vmatpush1.bf16.msra.mxu0 0
    %481 = vmatprep.subr.bf16.mxu0 0
    %482 = vmatpush1.bf16.msra.mxu0 0
    %483 = vmatprep.subr.bf16.mxu0 0
    %484 = vmatpush1.bf16.msra.mxu0 0
    %485 = vmatprep.subr.bf16.mxu0 0
    %486 = vmatpush1.bf16.msra.mxu0 0
    %487 = vmatprep.subr.bf16.mxu0 0
    %488 = vmatpush1.bf16.msra.mxu0 0
    %489 = vmatprep.subr.bf16.mxu0 0
    %490 = vmatpush1.bf16.msra.mxu0 0
    %491 = vmatprep.subr.bf16.mxu0 0
    %492 = vmatpush1.bf16.msra.mxu0 0
    %493 = vmatprep.subr.bf16.mxu0 0
    %494 = vmatpush1.bf16.msra.mxu0 0
    %495 = vmatprep.subr.bf16.mxu0 0
    %496 = vmatpush1.bf16.msra.mxu0 0
    %497 = vmatprep.subr.bf16.mxu0 0
    %498 = vmatpush1.bf16.msra.mxu0 0
    %499 = vmatprep.subr.bf16.mxu0 0
    %500 = vmatpush1.bf16.msra.mxu0 0
    %501 = vmatprep.subr.bf16.mxu0 0
    %502 = vmatpush1.bf16.msra.mxu0 0
    %503 = vmatprep.subr.bf16.mxu0 0
    %504 = vmatpush1.bf16.msra.mxu0 0
    %505 = vmatprep.mubr.bf16.mxu0 0
    %506 = vmatmul.mubr.bf16.gmra.mrb[0].mxu0 %v428
    %v507 = vpop.f32.mrb[0].mxu0
    %v508 = vadd.f32 %v372, %v507
    %v509 = vpop.f32.mrb[0].mxu0
    %v510 = vadd.f32 %v374, %v509
    %v511 = vpop.f32.mrb[0].mxu0
    %v512 = vadd.f32 %v376, %v511
    %v513 = vpop.f32.mrb[0].mxu0
    %v514 = vadd.f32 %v378, %v513
    %515 = vdwg.mxu0
    %516 = vmatprep.subr.bf16.mxu0 0
    %517 = vmatpush1.bf16.msra.mxu0 %v199
    %518 = vmatprep.subr.bf16.mxu0 0
    %519 = vmatpush1.bf16.msra.mxu0 %v200
    %520 = vmatprep.subr.bf16.mxu0 0
    %521 = vmatpush1.bf16.msra.mxu0 0
    %522 = vmatprep.subr.bf16.mxu0 0
    %523 = vmatpush1.bf16.msra.mxu0 0
    %524 = vmatprep.subr.bf16.mxu0 0
    %525 = vmatpush1.bf16.msra.mxu0 0
    %526 = vmatprep.subr.bf16.mxu0 0
    %527 = vmatpush1.bf16.msra.mxu0 0
    %528 = vmatprep.subr.bf16.mxu0 0
    %529 = vmatpush1.bf16.msra.mxu0 0
    %530 = vmatprep.subr.bf16.mxu0 0
    %531 = vmatpush1.bf16.msra.mxu0 0
    %532 = vmatprep.subr.bf16.mxu0 0
    %533 = vmatpush1.bf16.msra.mxu0 0
    %534 = vmatprep.subr.bf16.mxu0 0
    %535 = vmatpush1.bf16.msra.mxu0 0
    %536 = vmatprep.subr.bf16.mxu0 0
    %537 = vmatpush1.bf16.msra.mxu0 0
    %538 = vmatprep.subr.bf16.mxu0 0
    %539 = vmatpush1.bf16.msra.mxu0 0
    %540 = vmatprep.subr.bf16.mxu0 0
    %541 = vmatpush1.bf16.msra.mxu0 0
    %542 = vmatprep.subr.bf16.mxu0 0
    %543 = vmatpush1.bf16.msra.mxu0 0
    %544 = vmatprep.subr.bf16.mxu0 0
    %545 = vmatpush1.bf16.msra.mxu0 0
    %546 = vmatprep.subr.bf16.mxu0 0
    %547 = vmatpush1.bf16.msra.mxu0 0
    %548 = vmatprep.mubr.bf16.mxu0 0
    %549 = vmatmul.mubr.bf16.gmra.mrb[0].mxu0 %v428
    %v550 = vpop.f32.mrb[0].mxu0
    %v551 = vadd.f32 %v421, %v550
    %v552 = vpop.f32.mrb[0].mxu0
    %v553 = vpop.f32.mrb[0].mxu0
    %v554 = vadd.f32 %v424, %v553
    %v555 = vpop.f32.mrb[0].mxu0
    %556 = vdwg.mxu0
    %v557 = vld [vmem:[%s2] sm:$0xff]
    %v558 = vld [vmem:[%s2 + $0x8] sm:$0xff]
    %v559 = vld [vmem:[%s8] sm:$0xff]
    %v560 = vld [vmem:[%s8 + $0x8] sm:$0xff]
    %v561 = vld [vmem:[%s8 + $0x10] sm:$0xff]
    %v562 = vpack.c.bf16 %v558, %v557
    %v563 = vpack.c.bf16 %v560, %v559
    %v564 = vpack.c.bf16 %v561, %v561
    %v565 = vld [vmem:[%s12] sm:$0x1]
    %v567 = vlaneseq
    %v568 = vshrl.u32 %v567, 7
    %v569 = vsub.s32 0, %v568
    %v570 = vrot.slane %v565, %v569
    %vm572 = vcmask 195584
    %v574 = vsel %vm572, %v562, 0
    %vm576 = vcmask 1043456
    %v578 = vsel %vm576, %v564, 0
    %580 = vmatprep.subr.bf16.mxu0 0
    %581 = vmatpush1.bf16.msra.mxu0 %v563
    %582 = vmatprep.subr.bf16.mxu0 0
    %583 = vmatpush1.bf16.msra.mxu0 %v578
    %584 = vmatprep.subr.bf16.mxu0 0
    %585 = vmatpush1.bf16.msra.mxu0 0
    %586 = vmatprep.subr.bf16.mxu0 0
    %587 = vmatpush1.bf16.msra.mxu0 0
    %588 = vmatprep.subr.bf16.mxu0 0
    %589 = vmatpush1.bf16.msra.mxu0 0
    %590 = vmatprep.subr.bf16.mxu0 0
    %591 = vmatpush1.bf16.msra.mxu0 0
    %592 = vmatprep.subr.bf16.mxu0 0
    %593 = vmatpush1.bf16.msra.mxu0 0
    %594 = vmatprep.subr.bf16.mxu0 0
    %595 = vmatpush1.bf16.msra.mxu0 0
    %596 = vmatprep.subr.bf16.mxu0 0
    %597 = vmatpush1.bf16.msra.mxu0 0
    %598 = vmatprep.subr.bf16.mxu0 0
    %599 = vmatpush1.bf16.msra.mxu0 0
    %600 = vmatprep.subr.bf16.mxu0 0
    %601 = vmatpush1.bf16.msra.mxu0 0
    %602 = vmatprep.subr.bf16.mxu0 0
    %603 = vmatpush1.bf16.msra.mxu0 0
    %604 = vmatprep.subr.bf16.mxu0 0
    %605 = vmatpush1.bf16.msra.mxu0 0
    %606 = vmatprep.subr.bf16.mxu0 0
    %607 = vmatpush1.bf16.msra.mxu0 0
    %608 = vmatprep.subr.bf16.mxu0 0
    %609 = vmatpush1.bf16.msra.mxu0 0
    %610 = vmatprep.subr.bf16.mxu0 0
    %611 = vmatpush1.bf16.msra.mxu0 0
    %612 = vmatprep.mubr.bf16.mxu0 0
    %613 = vmatmul.mubr.bf16.gmra.mrb[0].mxu0 %v574
    %v614 = vpop.f32.mrb[0].mxu0
    %v615 = vadd.f32 %v570, %v614
    %v616 = vpop.f32.mrb[0].mxu0
    %v617 = vpop.f32.mrb[0].mxu0
    %v618 = vadd.f32 %v570, %v617
    %v619 = vpop.f32.mrb[0].mxu0
    %620 = vdwg.mxu0
    %v621 = vmax.f32 %v615, 0.0
    %v622 = vmax.f32 %v618, 0.0
    %v623 = vld [vmem:[#allocation2 + $0x100] sm:$0xff]
    %v624 = vld [vmem:[#allocation2 + $0x108] sm:$0xff]
    %v625 = vld [vmem:[#allocation2 + $0x110] sm:$0xff]
    %v626 = vld [vmem:[#allocation2 + $0x118] sm:$0xff]
    %v627 = vld [vmem:[#allocation2 + $0x120] sm:$0xff]
    %v628 = vld [vmem:[#allocation2 + $0x128] sm:$0xff]
    %v629 = vld [vmem:[#allocation2 + $0x130] sm:$0xff]
    %v630 = vld [vmem:[#allocation2 + $0x138] sm:$0xff]
    %v631 = vld [vmem:[#allocation2 + $0x140] sm:$0xff]
    %v632 = vld [vmem:[#allocation2 + $0x148] sm:$0xff]
    %v633 = vld [vmem:[#allocation2 + $0x150] sm:$0xff]
    %v634 = vld [vmem:[#allocation2 + $0x158] sm:$0xff]
    %v635 = vld [vmem:[#allocation2 + $0x160] sm:$0xff]
    %v636 = vld [vmem:[#allocation2 + $0x168] sm:$0xff]
    %v637 = vld [vmem:[#allocation2 + $0x170] sm:$0xff]
    %v638 = vld [vmem:[#allocation2 + $0x178] sm:$0xff]
    %v639 = vpack.c.bf16 %v622, %v621
    %v640 = vpack.c.bf16 %v627, %v623
    %v641 = vpack.c.bf16 %v628, %v624
    %v642 = vpack.c.bf16 %v629, %v625
    %v643 = vpack.c.bf16 %v630, %v626
    %v644 = vpack.c.bf16 %v635, %v631
    %v645 = vpack.c.bf16 %v636, %v632
    %v646 = vpack.c.bf16 %v637, %v633
    %v647 = vpack.c.bf16 %v638, %v634
    %v649 = vsel %vm290, %v639, 0
    %651 = vmatprep.subr.bf16.mxu0 %v641
    %652 = vmatpush1.bf16.msra.mxu0 %v640
    %653 = vmatprep.subr.bf16.mxu0 %v645
    %654 = vmatpush1.bf16.msra.mxu0 %v644
    %655 = vmatprep.subr.bf16.mxu0 0
    %656 = vmatpush1.bf16.msra.mxu0 0
    %657 = vmatprep.subr.bf16.mxu0 0
    %658 = vmatpush1.bf16.msra.mxu0 0
    %659 = vmatprep.subr.bf16.mxu0 0
    %660 = vmatpush1.bf16.msra.mxu0 0
    %661 = vmatprep.subr.bf16.mxu0 0
    %662 = vmatpush1.bf16.msra.mxu0 0
    %663 = vmatprep.subr.bf16.mxu0 0
    %664 = vmatpush1.bf16.msra.mxu0 0
    %665 = vmatprep.subr.bf16.mxu0 0
    %666 = vmatpush1.bf16.msra.mxu0 0
    %667 = vmatprep.subr.bf16.mxu0 0
    %668 = vmatpush1.bf16.msra.mxu0 0
    %669 = vmatprep.subr.bf16.mxu0 0
    %670 = vmatpush1.bf16.msra.mxu0 0
    %671 = vmatprep.subr.bf16.mxu0 0
    %672 = vmatpush1.bf16.msra.mxu0 0
    %673 = vmatprep.subr.bf16.mxu0 0
    %674 = vmatpush1.bf16.msra.mxu0 0
    %675 = vmatprep.subr.bf16.mxu0 0
    %676 = vmatpush1.bf16.msra.mxu0 0
    %677 = vmatprep.subr.bf16.mxu0 0
    %678 = vmatpush1.bf16.msra.mxu0 0
    %679 = vmatprep.subr.bf16.mxu0 0
    %680 = vmatpush1.bf16.msra.mxu0 0
    %681 = vmatprep.subr.bf16.mxu0 0
    %682 = vmatpush1.bf16.msra.mxu0 0
    %683 = vmatprep.mubr.bf16.mxu0 0
    %684 = vmatmul.mubr.bf16.gmra.mrb[0].mxu0 %v649
    %v685 = vpop.f32.mrb[0].mxu0
    %v686 = vadd.f32 0.0, %v685
    %v687 = vpop.f32.mrb[0].mxu0
    %v688 = vadd.f32 0.0, %v687
    %v689 = vpop.f32.mrb[0].mxu0
    %v690 = vadd.f32 0.0, %v689
    %v691 = vpop.f32.mrb[0].mxu0
    %v692 = vadd.f32 0.0, %v691
    %693 = vdwg.mxu0
    %694 = vmatprep.subr.bf16.mxu0 %v643
    %695 = vmatpush1.bf16.msra.mxu0 %v642
    %696 = vmatprep.subr.bf16.mxu0 %v647
    %697 = vmatpush1.bf16.msra.mxu0 %v646
    %698 = vmatprep.subr.bf16.mxu0 0
    %699 = vmatpush1.bf16.msra.mxu0 0
    %700 = vmatprep.subr.bf16.mxu0 0
    %701 = vmatpush1.bf16.msra.mxu0 0
    %702 = vmatprep.subr.bf16.mxu0 0
    %703 = vmatpush1.bf16.msra.mxu0 0
    %704 = vmatprep.subr.bf16.mxu0 0
    %705 = vmatpush1.bf16.msra.mxu0 0
    %706 = vmatprep.subr.bf16.mxu0 0
    %707 = vmatpush1.bf16.msra.mxu0 0
    %708 = vmatprep.subr.bf16.mxu0 0
    %709 = vmatpush1.bf16.msra.mxu0 0
    %710 = vmatprep.subr.bf16.mxu0 0
    %711 = vmatpush1.bf16.msra.mxu0 0
    %712 = vmatprep.subr.bf16.mxu0 0
    %713 = vmatpush1.bf16.msra.mxu0 0
    %714 = vmatprep.subr.bf16.mxu0 0
    %715 = vmatpush1.bf16.msra.mxu0 0
    %716 = vmatprep.subr.bf16.mxu0 0
    %717 = vmatpush1.bf16.msra.mxu0 0
    %718 = vmatprep.subr.bf16.mxu0 0
    %719 = vmatpush1.bf16.msra.mxu0 0
    %720 = vmatprep.subr.bf16.mxu0 0
    %721 = vmatpush1.bf16.msra.mxu0 0
    %722 = vmatprep.subr.bf16.mxu0 0
    %723 = vmatpush1.bf16.msra.mxu0 0
    %724 = vmatprep.subr.bf16.mxu0 0
    %725 = vmatpush1.bf16.msra.mxu0 0
    %726 = vmatprep.mubr.bf16.mxu0 0
    %727 = vmatmul.mubr.bf16.gmra.mrb[0].mxu0 %v649
    %v728 = vpop.f32.mrb[0].mxu0
    %v729 = vadd.f32 0.0, %v728
    %v730 = vpop.f32.mrb[0].mxu0
    %v731 = vadd.f32 0.0, %v730
    %v732 = vpop.f32.mrb[0].mxu0
    %v733 = vadd.f32 0.0, %v732
    %v734 = vpop.f32.mrb[0].mxu0
    %v735 = vadd.f32 0.0, %v734
    %736 = vdwg.mxu0
    %v737 = vld [vmem:[%s14 + $0x40] sm:$0xff]
    %v738 = vld [vmem:[%s14 + $0x48] sm:$0xff]
    %v739 = vld [vmem:[%s14 + $0x50] sm:$0xff]
    %v740 = vld [vmem:[%s14 + $0x58] sm:$0xff]
    %v741 = vpack.c.bf16 %v738, %v737
    %v742 = vpack.c.bf16 %v740, %v739
    %743 = vmatprep.subr.bf16.mxu0 0
    %744 = vmatpush1.bf16.msra.mxu0 %v741
    %745 = vmatprep.subr.bf16.mxu0 0
    %746 = vmatpush1.bf16.msra.mxu0 %v742
    %747 = vmatprep.subr.bf16.mxu0 0
    %748 = vmatpush1.bf16.msra.mxu0 0
    %749 = vmatprep.subr.bf16.mxu0 0
    %750 = vmatpush1.bf16.msra.mxu0 0
    %751 = vmatprep.subr.bf16.mxu0 0
    %752 = vmatpush1.bf16.msra.mxu0 0
    %753 = vmatprep.subr.bf16.mxu0 0
    %754 = vmatpush1.bf16.msra.mxu0 0
    %755 = vmatprep.subr.bf16.mxu0 0
    %756 = vmatpush1.bf16.msra.mxu0 0
    %757 = vmatprep.subr.bf16.mxu0 0
    %758 = vmatpush1.bf16.msra.mxu0 0
    %759 = vmatprep.subr.bf16.mxu0 0
    %760 = vmatpush1.bf16.msra.mxu0 0
    %761 = vmatprep.subr.bf16.mxu0 0
    %762 = vmatpush1.bf16.msra.mxu0 0
    %763 = vmatprep.subr.bf16.mxu0 0
    %764 = vmatpush1.bf16.msra.mxu0 0
    %765 = vmatprep.subr.bf16.mxu0 0
    %766 = vmatpush1.bf16.msra.mxu0 0
    %767 = vmatprep.subr.bf16.mxu0 0
    %768 = vmatpush1.bf16.msra.mxu0 0
    %769 = vmatprep.subr.bf16.mxu0 0
    %770 = vmatpush1.bf16.msra.mxu0 0
    %771 = vmatprep.subr.bf16.mxu0 0
    %772 = vmatpush1.bf16.msra.mxu0 0
    %773 = vmatprep.subr.bf16.mxu0 0
    %774 = vmatpush1.bf16.msra.mxu0 0
    %775 = vmatprep.mubr.bf16.mxu0 0
    %776 = vmatmul.mubr.bf16.gmra.mrb[0].mxu0 %v649
    %v777 = vpop.f32.mrb[0].mxu0
    %v778 = vadd.f32 0.0, %v777
    %v779 = vpop.f32.mrb[0].mxu0
    %v780 = vpop.f32.mrb[0].mxu0
    %v781 = vadd.f32 0.0, %v780
    %v782 = vpop.f32.mrb[0].mxu0
    %783 = vdwg.mxu0
    %v784 = vadd.f32 %v465, %v686
    %v785 = vadd.f32 %v467, %v688
    %v786 = vadd.f32 %v508, %v729
    %v787 = vadd.f32 %v510, %v731
    %v788 = vadd.f32 %v469, %v690
    %v789 = vadd.f32 %v471, %v692
    %v790 = vadd.f32 %v512, %v733
    %v791 = vadd.f32 %v514, %v735
    %v792 = vadd.f32 %v551, %v778
    %v793 = vadd.f32 %v554, %v781
    %v794 = vld [vmem:[%s3] sm:$0xff]
    %v795 = vld [vmem:[%s3 + $0x8] sm:$0xff]
    %v796 = vld [vmem:[%s9] sm:$0xff]
    %v797 = vld [vmem:[%s9 + $0x8] sm:$0xff]
    %v798 = vld [vmem:[%s9 + $0x10] sm:$0xf]
    %v799 = vpack.c.bf16 %v795, %v794
    %v800 = vpack.c.bf16 %v797, %v796
    %v801 = vpack.c.bf16 %v798, %v798
    %v802 = vld [vmem:[%s13] sm:$0x1]
    %v804 = vlaneseq
    %v805 = vshrl.u32 %v804, 7
    %v806 = vsub.s32 0, %v805
    %v807 = vrot.slane %v802, %v806
    %vm809 = vcmask 162816
    %v811 = vsel %vm809, %v799, 0
    %vm813 = vcmask 1041408
    %v815 = vsel %vm813, %v801, 0
    %817 = vmatprep.subr.bf16.mxu0 0
    %818 = vmatpush1.bf16.msra.mxu0 %v800
    %819 = vmatprep.subr.bf16.mxu0 0
    %820 = vmatpush1.bf16.msra.mxu0 %v815
    %821 = vmatprep.subr.bf16.mxu0 0
    %822 = vmatpush1.bf16.msra.mxu0 0
    %823 = vmatprep.subr.bf16.mxu0 0
    %824 = vmatpush1.bf16.msra.mxu0 0
    %825 = vmatprep.subr.bf16.mxu0 0
    %826 = vmatpush1.bf16.msra.mxu0 0
    %827 = vmatprep.subr.bf16.mxu0 0
    %828 = vmatpush1.bf16.msra.mxu0 0
    %829 = vmatprep.subr.bf16.mxu0 0
    %830 = vmatpush1.bf16.msra.mxu0 0
    %831 = vmatprep.subr.bf16.mxu0 0
    %832 = vmatpush1.bf16.msra.mxu0 0
    %833 = vmatprep.subr.bf16.mxu0 0
    %834 = vmatpush1.bf16.msra.mxu0 0
    %835 = vmatprep.subr.bf16.mxu0 0
    %836 = vmatpush1.bf16.msra.mxu0 0
    %837 = vmatprep.subr.bf16.mxu0 0
    %838 = vmatpush1.bf16.msra.mxu0 0
    %839 = vmatprep.subr.bf16.mxu0 0
    %840 = vmatpush1.bf16.msra.mxu0 0
    %841 = vmatprep.subr.bf16.mxu0 0
    %842 = vmatpush1.bf16.msra.mxu0 0
    %843 = vmatprep.subr.bf16.mxu0 0
    %844 = vmatpush1.bf16.msra.mxu0 0
    %845 = vmatprep.subr.bf16.mxu0 0
    %846 = vmatpush1.bf16.msra.mxu0 0
    %847 = vmatprep.subr.bf16.mxu0 0
    %848 = vmatpush1.bf16.msra.mxu0 0
    %849 = vmatprep.mubr.bf16.mxu0 0
    %850 = vmatmul.mubr.bf16.gmra.mrb[0].mxu0 %v811
    %v851 = vpop.f32.mrb[0].mxu0
    %v852 = vadd.f32 %v807, %v851
    %v853 = vpop.f32.mrb[0].mxu0
    %v854 = vpop.f32.mrb[0].mxu0
    %v855 = vadd.f32 %v807, %v854
    %v856 = vpop.f32.mrb[0].mxu0
    %857 = vdwg.mxu0
    %v858 = vmax.f32 %v852, 0.0
    %v859 = vmax.f32 %v855, 0.0
    %v860 = vld [vmem:[#allocation2 + $0x180] sm:$0xff]
    %v861 = vld [vmem:[#allocation2 + $0x188] sm:$0xff]
    %v862 = vld [vmem:[#allocation2 + $0x190] sm:$0xff]
    %v863 = vld [vmem:[#allocation2 + $0x198] sm:$0xff]
    %v864 = vld [vmem:[#allocation2 + $0x1a0] sm:$0xff]
    %v865 = vld [vmem:[#allocation2 + $0x1a8] sm:$0xff]
    %v866 = vld [vmem:[#allocation2 + $0x1b0] sm:$0xff]
    %v867 = vld [vmem:[#allocation2 + $0x1b8] sm:$0xff]
    %v868 = vld [vmem:[#allocation2 + $0x1c0] sm:$0xff]
    %v869 = vld [vmem:[#allocation2 + $0x1c8] sm:$0xff]
    %v870 = vld [vmem:[#allocation2 + $0x1d0] sm:$0xff]
    %v871 = vld [vmem:[#allocation2 + $0x1d8] sm:$0xff]
    %v872 = vld [vmem:[#allocation2 + $0x1e0] sm:$0xff]
    %v873 = vld [vmem:[#allocation2 + $0x1e8] sm:$0xff]
    %v874 = vld [vmem:[#allocation2 + $0x1f0] sm:$0xff]
    %v875 = vld [vmem:[#allocation2 + $0x1f8] sm:$0xff]
    %v876 = vpack.c.bf16 %v859, %v858
    %v877 = vpack.c.bf16 %v864, %v860
    %v878 = vpack.c.bf16 %v865, %v861
    %v879 = vpack.c.bf16 %v866, %v862
    %v880 = vpack.c.bf16 %v867, %v863
    %v881 = vpack.c.bf16 %v872, %v868
    %v882 = vpack.c.bf16 %v873, %v869
    %v883 = vpack.c.bf16 %v874, %v870
    %v884 = vpack.c.bf16 %v875, %v871
    %v886 = vsel %vm290, %v876, 0
    %888 = vmatprep.subr.bf16.mxu0 %v878
    %889 = vmatpush1.bf16.msra.mxu0 %v877
    %890 = vmatprep.subr.bf16.mxu0 %v882
    %891 = vmatpush1.bf16.msra.mxu0 %v881
    %892 = vmatprep.subr.bf16.mxu0 0
    %893 = vmatpush1.bf16.msra.mxu0 0
    %894 = vmatprep.subr.bf16.mxu0 0
    %895 = vmatpush1.bf16.msra.mxu0 0
    %896 = vmatprep.subr.bf16.mxu0 0
    %897 = vmatpush1.bf16.msra.mxu0 0
    %898 = vmatprep.subr.bf16.mxu0 0
    %899 = vmatpush1.bf16.msra.mxu0 0
    %900 = vmatprep.subr.bf16.mxu0 0
    %901 = vmatpush1.bf16.msra.mxu0 0
    %902 = vmatprep.subr.bf16.mxu0 0
    %903 = vmatpush1.bf16.msra.mxu0 0
    %904 = vmatprep.subr.bf16.mxu0 0
    %905 = vmatpush1.bf16.msra.mxu0 0
    %906 = vmatprep.subr.bf16.mxu0 0
    %907 = vmatpush1.bf16.msra.mxu0 0
    %908 = vmatprep.subr.bf16.mxu0 0
    %909 = vmatpush1.bf16.msra.mxu0 0
    %910 = vmatprep.subr.bf16.mxu0 0
    %911 = vmatpush1.bf16.msra.mxu0 0
    %912 = vmatprep.subr.bf16.mxu0 0
    %913 = vmatpush1.bf16.msra.mxu0 0
    %914 = vmatprep.subr.bf16.mxu0 0
    %915 = vmatpush1.bf16.msra.mxu0 0
    %916 = vmatprep.subr.bf16.mxu0 0
    %917 = vmatpush1.bf16.msra.mxu0 0
    %918 = vmatprep.subr.bf16.mxu0 0
    %919 = vmatpush1.bf16.msra.mxu0 0
    %920 = vmatprep.mubr.bf16.mxu0 0
    %921 = vmatmul.mubr.bf16.gmra.mrb[0].mxu0 %v886
    %v922 = vpop.f32.mrb[0].mxu0
    %v923 = vadd.f32 0.0, %v922
    %v924 = vpop.f32.mrb[0].mxu0
    %v925 = vadd.f32 0.0, %v924
    %v926 = vpop.f32.mrb[0].mxu0
    %v927 = vadd.f32 0.0, %v926
    %v928 = vpop.f32.mrb[0].mxu0
    %v929 = vadd.f32 0.0, %v928
    %930 = vdwg.mxu0
    %931 = vmatprep.subr.bf16.mxu0 %v880
    %932 = vmatpush1.bf16.msra.mxu0 %v879
    %933 = vmatprep.subr.bf16.mxu0 %v884
    %934 = vmatpush1.bf16.msra.mxu0 %v883
    %935 = vmatprep.subr.bf16.mxu0 0
    %936 = vmatpush1.bf16.msra.mxu0 0
    %937 = vmatprep.subr.bf16.mxu0 0
    %938 = vmatpush1.bf16.msra.mxu0 0
    %939 = vmatprep.subr.bf16.mxu0 0
    %940 = vmatpush1.bf16.msra.mxu0 0
    %941 = vmatprep.subr.bf16.mxu0 0
    %942 = vmatpush1.bf16.msra.mxu0 0
    %943 = vmatprep.subr.bf16.mxu0 0
    %944 = vmatpush1.bf16.msra.mxu0 0
    %945 = vmatprep.subr.bf16.mxu0 0
    %946 = vmatpush1.bf16.msra.mxu0 0
    %947 = vmatprep.subr.bf16.mxu0 0
    %948 = vmatpush1.bf16.msra.mxu0 0
    %949 = vmatprep.subr.bf16.mxu0 0
    %950 = vmatpush1.bf16.msra.mxu0 0
    %951 = vmatprep.subr.bf16.mxu0 0
    %952 = vmatpush1.bf16.msra.mxu0 0
    %953 = vmatprep.subr.bf16.mxu0 0
    %954 = vmatpush1.bf16.msra.mxu0 0
    %955 = vmatprep.subr.bf16.mxu0 0
    %956 = vmatpush1.bf16.msra.mxu0 0
    %957 = vmatprep.subr.bf16.mxu0 0
    %958 = vmatpush1.bf16.msra.mxu0 0
    %959 = vmatprep.subr.bf16.mxu0 0
    %960 = vmatpush1.bf16.msra.mxu0 0
    %961 = vmatprep.subr.bf16.mxu0 0
    %962 = vmatpush1.bf16.msra.mxu0 0
    %963 = vmatprep.mubr.bf16.mxu0 0
    %964 = vmatmul.mubr.bf16.gmra.mrb[0].mxu0 %v886
    %v965 = vpop.f32.mrb[0].mxu0
    %v966 = vadd.f32 0.0, %v965
    %v967 = vpop.f32.mrb[0].mxu0
    %v968 = vadd.f32 0.0, %v967
    %v969 = vpop.f32.mrb[0].mxu0
    %v970 = vadd.f32 0.0, %v969
    %v971 = vpop.f32.mrb[0].mxu0
    %v972 = vadd.f32 0.0, %v971
    %973 = vdwg.mxu0
    %v974 = vld [vmem:[%s14 + $0x60] sm:$0xff]
    %v975 = vld [vmem:[%s14 + $0x68] sm:$0xff]
    %v976 = vld [vmem:[%s14 + $0x70] sm:$0xff]
    %v977 = vld [vmem:[%s14 + $0x78] sm:$0xff]
    %v978 = vpack.c.bf16 %v975, %v974
    %v979 = vpack.c.bf16 %v977, %v976
    %980 = vmatprep.subr.bf16.mxu0 0
    %981 = vmatpush1.bf16.msra.mxu0 %v978
    %982 = vmatprep.subr.bf16.mxu0 0
    %983 = vmatpush1.bf16.msra.mxu0 %v979
    %984 = vmatprep.subr.bf16.mxu0 0
    %985 = vmatpush1.bf16.msra.mxu0 0
    %986 = vmatprep.subr.bf16.mxu0 0
    %987 = vmatpush1.bf16.msra.mxu0 0
    %988 = vmatprep.subr.bf16.mxu0 0
    %989 = vmatpush1.bf16.msra.mxu0 0
    %990 = vmatprep.subr.bf16.mxu0 0
    %991 = vmatpush1.bf16.msra.mxu0 0
    %992 = vmatprep.subr.bf16.mxu0 0
    %993 = vmatpush1.bf16.msra.mxu0 0
    %994 = vmatprep.subr.bf16.mxu0 0
    %995 = vmatpush1.bf16.msra.mxu0 0
    %996 = vmatprep.subr.bf16.mxu0 0
    %997 = vmatpush1.bf16.msra.mxu0 0
    %998 = vmatprep.subr.bf16.mxu0 0
    %999 = vmatpush1.bf16.msra.mxu0 0
    %1000 = vmatprep.subr.bf16.mxu0 0
    %1001 = vmatpush1.bf16.msra.mxu0 0
    %1002 = vmatprep.subr.bf16.mxu0 0
    %1003 = vmatpush1.bf16.msra.mxu0 0
    %1004 = vmatprep.subr.bf16.mxu0 0
    %1005 = vmatpush1.bf16.msra.mxu0 0
    %1006 = vmatprep.subr.bf16.mxu0 0
    %1007 = vmatpush1.bf16.msra.mxu0 0
    %1008 = vmatprep.subr.bf16.mxu0 0
    %1009 = vmatpush1.bf16.msra.mxu0 0
    %1010 = vmatprep.subr.bf16.mxu0 0
    %1011 = vmatpush1.bf16.msra.mxu0 0
    %1012 = vmatprep.mubr.bf16.mxu0 0
    %1013 = vmatmul.mubr.bf16.gmra.mrb[0].mxu0 %v886
    %v1014 = vpop.f32.mrb[0].mxu0
    %v1015 = vadd.f32 0.0, %v1014
    %v1016 = vpop.f32.mrb[0].mxu0
    %v1017 = vpop.f32.mrb[0].mxu0
    %v1018 = vadd.f32 0.0, %v1017
    %v1019 = vpop.f32.mrb[0].mxu0
    %1020 = vdwg.mxu0
    %v1021 = vadd.f32 %v784, %v923
    %v1022 = vadd.f32 %v785, %v925
    %v1023 = vadd.f32 %v786, %v966
    %v1024 = vadd.f32 %v787, %v968
    %v1025 = vadd.f32 %v788, %v927
    %v1026 = vadd.f32 %v789, %v929
    %v1027 = vadd.f32 %v790, %v970
    %v1028 = vadd.f32 %v791, %v972
    %v1029 = vadd.f32 %v792, %v1015
    %v1030 = vadd.f32 %v793, %v1018
    %v1031 = vld [vmem:[%s19] sm:$0xf]
    %v1033 = vlaneseq
    %v1034 = vshrl.u32 %v1033, 7
    %v1035 = vsub.s32 0, %v1034
    %v1036 = vrot.slane %v1031, %v1035
    %v1037 = vlaneseq
    %v1038 = vshrl.u32 %v1037, 7
    %v1039 = vsub.s32 1, %v1038
    %v1040 = vrot.slane %v1031, %v1039
    %v1041 = vlaneseq
    %v1042 = vshrl.u32 %v1041, 7
    %v1043 = vsub.s32 2, %v1042
    %v1044 = vrot.slane %v1031, %v1043
    %v1045 = vlaneseq
    %v1046 = vshrl.u32 %v1045, 7
    %v1047 = vsub.s32 3, %v1046
    %v1048 = vrot.slane %v1031, %v1047
    %v1053 = vadd.f32 %v1021, %v1036
    %v1054 = vadd.f32 %v1022, %v1040
    %v1055 = vadd.f32 %v1023, %v1044
    %v1056 = vadd.f32 %v1024, %v1048
    %v1057 = vadd.f32 %v1025, %v1036
    %v1058 = vadd.f32 %v1026, %v1040
    %v1059 = vadd.f32 %v1027, %v1044
    %v1060 = vadd.f32 %v1028, %v1048
    %v1061 = vld [vmem:[%s15] sm:$0x1]
    %v1063 = vlaneseq
    %v1064 = vshrl.u32 %v1063, 7
    %v1065 = vsub.s32 0, %v1064
    %v1066 = vrot.slane %v1061, %v1065
    %v1068 = vadd.f32 %v1029, %v1066
    %v1069 = vadd.f32 %v1030, %v1066
    %v1070 = vmax.f32 %v1068, 0.0
    %v1071 = vmax.f32 %v1069, 0.0
    %v1072 = vld [vmem:[%s16] sm:$0xff]
    %v1073 = vld [vmem:[%s16 + $0x8] sm:$0xff]
    %v1074 = vld [vmem:[%s16 + $0x10] sm:$0xff]
    %v1075 = vld [vmem:[%s16 + $0x18] sm:$0xff]
    %v1076 = vpack.c.bf16 %v1071, %v1070
    %v1077 = vpack.c.bf16 %v1073, %v1072
    %v1078 = vpack.c.bf16 %v1075, %v1074
    %v1079 = vld [vmem:[%s17] sm:$0x1]
    %v1081 = vlaneseq
    %v1082 = vshrl.u32 %v1081, 7
    %v1083 = vsub.s32 0, %v1082
    %v1084 = vrot.slane %v1079, %v1083
    %v1087 = vsel %vm290, %v1076, 0
    %1089 = vmatprep.subr.bf16.mxu0 0
    %1090 = vmatpush1.bf16.msra.mxu0 %v1077
    %1091 = vmatprep.subr.bf16.mxu0 0
    %1092 = vmatpush1.bf16.msra.mxu0 %v1078
    %1093 = vmatprep.subr.bf16.mxu0 0
    %1094 = vmatpush1.bf16.msra.mxu0 0
    %1095 = vmatprep.subr.bf16.mxu0 0
    %1096 = vmatpush1.bf16.msra.mxu0 0
    %1097 = vmatprep.subr.bf16.mxu0 0
    %1098 = vmatpush1.bf16.msra.mxu0 0
    %1099 = vmatprep.subr.bf16.mxu0 0
    %1100 = vmatpush1.bf16.msra.mxu0 0
    %1101 = vmatprep.subr.bf16.mxu0 0
    %1102 = vmatpush1.bf16.msra.mxu0 0
    %1103 = vmatprep.subr.bf16.mxu0 0
    %1104 = vmatpush1.bf16.msra.mxu0 0
    %1105 = vmatprep.subr.bf16.mxu0 0
    %1106 = vmatpush1.bf16.msra.mxu0 0
    %1107 = vmatprep.subr.bf16.mxu0 0
    %1108 = vmatpush1.bf16.msra.mxu0 0
    %1109 = vmatprep.subr.bf16.mxu0 0
    %1110 = vmatpush1.bf16.msra.mxu0 0
    %1111 = vmatprep.subr.bf16.mxu0 0
    %1112 = vmatpush1.bf16.msra.mxu0 0
    %1113 = vmatprep.subr.bf16.mxu0 0
    %1114 = vmatpush1.bf16.msra.mxu0 0
    %1115 = vmatprep.subr.bf16.mxu0 0
    %1116 = vmatpush1.bf16.msra.mxu0 0
    %1117 = vmatprep.subr.bf16.mxu0 0
    %1118 = vmatpush1.bf16.msra.mxu0 0
    %1119 = vmatprep.subr.bf16.mxu0 0
    %1120 = vmatpush1.bf16.msra.mxu0 0
    %1121 = vmatprep.mubr.bf16.mxu0 0
    %1122 = vmatmul.mubr.bf16.gmra.mrb[0].mxu0 %v1087
    %v1123 = vpop.f32.mrb[0].mxu0
    %v1124 = vadd.f32 %v1084, %v1123
    %v1125 = vpop.f32.mrb[0].mxu0
    %v1126 = vpop.f32.mrb[0].mxu0
    %v1127 = vadd.f32 %v1084, %v1126
    %v1128 = vpop.f32.mrb[0].mxu0
    %1129 = vdwg.mxu0
    %1130 = vmax.xlane.f32.xlu0 %v1124
    %v1131 = vpop.xlane.xlu0 %1130
    %1132 = vmax.xlane.f32.xlu0 %v1127
    %v1133 = vpop.xlane.xlu0 %1132
    %v1134 = vsub.f32 %v1124, %v1131
    %v1135 = vsub.f32 %v1127, %v1133
    %v1136 = vmul.f32 %v1134, 1.442695
    %v1137 = vpow.pop %v1136
    %v1138 = vmul.f32 %v1135, 1.442695
    %v1139 = vpow.pop %v1138
    %1140 = vadd.xlane.f32.xlu0 %v1137
    %v1141 = vpop.xlane.xlu0 %1140
    %1142 = vadd.xlane.f32.xlu0 %v1139
    %v1143 = vpop.xlane.xlu0 %1142
    %v1144 = vrcp.pop %v1141
    %v1145 = vrcp.pop %v1143
    %v1146 = vmul.f32 %v1137, %v1144
    %v1147 = vmul.f32 %v1139, %v1145
    %v1148 = vld [vmem:[#allocation5] sm:$0xff]
    %v1149 = vld [vmem:[#allocation5 + $0x8] sm:$0xff]
    %v1150 = vld [vmem:[#allocation5 + $0x10] sm:$0xff]
    %v1151 = vld [vmem:[#allocation5 + $0x18] sm:$0xff]
    %v1152 = vld [vmem:[#allocation5 + $0x20] sm:$0xff]
    %v1153 = vld [vmem:[#allocation5 + $0x28] sm:$0xff]
    %v1154 = vld [vmem:[#allocation5 + $0x30] sm:$0xff]
    %v1155 = vld [vmem:[#allocation5 + $0x38] sm:$0xff]
    %v1156 = vld [vmem:[#allocation5 + $0x40] sm:$0xff]
    %v1157 = vld [vmem:[#allocation5 + $0x48] sm:$0xff]
    %v1158 = vld [vmem:[#allocation5 + $0x50] sm:$0xff]
    %v1159 = vld [vmem:[#allocation5 + $0x58] sm:$0xff]
    %v1160 = vld [vmem:[#allocation5 + $0x60] sm:$0xff]
    %v1161 = vld [vmem:[#allocation5 + $0x68] sm:$0xff]
    %v1162 = vld [vmem:[#allocation5 + $0x70] sm:$0xff]
    %v1163 = vld [vmem:[#allocation5 + $0x78] sm:$0xff]
    %v1164 = vld [vmem:[#allocation5 + $0x80] sm:$0xff]
    %v1165 = vld [vmem:[#allocation5 + $0x88] sm:$0xff]
    %v1166 = vld [vmem:[#allocation5 + $0x90] sm:$0xff]
    %v1167 = vld [vmem:[#allocation5 + $0x98] sm:$0xff]
    %v1168 = vld [vmem:[#allocation5 + $0xa0] sm:$0xff]
    %v1169 = vld [vmem:[#allocation5 + $0xa8] sm:$0xff]
    %v1170 = vld [vmem:[#allocation5 + $0xb0] sm:$0xff]
    %v1171 = vld [vmem:[#allocation5 + $0xb8] sm:$0xff]
    %v1172 = vld [vmem:[#allocation5 + $0xc0] sm:$0xff]
    %v1173 = vld [vmem:[#allocation5 + $0xc8] sm:$0xff]
    %v1174 = vld [vmem:[#allocation5 + $0xd0] sm:$0xff]
    %v1175 = vld [vmem:[#allocation5 + $0xd8] sm:$0xff]
    %v1176 = vld [vmem:[#allocation5 + $0xe0] sm:$0xff]
    %v1177 = vld [vmem:[#allocation5 + $0xe8] sm:$0xff]
    %v1178 = vld [vmem:[#allocation5 + $0xf0] sm:$0xff]
    %v1179 = vld [vmem:[#allocation5 + $0xf8] sm:$0xff]
    %v1180 = vld [vmem:[#allocation5 + $0x100] sm:$0xff]
    %v1181 = vld [vmem:[#allocation5 + $0x108] sm:$0xff]
    %v1182 = vld [vmem:[#allocation5 + $0x110] sm:$0xff]
    %v1183 = vld [vmem:[#allocation5 + $0x118] sm:$0xff]
    %v1184 = vld [vmem:[#allocation5 + $0x120] sm:$0xff]
    %v1185 = vld [vmem:[#allocation5 + $0x128] sm:$0xff]
    %v1186 = vld [vmem:[#allocation5 + $0x130] sm:$0xff]
    %v1187 = vld [vmem:[#allocation5 + $0x138] sm:$0xff]
    %v1188 = vld [vmem:[#allocation5 + $0x140] sm:$0xff]
    %v1189 = vld [vmem:[#allocation5 + $0x148] sm:$0xff]
    %v1190 = vld [vmem:[#allocation5 + $0x150] sm:$0xff]
    %v1191 = vld [vmem:[#allocation5 + $0x158] sm:$0xff]
    %v1192 = vld [vmem:[#allocation5 + $0x160] sm:$0xff]
    %v1193 = vld [vmem:[#allocation5 + $0x168] sm:$0xff]
    %v1194 = vld [vmem:[#allocation5 + $0x170] sm:$0xff]
    %v1195 = vld [vmem:[#allocation5 + $0x178] sm:$0xff]
    %v1196 = vld [vmem:[#allocation5 + $0x180] sm:$0xff]
    %v1197 = vld [vmem:[#allocation5 + $0x188] sm:$0xff]
    %v1198 = vld [vmem:[#allocation5 + $0x190] sm:$0xff]
    %v1199 = vld [vmem:[#allocation5 + $0x198] sm:$0xff]
    %v1200 = vld [vmem:[#allocation5 + $0x1a0] sm:$0xff]
    %v1201 = vld [vmem:[#allocation5 + $0x1a8] sm:$0xff]
    %v1202 = vld [vmem:[#allocation5 + $0x1b0] sm:$0xff]
    %v1203 = vld [vmem:[#allocation5 + $0x1b8] sm:$0xff]
    %v1204 = vld [vmem:[#allocation5 + $0x1c0] sm:$0xff]
    %v1205 = vld [vmem:[#allocation5 + $0x1c8] sm:$0xff]
    %v1206 = vld [vmem:[#allocation5 + $0x1d0] sm:$0xff]
    %v1207 = vld [vmem:[#allocation5 + $0x1d8] sm:$0xff]
    %v1208 = vld [vmem:[#allocation5 + $0x1e0] sm:$0xff]
    %v1209 = vld [vmem:[#allocation5 + $0x1e8] sm:$0xff]
    %v1210 = vld [vmem:[#allocation5 + $0x1f0] sm:$0xff]
    %v1211 = vld [vmem:[#allocation5 + $0x1f8] sm:$0xff]
    %v1212 = vpack.c.bf16 %v1152, %v1148
    %v1213 = vpack.c.bf16 %v1153, %v1149
    %v1214 = vpack.c.bf16 %v1154, %v1150
    %v1215 = vpack.c.bf16 %v1155, %v1151
    %v1216 = vpack.c.bf16 %v1160, %v1156
    %v1217 = vpack.c.bf16 %v1161, %v1157
    %v1218 = vpack.c.bf16 %v1162, %v1158
    %v1219 = vpack.c.bf16 %v1163, %v1159
    %v1220 = vpack.c.bf16 %v1168, %v1164
    %v1221 = vpack.c.bf16 %v1169, %v1165
    %v1222 = vpack.c.bf16 %v1170, %v1166
    %v1223 = vpack.c.bf16 %v1171, %v1167
    %v1224 = vpack.c.bf16 %v1176, %v1172
    %v1225 = vpack.c.bf16 %v1177, %v1173
    %v1226 = vpack.c.bf16 %v1178, %v1174
    %v1227 = vpack.c.bf16 %v1179, %v1175
    %v1228 = vpack.c.bf16 %v1184, %v1180
    %v1229 = vpack.c.bf16 %v1185, %v1181
    %v1230 = vpack.c.bf16 %v1186, %v1182
    %v1231 = vpack.c.bf16 %v1187, %v1183
    %v1232 = vpack.c.bf16 %v1192, %v1188
    %v1233 = vpack.c.bf16 %v1193, %v1189
    %v1234 = vpack.c.bf16 %v1194, %v1190
    %v1235 = vpack.c.bf16 %v1195, %v1191
    %v1236 = vpack.c.bf16 %v1200, %v1196
    %v1237 = vpack.c.bf16 %v1201, %v1197
    %v1238 = vpack.c.bf16 %v1202, %v1198
    %v1239 = vpack.c.bf16 %v1203, %v1199
    %v1240 = vpack.c.bf16 %v1208, %v1204
    %v1241 = vpack.c.bf16 %v1209, %v1205
    %v1242 = vpack.c.bf16 %v1210, %v1206
    %v1243 = vpack.c.bf16 %v1211, %v1207
    %v1244 = vld [vmem:[%s4] sm:$0x3]
    %1245 = vmatprep.subr.bf16.mxu0 %v1213
    %1246 = vmatpush1.bf16.msra.mxu0 %v1212
    %1247 = vmatprep.subr.bf16.mxu0 %v1217
    %1248 = vmatpush1.bf16.msra.mxu0 %v1216
    %1249 = vmatprep.subr.bf16.mxu0 %v1221
    %1250 = vmatpush1.bf16.msra.mxu0 %v1220
    %1251 = vmatprep.subr.bf16.mxu0 %v1225
    %1252 = vmatpush1.bf16.msra.mxu0 %v1224
    %1253 = vmatprep.subr.bf16.mxu0 %v1229
    %1254 = vmatpush1.bf16.msra.mxu0 %v1228
    %1255 = vmatprep.subr.bf16.mxu0 %v1233
    %1256 = vmatpush1.bf16.msra.mxu0 %v1232
    %1257 = vmatprep.subr.bf16.mxu0 %v1237
    %1258 = vmatpush1.bf16.msra.mxu0 %v1236
    %1259 = vmatprep.subr.bf16.mxu0 %v1241
    %1260 = vmatpush1.bf16.msra.mxu0 %v1240
    %1261 = vmatprep.subr.bf16.mxu0 0
    %1262 = vmatpush1.bf16.msra.mxu0 0
    %1263 = vmatprep.subr.bf16.mxu0 0
    %1264 = vmatpush1.bf16.msra.mxu0 0
    %1265 = vmatprep.subr.bf16.mxu0 0
    %1266 = vmatpush1.bf16.msra.mxu0 0
    %1267 = vmatprep.subr.bf16.mxu0 0
    %1268 = vmatpush1.bf16.msra.mxu0 0
    %1269 = vmatprep.subr.bf16.mxu0 0
    %1270 = vmatpush1.bf16.msra.mxu0 0
    %1271 = vmatprep.subr.bf16.mxu0 0
    %1272 = vmatpush1.bf16.msra.mxu0 0
    %1273 = vmatprep.subr.bf16.mxu0 0
    %1274 = vmatpush1.bf16.msra.mxu0 0
    %1275 = vmatprep.subr.bf16.mxu0 0
    %1276 = vmatpush1.bf16.msra.mxu0 0
    %1277 = vmatprep.mubr.bf16.mxu0 0
    %1278 = vmatmul.mubr.bf16.gmra.mrb[0].mxu0 0
    %v1279 = vpop.f32.mrb[0].mxu0
    %v1280 = vadd.f32 0.0, %v1279
    %v1281 = vpop.f32.mrb[0].mxu0
    %v1282 = vadd.f32 0.0, %v1281
    %v1283 = vpop.f32.mrb[0].mxu0
    %v1284 = vpop.f32.mrb[0].mxu0
    %1285 = vdwg.mxu0
    %1286 = vmatprep.subr.bf16.mxu0 %v1215
    %1287 = vmatpush1.bf16.msra.mxu0 %v1214
    %1288 = vmatprep.subr.bf16.mxu0 %v1219
    %1289 = vmatpush1.bf16.msra.mxu0 %v1218
    %1290 = vmatprep.subr.bf16.mxu0 %v1223
    %1291 = vmatpush1.bf16.msra.mxu0 %v1222
    %1292 = vmatprep.subr.bf16.mxu0 %v1227
    %1293 = vmatpush1.bf16.msra.mxu0 %v1226
    %1294 = vmatprep.subr.bf16.mxu0 %v1231
    %1295 = vmatpush1.bf16.msra.mxu0 %v1230
    %1296 = vmatprep.subr.bf16.mxu0 %v1235
    %1297 = vmatpush1.bf16.msra.mxu0 %v1234
    %1298 = vmatprep.subr.bf16.mxu0 %v1239
    %1299 = vmatpush1.bf16.msra.mxu0 %v1238
    %1300 = vmatprep.subr.bf16.mxu0 %v1243
    %1301 = vmatpush1.bf16.msra.mxu0 %v1242
    %1302 = vmatprep.subr.bf16.mxu0 0
    %1303 = vmatpush1.bf16.msra.mxu0 0
    %1304 = vmatprep.subr.bf16.mxu0 0
    %1305 = vmatpush1.bf16.msra.mxu0 0
    %1306 = vmatprep.subr.bf16.mxu0 0
    %1307 = vmatpush1.bf16.msra.mxu0 0
    %1308 = vmatprep.subr.bf16.mxu0 0
    %1309 = vmatpush1.bf16.msra.mxu0 0
    %1310 = vmatprep.subr.bf16.mxu0 0
    %1311 = vmatpush1.bf16.msra.mxu0 0
    %1312 = vmatprep.subr.bf16.mxu0 0
    %1313 = vmatpush1.bf16.msra.mxu0 0
    %1314 = vmatprep.subr.bf16.mxu0 0
    %1315 = vmatpush1.bf16.msra.mxu0 0
    %1316 = vmatprep.subr.bf16.mxu0 0
    %1317 = vmatpush1.bf16.msra.mxu0 0
    %1318 = vmatprep.mubr.bf16.mxu0 0
    %1319 = vmatmul.mubr.bf16.gmra.mrb[0].mxu0 0
    %v1320 = vpop.f32.mrb[0].mxu0
    %v1321 = vadd.f32 0.0, %v1320
    %v1322 = vpop.f32.mrb[0].mxu0
    %v1323 = vadd.f32 0.0, %v1322
    %v1324 = vpop.f32.mrb[0].mxu0
    %v1325 = vpop.f32.mrb[0].mxu0
    %1326 = vdwg.mxu0
    %v1331 = vrot.slane %v1280, 1
    %v1332 = vrot.slane %v1282, 1
    %v1333 = vrot.slane %v1321, 1
    %v1334 = vrot.slane %v1323, 1
    %v1343 = vadd.f32 %v1053, %v1280
    %v1344 = vadd.f32 %v1054, %v1282
    %v1345 = vadd.f32 %v1055, %v1321
    %v1346 = vadd.f32 %v1056, %v1323
    %v1347 = vadd.f32 %v1057, %v1331
    %v1348 = vadd.f32 %v1058, %v1332
    %v1349 = vadd.f32 %v1059, %v1333
    %v1350 = vadd.f32 %v1060, %v1334
    %v1351 = vxor.u32 %v1343, 2147483648
    %v1352 = vxor.u32 %v1347, 2147483648
    %v1353 = vmul.f32 %v1351, 1.442695
    %v1354 = vpow.pop %v1353
    %v1355 = vmul.f32 %v1352, 1.442695
    %v1356 = vpow.pop %v1355
    %v1357 = vadd.f32 %v1354, 1.0
    %v1358 = vadd.f32 %v1356, 1.0
    %v1359 = vrcp.pop %v1357
    %v1360 = vmul.f32 1.0, %v1359
    %v1361 = vrcp.pop %v1358
    %v1362 = vmul.f32 1.0, %v1361
    %v1363 = vxor.u32 %v1344, 2147483648
    %v1364 = vxor.u32 %v1348, 2147483648
    %v1365 = vmul.f32 %v1363, 1.442695
    %v1366 = vpow.pop %v1365
    %v1367 = vmul.f32 %v1364, 1.442695
    %v1368 = vpow.pop %v1367
    %v1369 = vadd.f32 %v1366, 1.0
    %v1370 = vadd.f32 %v1368, 1.0
    %v1371 = vrcp.pop %v1369
    %v1372 = vmul.f32 1.0, %v1371
    %v1373 = vrcp.pop %v1370
    %v1374 = vmul.f32 1.0, %v1373
    %v1375 = vtanh.pop %v1345
    %v1376 = vtanh.pop %v1349
    %v1377 = vxor.u32 %v1346, 2147483648
    %v1378 = vxor.u32 %v1350, 2147483648
    %v1379 = vmul.f32 %v1377, 1.442695
    %v1380 = vpow.pop %v1379
    %v1381 = vmul.f32 %v1378, 1.442695
    %v1382 = vpow.pop %v1381
    %v1383 = vadd.f32 %v1380, 1.0
    %v1384 = vadd.f32 %v1382, 1.0
    %v1385 = vrcp.pop %v1383
    %v1386 = vmul.f32 1.0, %v1385
    %v1387 = vrcp.pop %v1384
    %v1388 = vmul.f32 1.0, %v1387
    %v1389 = vmul.f32 %v1372, 0.0
    %v1390 = vmul.f32 %v1374, 0.0
    %v1391 = vmul.f32 %v1360, %v1375
    %v1392 = vmul.f32 %v1362, %v1376
    %v1393 = vadd.f32 %v1389, %v1391
    %v1394 = vadd.f32 %v1390, %v1392
    %v1395 = vtanh.pop %v1393
    %v1396 = vtanh.pop %v1394
    %v1397 = vmul.f32 %v1386, %v1395
    %v1398 = vmul.f32 %v1388, %v1396
    %vm1399 = vcmp.gt.f32.partialorder %v1244, 0.0
    %v1400 = vsel %vm1399, 1, 0
    %v1401 = vcvt.s32.f32 %v1400
    %1403 = vset.pattern.permute.xlu0 0
    %1404 = vperm.xlu0 %1403, %v1401
    %v1405 = vpop.permute.xlu0 %1404
    %v1406 = vrot.slane %v1405, 1
    %v1409 = vmul.f32 %v1397, %v1405
    %v1410 = vmul.f32 %v1398, %v1406
    %v1411 = vpack.c.bf16 %v1397, %v1397
    %v1412 = vpack.c.bf16 %v1398, %v1398
    %v1415 = vunpack.c.l.b16 %v1411
    %v1416 = vunpack.c.l.b16 %v1412
    %v1417 = vrot.slane %v1416, 7
    %vm1418 = vcmask 1041409
    %v1419 = vsel %vm1418, %v1417, %v1415
    %v1420 = vpack.c.b16 %v1419, %v1419
    %1422 = vmatprep.subr.bf16.mxu0 %v1213
    %1423 = vmatpush1.bf16.msra.mxu0 %v1212
    %1424 = vmatprep.subr.bf16.mxu0 %v1217
    %1425 = vmatpush1.bf16.msra.mxu0 %v1216
    %1426 = vmatprep.subr.bf16.mxu0 %v1221
    %1427 = vmatpush1.bf16.msra.mxu0 %v1220
    %1428 = vmatprep.subr.bf16.mxu0 %v1225
    %1429 = vmatpush1.bf16.msra.mxu0 %v1224
    %1430 = vmatprep.subr.bf16.mxu0 %v1229
    %1431 = vmatpush1.bf16.msra.mxu0 %v1228
    %1432 = vmatprep.subr.bf16.mxu0 %v1233
    %1433 = vmatpush1.bf16.msra.mxu0 %v1232
    %1434 = vmatprep.subr.bf16.mxu0 %v1237
    %1435 = vmatpush1.bf16.msra.mxu0 %v1236
    %1436 = vmatprep.subr.bf16.mxu0 %v1241
    %1437 = vmatpush1.bf16.msra.mxu0 %v1240
    %1438 = vmatprep.subr.bf16.mxu0 0
    %1439 = vmatpush1.bf16.msra.mxu0 0
    %1440 = vmatprep.subr.bf16.mxu0 0
    %1441 = vmatpush1.bf16.msra.mxu0 0
    %1442 = vmatprep.subr.bf16.mxu0 0
    %1443 = vmatpush1.bf16.msra.mxu0 0
    %1444 = vmatprep.subr.bf16.mxu0 0
    %1445 = vmatpush1.bf16.msra.mxu0 0
    %1446 = vmatprep.subr.bf16.mxu0 0
    %1447 = vmatpush1.bf16.msra.mxu0 0
    %1448 = vmatprep.subr.bf16.mxu0 0
    %1449 = vmatpush1.bf16.msra.mxu0 0
    %1450 = vmatprep.subr.bf16.mxu0 0
    %1451 = vmatpush1.bf16.msra.mxu0 0
    %1452 = vmatprep.subr.bf16.mxu0 0
    %1453 = vmatpush1.bf16.msra.mxu0 0
    %1454 = vmatprep.mubr.bf16.mxu0 0
    %1455 = vmatmul.mubr.bf16.gmra.mrb[0].mxu0 %v1420
    %v1456 = vpop.f32.mrb[0].mxu0
    %v1457 = vadd.f32 0.0, %v1456
    %v1458 = vpop.f32.mrb[0].mxu0
    %v1459 = vadd.f32 0.0, %v1458
    %v1460 = vpop.f32.mrb[0].mxu0
    %v1461 = vpop.f32.mrb[0].mxu0
    %1462 = vdwg.mxu0
    %1463 = vmatprep.subr.bf16.mxu0 %v1215
    %1464 = vmatpush1.bf16.msra.mxu0 %v1214
    %1465 = vmatprep.subr.bf16.mxu0 %v1219
    %1466 = vmatpush1.bf16.msra.mxu0 %v1218
    %1467 = vmatprep.subr.bf16.mxu0 %v1223
    %1468 = vmatpush1.bf16.msra.mxu0 %v1222
    %1469 = vmatprep.subr.bf16.mxu0 %v1227
    %1470 = vmatpush1.bf16.msra.mxu0 %v1226
    %1471 = vmatprep.subr.bf16.mxu0 %v1231
    %1472 = vmatpush1.bf16.msra.mxu0 %v1230
    %1473 = vmatprep.subr.bf16.mxu0 %v1235
    %1474 = vmatpush1.bf16.msra.mxu0 %v1234
    %1475 = vmatprep.subr.bf16.mxu0 %v1239
    %1476 = vmatpush1.bf16.msra.mxu0 %v1238
    %1477 = vmatprep.subr.bf16.mxu0 %v1243
    %1478 = vmatpush1.bf16.msra.mxu0 %v1242
    %1479 = vmatprep.subr.bf16.mxu0 0
    %1480 = vmatpush1.bf16.msra.mxu0 0
    %1481 = vmatprep.subr.bf16.mxu0 0
    %1482 = vmatpush1.bf16.msra.mxu0 0
    %1483 = vmatprep.subr.bf16.mxu0 0
    %1484 = vmatpush1.bf16.msra.mxu0 0
    %1485 = vmatprep.subr.bf16.mxu0 0
    %1486 = vmatpush1.bf16.msra.mxu0 0
    %1487 = vmatprep.subr.bf16.mxu0 0
    %1488 = vmatpush1.bf16.msra.mxu0 0
    %1489 = vmatprep.subr.bf16.mxu0 0
    %1490 = vmatpush1.bf16.msra.mxu0 0
    %1491 = vmatprep.subr.bf16.mxu0 0
    %1492 = vmatpush1.bf16.msra.mxu0 0
    %1493 = vmatprep.subr.bf16.mxu0 0
    %1494 = vmatpush1.bf16.msra.mxu0 0
    %1495 = vmatprep.mubr.bf16.mxu0 0
    %1496 = vmatmul.mubr.bf16.gmra.mrb[0].mxu0 %v1420
    %v1497 = vpop.f32.mrb[0].mxu0
    %v1498 = vadd.f32 0.0, %v1497
    %v1499 = vpop.f32.mrb[0].mxu0
    %v1500 = vadd.f32 0.0, %v1499
    %v1501 = vpop.f32.mrb[0].mxu0
    %v1502 = vpop.f32.mrb[0].mxu0
    %1503 = vdwg.mxu0
    %v1508 = vrot.slane %v1457, 7
    %v1509 = vrot.slane %v1459, 7
    %v1510 = vrot.slane %v1498, 7
    %v1511 = vrot.slane %v1500, 7
    %v1520 = vadd.f32 %v1053, %v1508
    %v1521 = vadd.f32 %v1054, %v1509
    %v1522 = vadd.f32 %v1055, %v1510
    %v1523 = vadd.f32 %v1056, %v1511
    %v1524 = vadd.f32 %v1057, %v1457
    %v1525 = vadd.f32 %v1058, %v1459
    %v1526 = vadd.f32 %v1059, %v1498
    %v1527 = vadd.f32 %v1060, %v1500
    %v1528 = vxor.u32 %v1520, 2147483648
    %v1529 = vxor.u32 %v1524, 2147483648
    %v1530 = vmul.f32 %v1528, 1.442695
    %v1531 = vpow.pop %v1530
    %v1532 = vmul.f32 %v1529, 1.442695
    %v1533 = vpow.pop %v1532
    %v1534 = vadd.f32 %v1531, 1.0
    %v1535 = vadd.f32 %v1533, 1.0
    %v1536 = vrcp.pop %v1534
    %v1537 = vmul.f32 1.0, %v1536
    %v1538 = vrcp.pop %v1535
    %v1539 = vmul.f32 1.0, %v1538
    %v1540 = vxor.u32 %v1521, 2147483648
    %v1541 = vxor.u32 %v1525, 2147483648
    %v1542 = vmul.f32 %v1540, 1.442695
    %v1543 = vpow.pop %v1542
    %v1544 = vmul.f32 %v1541, 1.442695
    %v1545 = vpow.pop %v1544
    %v1546 = vadd.f32 %v1543, 1.0
    %v1547 = vadd.f32 %v1545, 1.0
    %v1548 = vrcp.pop %v1546
    %v1549 = vmul.f32 1.0, %v1548
    %v1550 = vrcp.pop %v1547
    %v1551 = vmul.f32 1.0, %v1550
    %v1552 = vtanh.pop %v1522
    %v1553 = vtanh.pop %v1526
    %v1554 = vxor.u32 %v1523, 2147483648
    %v1555 = vxor.u32 %v1527, 2147483648
    %v1556 = vmul.f32 %v1554, 1.442695
    %v1557 = vpow.pop %v1556
    %v1558 = vmul.f32 %v1555, 1.442695
    %v1559 = vpow.pop %v1558
    %v1560 = vadd.f32 %v1557, 1.0
    %v1561 = vadd.f32 %v1559, 1.0
    %v1562 = vrcp.pop %v1560
    %v1563 = vmul.f32 1.0, %v1562
    %v1564 = vrcp.pop %v1561
    %v1565 = vmul.f32 1.0, %v1564
    %v1568 = vrot.slane %v1393, 7
    %v1569 = vrot.slane %v1394, 7
    %v1572 = vmul.f32 %v1549, %v1568
    %v1573 = vmul.f32 %v1551, %v1569
    %v1574 = vmul.f32 %v1537, %v1552
    %v1575 = vmul.f32 %v1539, %v1553
    %v1576 = vadd.f32 %v1572, %v1574
    %v1577 = vadd.f32 %v1573, %v1575
    %v1578 = vtanh.pop %v1576
    %v1579 = vtanh.pop %v1577
    %v1580 = vmul.f32 %v1563, %v1578
    %v1581 = vmul.f32 %v1565, %v1579
    %vm1582 = vcmp.gt.f32.partialorder %v1244, 1.0
    %v1583 = vsel %vm1582, 1, 0
    %v1584 = vcvt.s32.f32 %v1583
    %1586 = vset.pattern.permute.xlu0 0
    %1587 = vperm.xlu0 %1586, %v1584
    %v1588 = vpop.permute.xlu0 %1587
    %v1589 = vrot.slane %v1588, 7
    %v1592 = vmul.f32 %v1580, %v1589
    %v1593 = vmul.f32 %v1581, %v1588
    %v1594 = vpack.c.bf16 %v1580, %v1580
    %v1595 = vpack.c.bf16 %v1581, %v1581
    %v1598 = vunpack.c.l.b16 %v1594
    %v1599 = vunpack.c.l.b16 %v1595
    %v1600 = vrot.slane %v1598, 1
    %v1601 = vsel %vm1418, %v1599, %v1600
    %v1602 = vpack.c.b16 %v1601, %v1601
    %1604 = vmatprep.subr.bf16.mxu0 %v1213
    %1605 = vmatpush1.bf16.msra.mxu0 %v1212
    %1606 = vmatprep.subr.bf16.mxu0 %v1217
    %1607 = vmatpush1.bf16.msra.mxu0 %v1216
    %1608 = vmatprep.subr.bf16.mxu0 %v1221
    %1609 = vmatpush1.bf16.msra.mxu0 %v1220
    %1610 = vmatprep.subr.bf16.mxu0 %v1225
    %1611 = vmatpush1.bf16.msra.mxu0 %v1224
    %1612 = vmatprep.subr.bf16.mxu0 %v1229
    %1613 = vmatpush1.bf16.msra.mxu0 %v1228
    %1614 = vmatprep.subr.bf16.mxu0 %v1233
    %1615 = vmatpush1.bf16.msra.mxu0 %v1232
    %1616 = vmatprep.subr.bf16.mxu0 %v1237
    %1617 = vmatpush1.bf16.msra.mxu0 %v1236
    %1618 = vmatprep.subr.bf16.mxu0 %v1241
    %1619 = vmatpush1.bf16.msra.mxu0 %v1240
    %1620 = vmatprep.subr.bf16.mxu0 0
    %1621 = vmatpush1.bf16.msra.mxu0 0
    %1622 = vmatprep.subr.bf16.mxu0 0
    %1623 = vmatpush1.bf16.msra.mxu0 0
    %1624 = vmatprep.subr.bf16.mxu0 0
    %1625 = vmatpush1.bf16.msra.mxu0 0
    %1626 = vmatprep.subr.bf16.mxu0 0
    %1627 = vmatpush1.bf16.msra.mxu0 0
    %1628 = vmatprep.subr.bf16.mxu0 0
    %1629 = vmatpush1.bf16.msra.mxu0 0
    %1630 = vmatprep.subr.bf16.mxu0 0
    %1631 = vmatpush1.bf16.msra.mxu0 0
    %1632 = vmatprep.subr.bf16.mxu0 0
    %1633 = vmatpush1.bf16.msra.mxu0 0
    %1634 = vmatprep.subr.bf16.mxu0 0
    %1635 = vmatpush1.bf16.msra.mxu0 0
    %1636 = vmatprep.mubr.bf16.mxu0 0
    %1637 = vmatmul.mubr.bf16.gmra.mrb[0].mxu0 %v1602
    %v1638 = vpop.f32.mrb[0].mxu0
    %v1639 = vadd.f32 0.0, %v1638
    %v1640 = vpop.f32.mrb[0].mxu0
    %v1641 = vadd.f32 0.0, %v1640
    %v1642 = vpop.f32.mrb[0].mxu0
    %v1643 = vpop.f32.mrb[0].mxu0
    %1644 = vdwg.mxu0
    %1645 = vmatprep.subr.bf16.mxu0 %v1215
    %1646 = vmatpush1.bf16.msra.mxu0 %v1214
    %1647 = vmatprep.subr.bf16.mxu0 %v1219
    %1648 = vmatpush1.bf16.msra.mxu0 %v1218
    %1649 = vmatprep.subr.bf16.mxu0 %v1223
    %1650 = vmatpush1.bf16.msra.mxu0 %v1222
    %1651 = vmatprep.subr.bf16.mxu0 %v1227
    %1652 = vmatpush1.bf16.msra.mxu0 %v1226
    %1653 = vmatprep.subr.bf16.mxu0 %v1231
    %1654 = vmatpush1.bf16.msra.mxu0 %v1230
    %1655 = vmatprep.subr.bf16.mxu0 %v1235
    %1656 = vmatpush1.bf16.msra.mxu0 %v1234
    %1657 = vmatprep.subr.bf16.mxu0 %v1239
    %1658 = vmatpush1.bf16.msra.mxu0 %v1238
    %1659 = vmatprep.subr.bf16.mxu0 %v1243
    %1660 = vmatpush1.bf16.msra.mxu0 %v1242
    %1661 = vmatprep.subr.bf16.mxu0 0
    %1662 = vmatpush1.bf16.msra.mxu0 0
    %1663 = vmatprep.subr.bf16.mxu0 0
    %1664 = vmatpush1.bf16.msra.mxu0 0
    %1665 = vmatprep.subr.bf16.mxu0 0
    %1666 = vmatpush1.bf16.msra.mxu0 0
    %1667 = vmatprep.subr.bf16.mxu0 0
    %1668 = vmatpush1.bf16.msra.mxu0 0
    %1669 = vmatprep.subr.bf16.mxu0 0
    %1670 = vmatpush1.bf16.msra.mxu0 0
    %1671 = vmatprep.subr.bf16.mxu0 0
    %1672 = vmatpush1.bf16.msra.mxu0 0
    %1673 = vmatprep.subr.bf16.mxu0 0
    %1674 = vmatpush1.bf16.msra.mxu0 0
    %1675 = vmatprep.subr.bf16.mxu0 0
    %1676 = vmatpush1.bf16.msra.mxu0 0
    %1677 = vmatprep.mubr.bf16.mxu0 0
    %1678 = vmatmul.mubr.bf16.gmra.mrb[0].mxu0 %v1602
    %v1679 = vpop.f32.mrb[0].mxu0
    %v1680 = vadd.f32 0.0, %v1679
    %v1681 = vpop.f32.mrb[0].mxu0
    %v1682 = vadd.f32 0.0, %v1681
    %v1683 = vpop.f32.mrb[0].mxu0
    %v1684 = vpop.f32.mrb[0].mxu0
    %1685 = vdwg.mxu0
    %v1690 = vrot.slane %v1639, 6
    %v1691 = vrot.slane %v1641, 6
    %v1692 = vrot.slane %v1680, 6
    %v1693 = vrot.slane %v1682, 6
    %v1694 = vrot.slane %v1639, 7
    %v1695 = vrot.slane %v1641, 7
    %v1696 = vrot.slane %v1680, 7
    %v1697 = vrot.slane %v1682, 7
    %v1706 = vadd.f32 %v1053, %v1690
    %v1707 = vadd.f32 %v1054, %v1691
    %v1708 = vadd.f32 %v1055, %v1692
    %v1709 = vadd.f32 %v1056, %v1693
    %v1710 = vadd.f32 %v1057, %v1694
    %v1711 = vadd.f32 %v1058, %v1695
    %v1712 = vadd.f32 %v1059, %v1696
    %v1713 = vadd.f32 %v1060, %v1697
    %v1714 = vxor.u32 %v1706, 2147483648
    %v1715 = vxor.u32 %v1710, 2147483648
    %v1716 = vmul.f32 %v1714, 1.442695
    %v1717 = vpow.pop %v1716
    %v1718 = vmul.f32 %v1715, 1.442695
    %v1719 = vpow.pop %v1718
    %v1720 = vadd.f32 %v1717, 1.0
    %v1721 = vadd.f32 %v1719, 1.0
    %v1722 = vrcp.pop %v1720
    %v1723 = vmul.f32 1.0, %v1722
    %v1724 = vrcp.pop %v1721
    %v1725 = vmul.f32 1.0, %v1724
    %v1726 = vxor.u32 %v1707, 2147483648
    %v1727 = vxor.u32 %v1711, 2147483648
    %v1728 = vmul.f32 %v1726, 1.442695
    %v1729 = vpow.pop %v1728
    %v1730 = vmul.f32 %v1727, 1.442695
    %v1731 = vpow.pop %v1730
    %v1732 = vadd.f32 %v1729, 1.0
    %v1733 = vadd.f32 %v1731, 1.0
    %v1734 = vrcp.pop %v1732
    %v1735 = vmul.f32 1.0, %v1734
    %v1736 = vrcp.pop %v1733
    %v1737 = vmul.f32 1.0, %v1736
    %v1738 = vtanh.pop %v1708
    %v1739 = vtanh.pop %v1712
    %v1740 = vxor.u32 %v1709, 2147483648
    %v1741 = vxor.u32 %v1713, 2147483648
    %v1742 = vmul.f32 %v1740, 1.442695
    %v1743 = vpow.pop %v1742
    %v1744 = vmul.f32 %v1741, 1.442695
    %v1745 = vpow.pop %v1744
    %v1746 = vadd.f32 %v1743, 1.0
    %v1747 = vadd.f32 %v1745, 1.0
    %v1748 = vrcp.pop %v1746
    %v1749 = vmul.f32 1.0, %v1748
    %v1750 = vrcp.pop %v1747
    %v1751 = vmul.f32 1.0, %v1750
    %v1754 = vrot.slane %v1576, 7
    %v1755 = vrot.slane %v1577, 7
    %v1758 = vmul.f32 %v1735, %v1754
    %v1759 = vmul.f32 %v1737, %v1755
    %v1760 = vmul.f32 %v1723, %v1738
    %v1761 = vmul.f32 %v1725, %v1739
    %v1762 = vadd.f32 %v1758, %v1760
    %v1763 = vadd.f32 %v1759, %v1761
    %v1764 = vtanh.pop %v1762
    %v1765 = vtanh.pop %v1763
    %v1766 = vmul.f32 %v1749, %v1764
    %v1767 = vmul.f32 %v1751, %v1765
    %vm1768 = vcmp.gt.f32.partialorder %v1244, 2.0
    %v1769 = vsel %vm1768, 1, 0
    %v1770 = vcvt.s32.f32 %v1769
    %1772 = vset.pattern.permute.xlu0 0
    %1773 = vperm.xlu0 %1772, %v1770
    %v1774 = vpop.permute.xlu0 %1773
    %v1775 = vrot.slane %v1774, 6
    %v1776 = vrot.slane %v1774, 7
    %v1779 = vmul.f32 %v1766, %v1775
    %v1780 = vmul.f32 %v1767, %v1776
    %v1781 = vpack.c.bf16 %v1766, %v1766
    %v1782 = vpack.c.bf16 %v1767, %v1767
    %v1785 = vunpack.c.l.b16 %v1781
    %v1786 = vunpack.c.l.b16 %v1782
    %v1787 = vrot.slane %v1785, 2
    %v1788 = vrot.slane %v1786, 1
    %v1789 = vsel %vm1418, %v1788, %v1787
    %v1790 = vpack.c.b16 %v1789, %v1789
    %1792 = vmatprep.subr.bf16.mxu0 %v1213
    %1793 = vmatpush1.bf16.msra.mxu0 %v1212
    %1794 = vmatprep.subr.bf16.mxu0 %v1217
    %1795 = vmatpush1.bf16.msra.mxu0 %v1216
    %1796 = vmatprep.subr.bf16.mxu0 %v1221
    %1797 = vmatpush1.bf16.msra.mxu0 %v1220
    %1798 = vmatprep.subr.bf16.mxu0 %v1225
    %1799 = vmatpush1.bf16.msra.mxu0 %v1224
    %1800 = vmatprep.subr.bf16.mxu0 %v1229
    %1801 = vmatpush1.bf16.msra.mxu0 %v1228
    %1802 = vmatprep.subr.bf16.mxu0 %v1233
    %1803 = vmatpush1.bf16.msra.mxu0 %v1232
    %1804 = vmatprep.subr.bf16.mxu0 %v1237
    %1805 = vmatpush1.bf16.msra.mxu0 %v1236
    %1806 = vmatprep.subr.bf16.mxu0 %v1241
    %1807 = vmatpush1.bf16.msra.mxu0 %v1240
    %1808 = vmatprep.subr.bf16.mxu0 0
    %1809 = vmatpush1.bf16.msra.mxu0 0
    %1810 = vmatprep.subr.bf16.mxu0 0
    %1811 = vmatpush1.bf16.msra.mxu0 0
    %1812 = vmatprep.subr.bf16.mxu0 0
    %1813 = vmatpush1.bf16.msra.mxu0 0
    %1814 = vmatprep.subr.bf16.mxu0 0
    %1815 = vmatpush1.bf16.msra.mxu0 0
    %1816 = vmatprep.subr.bf16.mxu0 0
    %1817 = vmatpush1.bf16.msra.mxu0 0
    %1818 = vmatprep.subr.bf16.mxu0 0
    %1819 = vmatpush1.bf16.msra.mxu0 0
    %1820 = vmatprep.subr.bf16.mxu0 0
    %1821 = vmatpush1.bf16.msra.mxu0 0
    %1822 = vmatprep.subr.bf16.mxu0 0
    %1823 = vmatpush1.bf16.msra.mxu0 0
    %1824 = vmatprep.mubr.bf16.mxu0 0
    %1825 = vmatmul.mubr.bf16.gmra.mrb[0].mxu0 %v1790
    %v1826 = vpop.f32.mrb[0].mxu0
    %v1827 = vadd.f32 0.0, %v1826
    %v1828 = vpop.f32.mrb[0].mxu0
    %v1829 = vadd.f32 0.0, %v1828
    %v1830 = vpop.f32.mrb[0].mxu0
    %v1831 = vpop.f32.mrb[0].mxu0
    %1832 = vdwg.mxu0
    %1833 = vmatprep.subr.bf16.mxu0 %v1215
    %1834 = vmatpush1.bf16.msra.mxu0 %v1214
    %1835 = vmatprep.subr.bf16.mxu0 %v1219
    %1836 = vmatpush1.bf16.msra.mxu0 %v1218
    %1837 = vmatprep.subr.bf16.mxu0 %v1223
    %1838 = vmatpush1.bf16.msra.mxu0 %v1222
    %1839 = vmatprep.subr.bf16.mxu0 %v1227
    %1840 = vmatpush1.bf16.msra.mxu0 %v1226
    %1841 = vmatprep.subr.bf16.mxu0 %v1231
    %1842 = vmatpush1.bf16.msra.mxu0 %v1230
    %1843 = vmatprep.subr.bf16.mxu0 %v1235
    %1844 = vmatpush1.bf16.msra.mxu0 %v1234
    %1845 = vmatprep.subr.bf16.mxu0 %v1239
    %1846 = vmatpush1.bf16.msra.mxu0 %v1238
    %1847 = vmatprep.subr.bf16.mxu0 %v1243
    %1848 = vmatpush1.bf16.msra.mxu0 %v1242
    %1849 = vmatprep.subr.bf16.mxu0 0
    %1850 = vmatpush1.bf16.msra.mxu0 0
    %1851 = vmatprep.subr.bf16.mxu0 0
    %1852 = vmatpush1.bf16.msra.mxu0 0
    %1853 = vmatprep.subr.bf16.mxu0 0
    %1854 = vmatpush1.bf16.msra.mxu0 0
    %1855 = vmatprep.subr.bf16.mxu0 0
    %1856 = vmatpush1.bf16.msra.mxu0 0
    %1857 = vmatprep.subr.bf16.mxu0 0
    %1858 = vmatpush1.bf16.msra.mxu0 0
    %1859 = vmatprep.subr.bf16.mxu0 0
    %1860 = vmatpush1.bf16.msra.mxu0 0
    %1861 = vmatprep.subr.bf16.mxu0 0
    %1862 = vmatpush1.bf16.msra.mxu0 0
    %1863 = vmatprep.subr.bf16.mxu0 0
    %1864 = vmatpush1.bf16.msra.mxu0 0
    %1865 = vmatprep.mubr.bf16.mxu0 0
    %1866 = vmatmul.mubr.bf16.gmra.mrb[0].mxu0 %v1790
    %v1867 = vpop.f32.mrb[0].mxu0
    %v1868 = vadd.f32 0.0, %v1867
    %v1869 = vpop.f32.mrb[0].mxu0
    %v1870 = vadd.f32 0.0, %v1869
    %v1871 = vpop.f32.mrb[0].mxu0
    %v1872 = vpop.f32.mrb[0].mxu0
    %1873 = vdwg.mxu0
    %v1878 = vrot.slane %v1827, 5
    %v1879 = vrot.slane %v1829, 5
    %v1880 = vrot.slane %v1868, 5
    %v1881 = vrot.slane %v1870, 5
    %v1882 = vrot.slane %v1827, 6
    %v1883 = vrot.slane %v1829, 6
    %v1884 = vrot.slane %v1868, 6
    %v1885 = vrot.slane %v1870, 6
    %v1894 = vadd.f32 %v1053, %v1878
    %v1895 = vadd.f32 %v1054, %v1879
    %v1896 = vadd.f32 %v1055, %v1880
    %v1897 = vadd.f32 %v1056, %v1881
    %v1898 = vadd.f32 %v1057, %v1882
    %v1899 = vadd.f32 %v1058, %v1883
    %v1900 = vadd.f32 %v1059, %v1884
    %v1901 = vadd.f32 %v1060, %v1885
    %v1902 = vxor.u32 %v1894, 2147483648
    %v1903 = vxor.u32 %v1898, 2147483648
    %v1904 = vmul.f32 %v1902, 1.442695
    %v1905 = vpow.pop %v1904
    %v1906 = vmul.f32 %v1903, 1.442695
    %v1907 = vpow.pop %v1906
    %v1908 = vadd.f32 %v1905, 1.0
    %v1909 = vadd.f32 %v1907, 1.0
    %v1910 = vrcp.pop %v1908
    %v1911 = vmul.f32 1.0, %v1910
    %v1912 = vrcp.pop %v1909
    %v1913 = vmul.f32 1.0, %v1912
    %v1914 = vxor.u32 %v1895, 2147483648
    %v1915 = vxor.u32 %v1899, 2147483648
    %v1916 = vmul.f32 %v1914, 1.442695
    %v1917 = vpow.pop %v1916
    %v1918 = vmul.f32 %v1915, 1.442695
    %v1919 = vpow.pop %v1918
    %v1920 = vadd.f32 %v1917, 1.0
    %v1921 = vadd.f32 %v1919, 1.0
    %v1922 = vrcp.pop %v1920
    %v1923 = vmul.f32 1.0, %v1922
    %v1924 = vrcp.pop %v1921
    %v1925 = vmul.f32 1.0, %v1924
    %v1926 = vtanh.pop %v1896
    %v1927 = vtanh.pop %v1900
    %v1928 = vxor.u32 %v1897, 2147483648
    %v1929 = vxor.u32 %v1901, 2147483648
    %v1930 = vmul.f32 %v1928, 1.442695
    %v1931 = vpow.pop %v1930
    %v1932 = vmul.f32 %v1929, 1.442695
    %v1933 = vpow.pop %v1932
    %v1934 = vadd.f32 %v1931, 1.0
    %v1935 = vadd.f32 %v1933, 1.0
    %v1936 = vrcp.pop %v1934
    %v1937 = vmul.f32 1.0, %v1936
    %v1938 = vrcp.pop %v1935
    %v1939 = vmul.f32 1.0, %v1938
    %v1942 = vrot.slane %v1762, 7
    %v1943 = vrot.slane %v1763, 7
    %v1946 = vmul.f32 %v1923, %v1942
    %v1947 = vmul.f32 %v1925, %v1943
    %v1948 = vmul.f32 %v1911, %v1926
    %v1949 = vmul.f32 %v1913, %v1927
    %v1950 = vadd.f32 %v1946, %v1948
    %v1951 = vadd.f32 %v1947, %v1949
    %v1952 = vtanh.pop %v1950
    %v1953 = vtanh.pop %v1951
    %v1954 = vmul.f32 %v1937, %v1952
    %v1955 = vmul.f32 %v1939, %v1953
    %vm1956 = vcmp.gt.f32.partialorder %v1244, 3.0
    %v1957 = vsel %vm1956, 1, 0
    %v1958 = vcvt.s32.f32 %v1957
    %1960 = vset.pattern.permute.xlu0 0
    %1961 = vperm.xlu0 %1960, %v1958
    %v1962 = vpop.permute.xlu0 %1961
    %v1963 = vrot.slane %v1962, 5
    %v1964 = vrot.slane %v1962, 6
    %v1967 = vmul.f32 %v1954, %v1963
    %v1968 = vmul.f32 %v1955, %v1964
    %v1969 = vpack.c.bf16 %v1954, %v1954
    %v1970 = vpack.c.bf16 %v1955, %v1955
    %v1973 = vunpack.c.l.b16 %v1969
    %v1974 = vunpack.c.l.b16 %v1970
    %v1975 = vrot.slane %v1973, 3
    %v1976 = vrot.slane %v1974, 2
    %v1977 = vsel %vm1418, %v1976, %v1975
    %v1978 = vpack.c.b16 %v1977, %v1977
    %1980 = vmatprep.subr.bf16.mxu0 %v1213
    %1981 = vmatpush1.bf16.msra.mxu0 %v1212
    %1982 = vmatprep.subr.bf16.mxu0 %v1217
    %1983 = vmatpush1.bf16.msra.mxu0 %v1216
    %1984 = vmatprep.subr.bf16.mxu0 %v1221
    %1985 = vmatpush1.bf16.msra.mxu0 %v1220
    %1986 = vmatprep.subr.bf16.mxu0 %v1225
    %1987 = vmatpush1.bf16.msra.mxu0 %v1224
    %1988 = vmatprep.subr.bf16.mxu0 %v1229
    %1989 = vmatpush1.bf16.msra.mxu0 %v1228
    %1990 = vmatprep.subr.bf16.mxu0 %v1233
    %1991 = vmatpush1.bf16.msra.mxu0 %v1232
    %1992 = vmatprep.subr.bf16.mxu0 %v1237
    %1993 = vmatpush1.bf16.msra.mxu0 %v1236
    %1994 = vmatprep.subr.bf16.mxu0 %v1241
    %1995 = vmatpush1.bf16.msra.mxu0 %v1240
    %1996 = vmatprep.subr.bf16.mxu0 0
    %1997 = vmatpush1.bf16.msra.mxu0 0
    %1998 = vmatprep.subr.bf16.mxu0 0
    %1999 = vmatpush1.bf16.msra.mxu0 0
    %2000 = vmatprep.subr.bf16.mxu0 0
    %2001 = vmatpush1.bf16.msra.mxu0 0
    %2002 = vmatprep.subr.bf16.mxu0 0
    %2003 = vmatpush1.bf16.msra.mxu0 0
    %2004 = vmatprep.subr.bf16.mxu0 0
    %2005 = vmatpush1.bf16.msra.mxu0 0
    %2006 = vmatprep.subr.bf16.mxu0 0
    %2007 = vmatpush1.bf16.msra.mxu0 0
    %2008 = vmatprep.subr.bf16.mxu0 0
    %2009 = vmatpush1.bf16.msra.mxu0 0
    %2010 = vmatprep.subr.bf16.mxu0 0
    %2011 = vmatpush1.bf16.msra.mxu0 0
    %2012 = vmatprep.mubr.bf16.mxu0 0
    %2013 = vmatmul.mubr.bf16.gmra.mrb[0].mxu0 %v1978
    %v2014 = vpop.f32.mrb[0].mxu0
    %v2015 = vadd.f32 0.0, %v2014
    %v2016 = vpop.f32.mrb[0].mxu0
    %v2017 = vadd.f32 0.0, %v2016
    %v2018 = vpop.f32.mrb[0].mxu0
    %v2019 = vpop.f32.mrb[0].mxu0
    %2020 = vdwg.mxu0
    %2021 = vmatprep.subr.bf16.mxu0 %v1215
    %2022 = vmatpush1.bf16.msra.mxu0 %v1214
    %2023 = vmatprep.subr.bf16.mxu0 %v1219
    %2024 = vmatpush1.bf16.msra.mxu0 %v1218
    %2025 = vmatprep.subr.bf16.mxu0 %v1223
    %2026 = vmatpush1.bf16.msra.mxu0 %v1222
    %2027 = vmatprep.subr.bf16.mxu0 %v1227
    %2028 = vmatpush1.bf16.msra.mxu0 %v1226
    %2029 = vmatprep.subr.bf16.mxu0 %v1231
    %2030 = vmatpush1.bf16.msra.mxu0 %v1230
    %2031 = vmatprep.subr.bf16.mxu0 %v1235
    %2032 = vmatpush1.bf16.msra.mxu0 %v1234
    %2033 = vmatprep.subr.bf16.mxu0 %v1239
    %2034 = vmatpush1.bf16.msra.mxu0 %v1238
    %2035 = vmatprep.subr.bf16.mxu0 %v1243
    %2036 = vmatpush1.bf16.msra.mxu0 %v1242
    %2037 = vmatprep.subr.bf16.mxu0 0
    %2038 = vmatpush1.bf16.msra.mxu0 0
    %2039 = vmatprep.subr.bf16.mxu0 0
    %2040 = vmatpush1.bf16.msra.mxu0 0
    %2041 = vmatprep.subr.bf16.mxu0 0
    %2042 = vmatpush1.bf16.msra.mxu0 0
    %2043 = vmatprep.subr.bf16.mxu0 0
    %2044 = vmatpush1.bf16.msra.mxu0 0
    %2045 = vmatprep.subr.bf16.mxu0 0
    %2046 = vmatpush1.bf16.msra.mxu0 0
    %2047 = vmatprep.subr.bf16.mxu0 0
    %2048 = vmatpush1.bf16.msra.mxu0 0
    %2049 = vmatprep.subr.bf16.mxu0 0
    %2050 = vmatpush1.bf16.msra.mxu0 0
    %2051 = vmatprep.subr.bf16.mxu0 0
    %2052 = vmatpush1.bf16.msra.mxu0 0
    %2053 = vmatprep.mubr.bf16.mxu0 0
    %2054 = vmatmul.mubr.bf16.gmra.mrb[0].mxu0 %v1978
    %v2055 = vpop.f32.mrb[0].mxu0
    %v2056 = vadd.f32 0.0, %v2055
    %v2057 = vpop.f32.mrb[0].mxu0
    %v2058 = vadd.f32 0.0, %v2057
    %v2059 = vpop.f32.mrb[0].mxu0
    %v2060 = vpop.f32.mrb[0].mxu0
    %2061 = vdwg.mxu0
    %v2066 = vrot.slane %v2015, 4
    %v2067 = vrot.slane %v2017, 4
    %v2068 = vrot.slane %v2056, 4
    %v2069 = vrot.slane %v2058, 4
    %v2070 = vrot.slane %v2015, 5
    %v2071 = vrot.slane %v2017, 5
    %v2072 = vrot.slane %v2056, 5
    %v2073 = vrot.slane %v2058, 5
    %v2082 = vadd.f32 %v1053, %v2066
    %v2083 = vadd.f32 %v1054, %v2067
    %v2084 = vadd.f32 %v1055, %v2068
    %v2085 = vadd.f32 %v1056, %v2069
    %v2086 = vadd.f32 %v1057, %v2070
    %v2087 = vadd.f32 %v1058, %v2071
    %v2088 = vadd.f32 %v1059, %v2072
    %v2089 = vadd.f32 %v1060, %v2073
    %v2090 = vxor.u32 %v2082, 2147483648
    %v2091 = vxor.u32 %v2086, 2147483648
    %v2092 = vmul.f32 %v2090, 1.442695
    %v2093 = vpow.pop %v2092
    %v2094 = vmul.f32 %v2091, 1.442695
    %v2095 = vpow.pop %v2094
    %v2096 = vadd.f32 %v2093, 1.0
    %v2097 = vadd.f32 %v2095, 1.0
    %v2098 = vrcp.pop %v2096
    %v2099 = vmul.f32 1.0, %v2098
    %v2100 = vrcp.pop %v2097
    %v2101 = vmul.f32 1.0, %v2100
    %v2102 = vxor.u32 %v2083, 2147483648
    %v2103 = vxor.u32 %v2087, 2147483648
    %v2104 = vmul.f32 %v2102, 1.442695
    %v2105 = vpow.pop %v2104
    %v2106 = vmul.f32 %v2103, 1.442695
    %v2107 = vpow.pop %v2106
    %v2108 = vadd.f32 %v2105, 1.0
    %v2109 = vadd.f32 %v2107, 1.0
    %v2110 = vrcp.pop %v2108
    %v2111 = vmul.f32 1.0, %v2110
    %v2112 = vrcp.pop %v2109
    %v2113 = vmul.f32 1.0, %v2112
    %v2114 = vtanh.pop %v2084
    %v2115 = vtanh.pop %v2088
    %v2116 = vxor.u32 %v2085, 2147483648
    %v2117 = vxor.u32 %v2089, 2147483648
    %v2118 = vmul.f32 %v2116, 1.442695
    %v2119 = vpow.pop %v2118
    %v2120 = vmul.f32 %v2117, 1.442695
    %v2121 = vpow.pop %v2120
    %v2122 = vadd.f32 %v2119, 1.0
    %v2123 = vadd.f32 %v2121, 1.0
    %v2124 = vrcp.pop %v2122
    %v2125 = vmul.f32 1.0, %v2124
    %v2126 = vrcp.pop %v2123
    %v2127 = vmul.f32 1.0, %v2126
    %v2130 = vrot.slane %v1950, 7
    %v2131 = vrot.slane %v1951, 7
    %v2134 = vmul.f32 %v2111, %v2130
    %v2135 = vmul.f32 %v2113, %v2131
    %v2136 = vmul.f32 %v2099, %v2114
    %v2137 = vmul.f32 %v2101, %v2115
    %v2138 = vadd.f32 %v2134, %v2136
    %v2139 = vadd.f32 %v2135, %v2137
    %v2140 = vtanh.pop %v2138
    %v2141 = vtanh.pop %v2139
    %v2142 = vmul.f32 %v2125, %v2140
    %v2143 = vmul.f32 %v2127, %v2141
    %vm2144 = vcmp.gt.f32.partialorder %v1244, 4.0
    %v2145 = vsel %vm2144, 1, 0
    %v2146 = vcvt.s32.f32 %v2145
    %2148 = vset.pattern.permute.xlu0 0
    %2149 = vperm.xlu0 %2148, %v2146
    %v2150 = vpop.permute.xlu0 %2149
    %v2151 = vrot.slane %v2150, 4
    %v2152 = vrot.slane %v2150, 5
    %v2155 = vmul.f32 %v2142, %v2151
    %v2156 = vmul.f32 %v2143, %v2152
    %v2157 = vpack.c.bf16 %v2142, %v2142
    %v2158 = vpack.c.bf16 %v2143, %v2143
    %v2161 = vunpack.c.l.b16 %v2157
    %v2162 = vunpack.c.l.b16 %v2158
    %v2163 = vrot.slane %v2161, 4
    %v2164 = vrot.slane %v2162, 3
    %v2165 = vsel %vm1418, %v2164, %v2163
    %v2166 = vpack.c.b16 %v2165, %v2165
    %2168 = vmatprep.subr.bf16.mxu0 %v1213
    %2169 = vmatpush1.bf16.msra.mxu0 %v1212
    %2170 = vmatprep.subr.bf16.mxu0 %v1217
    %2171 = vmatpush1.bf16.msra.mxu0 %v1216
    %2172 = vmatprep.subr.bf16.mxu0 %v1221
    %2173 = vmatpush1.bf16.msra.mxu0 %v1220
    %2174 = vmatprep.subr.bf16.mxu0 %v1225
    %2175 = vmatpush1.bf16.msra.mxu0 %v1224
    %2176 = vmatprep.subr.bf16.mxu0 %v1229
    %2177 = vmatpush1.bf16.msra.mxu0 %v1228
    %2178 = vmatprep.subr.bf16.mxu0 %v1233
    %2179 = vmatpush1.bf16.msra.mxu0 %v1232
    %2180 = vmatprep.subr.bf16.mxu0 %v1237
    %2181 = vmatpush1.bf16.msra.mxu0 %v1236
    %2182 = vmatprep.subr.bf16.mxu0 %v1241
    %2183 = vmatpush1.bf16.msra.mxu0 %v1240
    %2184 = vmatprep.subr.bf16.mxu0 0
    %2185 = vmatpush1.bf16.msra.mxu0 0
    %2186 = vmatprep.subr.bf16.mxu0 0
    %2187 = vmatpush1.bf16.msra.mxu0 0
    %2188 = vmatprep.subr.bf16.mxu0 0
    %2189 = vmatpush1.bf16.msra.mxu0 0
    %2190 = vmatprep.subr.bf16.mxu0 0
    %2191 = vmatpush1.bf16.msra.mxu0 0
    %2192 = vmatprep.subr.bf16.mxu0 0
    %2193 = vmatpush1.bf16.msra.mxu0 0
    %2194 = vmatprep.subr.bf16.mxu0 0
    %2195 = vmatpush1.bf16.msra.mxu0 0
    %2196 = vmatprep.subr.bf16.mxu0 0
    %2197 = vmatpush1.bf16.msra.mxu0 0
    %2198 = vmatprep.subr.bf16.mxu0 0
    %2199 = vmatpush1.bf16.msra.mxu0 0
    %2200 = vmatprep.mubr.bf16.mxu0 0
    %2201 = vmatmul.mubr.bf16.gmra.mrb[0].mxu0 %v2166
    %v2202 = vpop.f32.mrb[0].mxu0
    %v2203 = vadd.f32 0.0, %v2202
    %v2204 = vpop.f32.mrb[0].mxu0
    %v2205 = vadd.f32 0.0, %v2204
    %v2206 = vpop.f32.mrb[0].mxu0
    %v2207 = vpop.f32.mrb[0].mxu0
    %2208 = vdwg.mxu0
    %2209 = vmatprep.subr.bf16.mxu0 %v1215
    %2210 = vmatpush1.bf16.msra.mxu0 %v1214
    %2211 = vmatprep.subr.bf16.mxu0 %v1219
    %2212 = vmatpush1.bf16.msra.mxu0 %v1218
    %2213 = vmatprep.subr.bf16.mxu0 %v1223
    %2214 = vmatpush1.bf16.msra.mxu0 %v1222
    %2215 = vmatprep.subr.bf16.mxu0 %v1227
    %2216 = vmatpush1.bf16.msra.mxu0 %v1226
    %2217 = vmatprep.subr.bf16.mxu0 %v1231
    %2218 = vmatpush1.bf16.msra.mxu0 %v1230
    %2219 = vmatprep.subr.bf16.mxu0 %v1235
    %2220 = vmatpush1.bf16.msra.mxu0 %v1234
    %2221 = vmatprep.subr.bf16.mxu0 %v1239
    %2222 = vmatpush1.bf16.msra.mxu0 %v1238
    %2223 = vmatprep.subr.bf16.mxu0 %v1243
    %2224 = vmatpush1.bf16.msra.mxu0 %v1242
    %2225 = vmatprep.subr.bf16.mxu0 0
    %2226 = vmatpush1.bf16.msra.mxu0 0
    %2227 = vmatprep.subr.bf16.mxu0 0
    %2228 = vmatpush1.bf16.msra.mxu0 0
    %2229 = vmatprep.subr.bf16.mxu0 0
    %2230 = vmatpush1.bf16.msra.mxu0 0
    %2231 = vmatprep.subr.bf16.mxu0 0
    %2232 = vmatpush1.bf16.msra.mxu0 0
    %2233 = vmatprep.subr.bf16.mxu0 0
    %2234 = vmatpush1.bf16.msra.mxu0 0
    %2235 = vmatprep.subr.bf16.mxu0 0
    %2236 = vmatpush1.bf16.msra.mxu0 0
    %2237 = vmatprep.subr.bf16.mxu0 0
    %2238 = vmatpush1.bf16.msra.mxu0 0
    %2239 = vmatprep.subr.bf16.mxu0 0
    %2240 = vmatpush1.bf16.msra.mxu0 0
    %2241 = vmatprep.mubr.bf16.mxu0 0
    %2242 = vmatmul.mubr.bf16.gmra.mrb[0].mxu0 %v2166
    %v2243 = vpop.f32.mrb[0].mxu0
    %v2244 = vadd.f32 0.0, %v2243
    %v2245 = vpop.f32.mrb[0].mxu0
    %v2246 = vadd.f32 0.0, %v2245
    %v2247 = vpop.f32.mrb[0].mxu0
    %v2248 = vpop.f32.mrb[0].mxu0
    %2249 = vdwg.mxu0
    %v2254 = vrot.slane %v2203, 3
    %v2255 = vrot.slane %v2205, 3
    %v2256 = vrot.slane %v2244, 3
    %v2257 = vrot.slane %v2246, 3
    %v2258 = vrot.slane %v2203, 4
    %v2259 = vrot.slane %v2205, 4
    %v2260 = vrot.slane %v2244, 4
    %v2261 = vrot.slane %v2246, 4
    %v2270 = vadd.f32 %v1053, %v2254
    %v2271 = vadd.f32 %v1054, %v2255
    %v2272 = vadd.f32 %v1055, %v2256
    %v2273 = vadd.f32 %v1056, %v2257
    %v2274 = vadd.f32 %v1057, %v2258
    %v2275 = vadd.f32 %v1058, %v2259
    %v2276 = vadd.f32 %v1059, %v2260
    %v2277 = vadd.f32 %v1060, %v2261
    %v2278 = vxor.u32 %v2270, 2147483648
    %v2279 = vxor.u32 %v2274, 2147483648
    %v2280 = vmul.f32 %v2278, 1.442695
    %v2281 = vpow.pop %v2280
    %v2282 = vmul.f32 %v2279, 1.442695
    %v2283 = vpow.pop %v2282
    %v2284 = vadd.f32 %v2281, 1.0
    %v2285 = vadd.f32 %v2283, 1.0
    %v2286 = vrcp.pop %v2284
    %v2287 = vmul.f32 1.0, %v2286
    %v2288 = vrcp.pop %v2285
    %v2289 = vmul.f32 1.0, %v2288
    %v2290 = vxor.u32 %v2271, 2147483648
    %v2291 = vxor.u32 %v2275, 2147483648
    %v2292 = vmul.f32 %v2290, 1.442695
    %v2293 = vpow.pop %v2292
    %v2294 = vmul.f32 %v2291, 1.442695
    %v2295 = vpow.pop %v2294
    %v2296 = vadd.f32 %v2293, 1.0
    %v2297 = vadd.f32 %v2295, 1.0
    %v2298 = vrcp.pop %v2296
    %v2299 = vmul.f32 1.0, %v2298
    %v2300 = vrcp.pop %v2297
    %v2301 = vmul.f32 1.0, %v2300
    %v2302 = vtanh.pop %v2272
    %v2303 = vtanh.pop %v2276
    %v2304 = vxor.u32 %v2273, 2147483648
    %v2305 = vxor.u32 %v2277, 2147483648
    %v2306 = vmul.f32 %v2304, 1.442695
    %v2307 = vpow.pop %v2306
    %v2308 = vmul.f32 %v2305, 1.442695
    %v2309 = vpow.pop %v2308
    %v2310 = vadd.f32 %v2307, 1.0
    %v2311 = vadd.f32 %v2309, 1.0
    %v2312 = vrcp.pop %v2310
    %v2313 = vmul.f32 1.0, %v2312
    %v2314 = vrcp.pop %v2311
    %v2315 = vmul.f32 1.0, %v2314
    %v2318 = vrot.slane %v2138, 7
    %v2319 = vrot.slane %v2139, 7
    %v2322 = vmul.f32 %v2299, %v2318
    %v2323 = vmul.f32 %v2301, %v2319
    %v2324 = vmul.f32 %v2287, %v2302
    %v2325 = vmul.f32 %v2289, %v2303
    %v2326 = vadd.f32 %v2322, %v2324
    %v2327 = vadd.f32 %v2323, %v2325
    %v2328 = vtanh.pop %v2326
    %v2329 = vtanh.pop %v2327
    %v2330 = vmul.f32 %v2313, %v2328
    %v2331 = vmul.f32 %v2315, %v2329
    %vm2332 = vcmp.gt.f32.partialorder %v1244, 5.0
    %v2333 = vsel %vm2332, 1, 0
    %v2334 = vcvt.s32.f32 %v2333
    %2336 = vset.pattern.permute.xlu0 0
    %2337 = vperm.xlu0 %2336, %v2334
    %v2338 = vpop.permute.xlu0 %2337
    %v2339 = vrot.slane %v2338, 3
    %v2340 = vrot.slane %v2338, 4
    %v2343 = vmul.f32 %v2330, %v2339
    %v2344 = vmul.f32 %v2331, %v2340
    %v2345 = vpack.c.bf16 %v2330, %v2330
    %v2346 = vpack.c.bf16 %v2331, %v2331
    %v2349 = vunpack.c.l.b16 %v2345
    %v2350 = vunpack.c.l.b16 %v2346
    %v2351 = vrot.slane %v2349, 5
    %v2352 = vrot.slane %v2350, 4
    %v2353 = vsel %vm1418, %v2352, %v2351
    %v2354 = vpack.c.b16 %v2353, %v2353
    %2356 = vmatprep.subr.bf16.mxu0 %v1213
    %2357 = vmatpush1.bf16.msra.mxu0 %v1212
    %2358 = vmatprep.subr.bf16.mxu0 %v1217
    %2359 = vmatpush1.bf16.msra.mxu0 %v1216
    %2360 = vmatprep.subr.bf16.mxu0 %v1221
    %2361 = vmatpush1.bf16.msra.mxu0 %v1220
    %2362 = vmatprep.subr.bf16.mxu0 %v1225
    %2363 = vmatpush1.bf16.msra.mxu0 %v1224
    %2364 = vmatprep.subr.bf16.mxu0 %v1229
    %2365 = vmatpush1.bf16.msra.mxu0 %v1228
    %2366 = vmatprep.subr.bf16.mxu0 %v1233
    %2367 = vmatpush1.bf16.msra.mxu0 %v1232
    %2368 = vmatprep.subr.bf16.mxu0 %v1237
    %2369 = vmatpush1.bf16.msra.mxu0 %v1236
    %2370 = vmatprep.subr.bf16.mxu0 %v1241
    %2371 = vmatpush1.bf16.msra.mxu0 %v1240
    %2372 = vmatprep.subr.bf16.mxu0 0
    %2373 = vmatpush1.bf16.msra.mxu0 0
    %2374 = vmatprep.subr.bf16.mxu0 0
    %2375 = vmatpush1.bf16.msra.mxu0 0
    %2376 = vmatprep.subr.bf16.mxu0 0
    %2377 = vmatpush1.bf16.msra.mxu0 0
    %2378 = vmatprep.subr.bf16.mxu0 0
    %2379 = vmatpush1.bf16.msra.mxu0 0
    %2380 = vmatprep.subr.bf16.mxu0 0
    %2381 = vmatpush1.bf16.msra.mxu0 0
    %2382 = vmatprep.subr.bf16.mxu0 0
    %2383 = vmatpush1.bf16.msra.mxu0 0
    %2384 = vmatprep.subr.bf16.mxu0 0
    %2385 = vmatpush1.bf16.msra.mxu0 0
    %2386 = vmatprep.subr.bf16.mxu0 0
    %2387 = vmatpush1.bf16.msra.mxu0 0
    %2388 = vmatprep.mubr.bf16.mxu0 0
    %2389 = vmatmul.mubr.bf16.gmra.mrb[0].mxu0 %v2354
    %v2390 = vpop.f32.mrb[0].mxu0
    %v2391 = vadd.f32 0.0, %v2390
    %v2392 = vpop.f32.mrb[0].mxu0
    %v2393 = vadd.f32 0.0, %v2392
    %v2394 = vpop.f32.mrb[0].mxu0
    %v2395 = vpop.f32.mrb[0].mxu0
    %2396 = vdwg.mxu0
    %2397 = vmatprep.subr.bf16.mxu0 %v1215
    %2398 = vmatpush1.bf16.msra.mxu0 %v1214
    %2399 = vmatprep.subr.bf16.mxu0 %v1219
    %2400 = vmatpush1.bf16.msra.mxu0 %v1218
    %2401 = vmatprep.subr.bf16.mxu0 %v1223
    %2402 = vmatpush1.bf16.msra.mxu0 %v1222
    %2403 = vmatprep.subr.bf16.mxu0 %v1227
    %2404 = vmatpush1.bf16.msra.mxu0 %v1226
    %2405 = vmatprep.subr.bf16.mxu0 %v1231
    %2406 = vmatpush1.bf16.msra.mxu0 %v1230
    %2407 = vmatprep.subr.bf16.mxu0 %v1235
    %2408 = vmatpush1.bf16.msra.mxu0 %v1234
    %2409 = vmatprep.subr.bf16.mxu0 %v1239
    %2410 = vmatpush1.bf16.msra.mxu0 %v1238
    %2411 = vmatprep.subr.bf16.mxu0 %v1243
    %2412 = vmatpush1.bf16.msra.mxu0 %v1242
    %2413 = vmatprep.subr.bf16.mxu0 0
    %2414 = vmatpush1.bf16.msra.mxu0 0
    %2415 = vmatprep.subr.bf16.mxu0 0
    %2416 = vmatpush1.bf16.msra.mxu0 0
    %2417 = vmatprep.subr.bf16.mxu0 0
    %2418 = vmatpush1.bf16.msra.mxu0 0
    %2419 = vmatprep.subr.bf16.mxu0 0
    %2420 = vmatpush1.bf16.msra.mxu0 0
    %2421 = vmatprep.subr.bf16.mxu0 0
    %2422 = vmatpush1.bf16.msra.mxu0 0
    %2423 = vmatprep.subr.bf16.mxu0 0
    %2424 = vmatpush1.bf16.msra.mxu0 0
    %2425 = vmatprep.subr.bf16.mxu0 0
    %2426 = vmatpush1.bf16.msra.mxu0 0
    %2427 = vmatprep.subr.bf16.mxu0 0
    %2428 = vmatpush1.bf16.msra.mxu0 0
    %2429 = vmatprep.mubr.bf16.mxu0 0
    %2430 = vmatmul.mubr.bf16.gmra.mrb[0].mxu0 %v2354
    %v2431 = vpop.f32.mrb[0].mxu0
    %v2432 = vadd.f32 0.0, %v2431
    %v2433 = vpop.f32.mrb[0].mxu0
    %v2434 = vadd.f32 0.0, %v2433
    %v2435 = vpop.f32.mrb[0].mxu0
    %v2436 = vpop.f32.mrb[0].mxu0
    %2437 = vdwg.mxu0
    %v2442 = vrot.slane %v2391, 2
    %v2443 = vrot.slane %v2393, 2
    %v2444 = vrot.slane %v2432, 2
    %v2445 = vrot.slane %v2434, 2
    %v2446 = vrot.slane %v2391, 3
    %v2447 = vrot.slane %v2393, 3
    %v2448 = vrot.slane %v2432, 3
    %v2449 = vrot.slane %v2434, 3
    %v2458 = vadd.f32 %v1053, %v2442
    %v2459 = vadd.f32 %v1054, %v2443
    %v2460 = vadd.f32 %v1055, %v2444
    %v2461 = vadd.f32 %v1056, %v2445
    %v2462 = vadd.f32 %v1057, %v2446
    %v2463 = vadd.f32 %v1058, %v2447
    %v2464 = vadd.f32 %v1059, %v2448
    %v2465 = vadd.f32 %v1060, %v2449
    %v2466 = vxor.u32 %v2458, 2147483648
    %v2467 = vxor.u32 %v2462, 2147483648
    %v2468 = vmul.f32 %v2466, 1.442695
    %v2469 = vpow.pop %v2468
    %v2470 = vmul.f32 %v2467, 1.442695
    %v2471 = vpow.pop %v2470
    %v2472 = vadd.f32 %v2469, 1.0
    %v2473 = vadd.f32 %v2471, 1.0
    %v2474 = vrcp.pop %v2472
    %v2475 = vmul.f32 1.0, %v2474
    %v2476 = vrcp.pop %v2473
    %v2477 = vmul.f32 1.0, %v2476
    %v2478 = vxor.u32 %v2459, 2147483648
    %v2479 = vxor.u32 %v2463, 2147483648
    %v2480 = vmul.f32 %v2478, 1.442695
    %v2481 = vpow.pop %v2480
    %v2482 = vmul.f32 %v2479, 1.442695
    %v2483 = vpow.pop %v2482
    %v2484 = vadd.f32 %v2481, 1.0
    %v2485 = vadd.f32 %v2483, 1.0
    %v2486 = vrcp.pop %v2484
    %v2487 = vmul.f32 1.0, %v2486
    %v2488 = vrcp.pop %v2485
    %v2489 = vmul.f32 1.0, %v2488
    %v2490 = vtanh.pop %v2460
    %v2491 = vtanh.pop %v2464
    %v2492 = vxor.u32 %v2461, 2147483648
    %v2493 = vxor.u32 %v2465, 2147483648
    %v2494 = vmul.f32 %v2492, 1.442695
    %v2495 = vpow.pop %v2494
    %v2496 = vmul.f32 %v2493, 1.442695
    %v2497 = vpow.pop %v2496
    %v2498 = vadd.f32 %v2495, 1.0
    %v2499 = vadd.f32 %v2497, 1.0
    %v2500 = vrcp.pop %v2498
    %v2501 = vmul.f32 1.0, %v2500
    %v2502 = vrcp.pop %v2499
    %v2503 = vmul.f32 1.0, %v2502
    %v2506 = vrot.slane %v2326, 7
    %v2507 = vrot.slane %v2327, 7
    %v2510 = vmul.f32 %v2487, %v2506
    %v2511 = vmul.f32 %v2489, %v2507
    %v2512 = vmul.f32 %v2475, %v2490
    %v2513 = vmul.f32 %v2477, %v2491
    %v2514 = vadd.f32 %v2510, %v2512
    %v2515 = vadd.f32 %v2511, %v2513
    %v2516 = vtanh.pop %v2514
    %v2517 = vtanh.pop %v2515
    %v2518 = vmul.f32 %v2501, %v2516
    %v2519 = vmul.f32 %v2503, %v2517
    %vm2520 = vcmp.gt.f32.partialorder %v1244, 6.0
    %v2521 = vsel %vm2520, 1, 0
    %v2522 = vcvt.s32.f32 %v2521
    %2524 = vset.pattern.permute.xlu0 0
    %2525 = vperm.xlu0 %2524, %v2522
    %v2526 = vpop.permute.xlu0 %2525
    %v2527 = vrot.slane %v2526, 2
    %v2528 = vrot.slane %v2526, 3
    %v2531 = vmul.f32 %v2518, %v2527
    %v2532 = vmul.f32 %v2519, %v2528
    %v2533 = vpack.c.bf16 %v2518, %v2518
    %v2534 = vpack.c.bf16 %v2519, %v2519
    %v2537 = vunpack.c.l.b16 %v2533
    %v2538 = vunpack.c.l.b16 %v2534
    %v2539 = vrot.slane %v2537, 6
    %v2540 = vrot.slane %v2538, 5
    %v2541 = vsel %vm1418, %v2540, %v2539
    %v2542 = vpack.c.b16 %v2541, %v2541
    %2544 = vmatprep.subr.bf16.mxu0 %v1213
    %2545 = vmatpush1.bf16.msra.mxu0 %v1212
    %2546 = vmatprep.subr.bf16.mxu0 %v1217
    %2547 = vmatpush1.bf16.msra.mxu0 %v1216
    %2548 = vmatprep.subr.bf16.mxu0 %v1221
    %2549 = vmatpush1.bf16.msra.mxu0 %v1220
    %2550 = vmatprep.subr.bf16.mxu0 %v1225
    %2551 = vmatpush1.bf16.msra.mxu0 %v1224
    %2552 = vmatprep.subr.bf16.mxu0 %v1229
    %2553 = vmatpush1.bf16.msra.mxu0 %v1228
    %2554 = vmatprep.subr.bf16.mxu0 %v1233
    %2555 = vmatpush1.bf16.msra.mxu0 %v1232
    %2556 = vmatprep.subr.bf16.mxu0 %v1237
    %2557 = vmatpush1.bf16.msra.mxu0 %v1236
    %2558 = vmatprep.subr.bf16.mxu0 %v1241
    %2559 = vmatpush1.bf16.msra.mxu0 %v1240
    %2560 = vmatprep.subr.bf16.mxu0 0
    %2561 = vmatpush1.bf16.msra.mxu0 0
    %2562 = vmatprep.subr.bf16.mxu0 0
    %2563 = vmatpush1.bf16.msra.mxu0 0
    %2564 = vmatprep.subr.bf16.mxu0 0
    %2565 = vmatpush1.bf16.msra.mxu0 0
    %2566 = vmatprep.subr.bf16.mxu0 0
    %2567 = vmatpush1.bf16.msra.mxu0 0
    %2568 = vmatprep.subr.bf16.mxu0 0
    %2569 = vmatpush1.bf16.msra.mxu0 0
    %2570 = vmatprep.subr.bf16.mxu0 0
    %2571 = vmatpush1.bf16.msra.mxu0 0
    %2572 = vmatprep.subr.bf16.mxu0 0
    %2573 = vmatpush1.bf16.msra.mxu0 0
    %2574 = vmatprep.subr.bf16.mxu0 0
    %2575 = vmatpush1.bf16.msra.mxu0 0
    %2576 = vmatprep.mubr.bf16.mxu0 0
    %2577 = vmatmul.mubr.bf16.gmra.mrb[0].mxu0 %v2542
    %v2578 = vpop.f32.mrb[0].mxu0
    %v2579 = vadd.f32 0.0, %v2578
    %v2580 = vpop.f32.mrb[0].mxu0
    %v2581 = vadd.f32 0.0, %v2580
    %v2582 = vpop.f32.mrb[0].mxu0
    %v2583 = vpop.f32.mrb[0].mxu0
    %2584 = vdwg.mxu0
    %2585 = vmatprep.subr.bf16.mxu0 %v1215
    %2586 = vmatpush1.bf16.msra.mxu0 %v1214
    %2587 = vmatprep.subr.bf16.mxu0 %v1219
    %2588 = vmatpush1.bf16.msra.mxu0 %v1218
    %2589 = vmatprep.subr.bf16.mxu0 %v1223
    %2590 = vmatpush1.bf16.msra.mxu0 %v1222
    %2591 = vmatprep.subr.bf16.mxu0 %v1227
    %2592 = vmatpush1.bf16.msra.mxu0 %v1226
    %2593 = vmatprep.subr.bf16.mxu0 %v1231
    %2594 = vmatpush1.bf16.msra.mxu0 %v1230
    %2595 = vmatprep.subr.bf16.mxu0 %v1235
    %2596 = vmatpush1.bf16.msra.mxu0 %v1234
    %2597 = vmatprep.subr.bf16.mxu0 %v1239
    %2598 = vmatpush1.bf16.msra.mxu0 %v1238
    %2599 = vmatprep.subr.bf16.mxu0 %v1243
    %2600 = vmatpush1.bf16.msra.mxu0 %v1242
    %2601 = vmatprep.subr.bf16.mxu0 0
    %2602 = vmatpush1.bf16.msra.mxu0 0
    %2603 = vmatprep.subr.bf16.mxu0 0
    %2604 = vmatpush1.bf16.msra.mxu0 0
    %2605 = vmatprep.subr.bf16.mxu0 0
    %2606 = vmatpush1.bf16.msra.mxu0 0
    %2607 = vmatprep.subr.bf16.mxu0 0
    %2608 = vmatpush1.bf16.msra.mxu0 0
    %2609 = vmatprep.subr.bf16.mxu0 0
    %2610 = vmatpush1.bf16.msra.mxu0 0
    %2611 = vmatprep.subr.bf16.mxu0 0
    %2612 = vmatpush1.bf16.msra.mxu0 0
    %2613 = vmatprep.subr.bf16.mxu0 0
    %2614 = vmatpush1.bf16.msra.mxu0 0
    %2615 = vmatprep.subr.bf16.mxu0 0
    %2616 = vmatpush1.bf16.msra.mxu0 0
    %2617 = vmatprep.mubr.bf16.mxu0 0
    %2618 = vmatmul.mubr.bf16.gmra.mrb[0].mxu0 %v2542
    %v2619 = vpop.f32.mrb[0].mxu0
    %v2620 = vadd.f32 0.0, %v2619
    %v2621 = vpop.f32.mrb[0].mxu0
    %v2622 = vadd.f32 0.0, %v2621
    %v2623 = vpop.f32.mrb[0].mxu0
    %v2624 = vpop.f32.mrb[0].mxu0
    %2625 = vdwg.mxu0
    %v2630 = vrot.slane %v2579, 1
    %v2631 = vrot.slane %v2581, 1
    %v2632 = vrot.slane %v2620, 1
    %v2633 = vrot.slane %v2622, 1
    %v2634 = vrot.slane %v2579, 2
    %v2635 = vrot.slane %v2581, 2
    %v2636 = vrot.slane %v2620, 2
    %v2637 = vrot.slane %v2622, 2
    %v2646 = vadd.f32 %v1053, %v2630
    %v2647 = vadd.f32 %v1054, %v2631
    %v2648 = vadd.f32 %v1055, %v2632
    %v2649 = vadd.f32 %v1056, %v2633
    %v2650 = vadd.f32 %v1057, %v2634
    %v2651 = vadd.f32 %v1058, %v2635
    %v2652 = vadd.f32 %v1059, %v2636
    %v2653 = vadd.f32 %v1060, %v2637
    %v2654 = vxor.u32 %v2646, 2147483648
    %v2655 = vxor.u32 %v2650, 2147483648
    %v2656 = vmul.f32 %v2654, 1.442695
    %v2657 = vpow.pop %v2656
    %v2658 = vmul.f32 %v2655, 1.442695
    %v2659 = vpow.pop %v2658
    %v2660 = vadd.f32 %v2657, 1.0
    %v2661 = vadd.f32 %v2659, 1.0
    %v2662 = vrcp.pop %v2660
    %v2663 = vmul.f32 1.0, %v2662
    %v2664 = vrcp.pop %v2661
    %v2665 = vmul.f32 1.0, %v2664
    %v2666 = vxor.u32 %v2647, 2147483648
    %v2667 = vxor.u32 %v2651, 2147483648
    %v2668 = vmul.f32 %v2666, 1.442695
    %v2669 = vpow.pop %v2668
    %v2670 = vmul.f32 %v2667, 1.442695
    %v2671 = vpow.pop %v2670
    %v2672 = vadd.f32 %v2669, 1.0
    %v2673 = vadd.f32 %v2671, 1.0
    %v2674 = vrcp.pop %v2672
    %v2675 = vmul.f32 1.0, %v2674
    %v2676 = vrcp.pop %v2673
    %v2677 = vmul.f32 1.0, %v2676
    %v2678 = vtanh.pop %v2648
    %v2679 = vtanh.pop %v2652
    %v2680 = vxor.u32 %v2649, 2147483648
    %v2681 = vxor.u32 %v2653, 2147483648
    %v2682 = vmul.f32 %v2680, 1.442695
    %v2683 = vpow.pop %v2682
    %v2684 = vmul.f32 %v2681, 1.442695
    %v2685 = vpow.pop %v2684
    %v2686 = vadd.f32 %v2683, 1.0
    %v2687 = vadd.f32 %v2685, 1.0
    %v2688 = vrcp.pop %v2686
    %v2689 = vmul.f32 1.0, %v2688
    %v2690 = vrcp.pop %v2687
    %v2691 = vmul.f32 1.0, %v2690
    %v2694 = vrot.slane %v2514, 7
    %v2695 = vrot.slane %v2515, 7
    %v2698 = vmul.f32 %v2675, %v2694
    %v2699 = vmul.f32 %v2677, %v2695
    %v2700 = vmul.f32 %v2663, %v2678
    %v2701 = vmul.f32 %v2665, %v2679
    %v2702 = vadd.f32 %v2698, %v2700
    %v2703 = vadd.f32 %v2699, %v2701
    %v2704 = vtanh.pop %v2702
    %v2705 = vtanh.pop %v2703
    %v2706 = vmul.f32 %v2689, %v2704
    %v2707 = vmul.f32 %v2691, %v2705
    %vm2708 = vcmp.gt.f32.partialorder %v1244, 7.0
    %v2709 = vsel %vm2708, 1, 0
    %v2710 = vcvt.s32.f32 %v2709
    %2712 = vset.pattern.permute.xlu0 0
    %2713 = vperm.xlu0 %2712, %v2710
    %v2714 = vpop.permute.xlu0 %2713
    %v2715 = vrot.slane %v2714, 1
    %v2716 = vrot.slane %v2714, 2
    %v2719 = vmul.f32 %v2706, %v2715
    %v2720 = vmul.f32 %v2707, %v2716
    %2722 = vset.pattern.permute.xlu0 0
    %2723 = vperm.xlu0 %2722, %v1146
    %v2724 = vpop.permute.xlu0 %2723
    %2727 = vset.pattern.permute.xlu0 0
    %2728 = vperm.xlu0 %2727, %v1147
    %v2729 = vpop.permute.xlu0 %2728
    %v2731 = vmul.f32 %v2724, %v1409
    %v2732 = vmul.f32 %v2729, %v1410
    %v2733 = vmul.f32 %v2724, %v1592
    %v2734 = vmul.f32 %v2729, %v1593
    %2735 = vset.pattern.permute.xlu0 1
    %2736 = vperm.xlu0 %2735, %v1146
    %v2737 = vpop.permute.xlu0 %2736
    %2739 = vset.pattern.permute.xlu0 1
    %2740 = vperm.xlu0 %2739, %v1147
    %v2741 = vpop.permute.xlu0 %2740
    %v2745 = vrot.slane %v1409, 7
    %v2746 = vrot.slane %v1410, 7
    %v2749 = vmul.f32 %v2737, %v2745
    %v2750 = vmul.f32 %v2741, %v2746
    %v2751 = vadd.f32 %v2733, %v2749
    %v2752 = vadd.f32 %v2734, %v2750
    %v2753 = vmul.f32 %v2724, %v1779
    %v2754 = vmul.f32 %v2729, %v1780
    %v2757 = vrot.slane %v1592, 7
    %v2758 = vrot.slane %v1593, 7
    %v2761 = vmul.f32 %v2737, %v2757
    %v2762 = vmul.f32 %v2741, %v2758
    %v2763 = vadd.f32 %v2753, %v2761
    %v2764 = vadd.f32 %v2754, %v2762
    %2765 = vset.pattern.permute.xlu0 2
    %2766 = vperm.xlu0 %2765, %v1146
    %v2767 = vpop.permute.xlu0 %2766
    %2769 = vset.pattern.permute.xlu0 2
    %2770 = vperm.xlu0 %2769, %v1147
    %v2771 = vpop.permute.xlu0 %2770
    %v2773 = vrot.slane %v1409, 6
    %v2774 = vrot.slane %v1410, 6
    %v2777 = vmul.f32 %v2767, %v2773
    %v2778 = vmul.f32 %v2771, %v2774
    %v2779 = vadd.f32 %v2763, %v2777
    %v2780 = vadd.f32 %v2764, %v2778
    %v2781 = vmul.f32 %v2724, %v1967
    %v2782 = vmul.f32 %v2729, %v1968
    %v2785 = vrot.slane %v1779, 7
    %v2786 = vrot.slane %v1780, 7
    %v2789 = vmul.f32 %v2737, %v2785
    %v2790 = vmul.f32 %v2741, %v2786
    %v2791 = vadd.f32 %v2781, %v2789
    %v2792 = vadd.f32 %v2782, %v2790
    %v2793 = vrot.slane %v1592, 6
    %v2794 = vrot.slane %v1593, 6
    %v2797 = vmul.f32 %v2767, %v2793
    %v2798 = vmul.f32 %v2771, %v2794
    %v2799 = vadd.f32 %v2791, %v2797
    %v2800 = vadd.f32 %v2792, %v2798
    %v2801 = vmul.f32 %v2724, %v2155
    %v2802 = vmul.f32 %v2729, %v2156
    %v2805 = vrot.slane %v1967, 7
    %v2806 = vrot.slane %v1968, 7
    %v2809 = vmul.f32 %v2737, %v2805
    %v2810 = vmul.f32 %v2741, %v2806
    %v2811 = vadd.f32 %v2801, %v2809
    %v2812 = vadd.f32 %v2802, %v2810
    %v2813 = vrot.slane %v1779, 6
    %v2814 = vrot.slane %v1780, 6
    %v2817 = vmul.f32 %v2767, %v2813
    %v2818 = vmul.f32 %v2771, %v2814
    %v2819 = vadd.f32 %v2811, %v2817
    %v2820 = vadd.f32 %v2812, %v2818
    %v2821 = vmul.f32 %v2724, %v2343
    %v2822 = vmul.f32 %v2729, %v2344
    %v2825 = vrot.slane %v2155, 7
    %v2826 = vrot.slane %v2156, 7
    %v2829 = vmul.f32 %v2737, %v2825
    %v2830 = vmul.f32 %v2741, %v2826
    %v2831 = vadd.f32 %v2821, %v2829
    %v2832 = vadd.f32 %v2822, %v2830
    %v2833 = vrot.slane %v1967, 6
    %v2834 = vrot.slane %v1968, 6
    %v2837 = vmul.f32 %v2767, %v2833
    %v2838 = vmul.f32 %v2771, %v2834
    %v2839 = vadd.f32 %v2831, %v2837
    %v2840 = vadd.f32 %v2832, %v2838
    %v2841 = vmul.f32 %v2724, %v2531
    %v2842 = vmul.f32 %v2729, %v2532
    %v2845 = vrot.slane %v2343, 7
    %v2846 = vrot.slane %v2344, 7
    %v2849 = vmul.f32 %v2737, %v2845
    %v2850 = vmul.f32 %v2741, %v2846
    %v2851 = vadd.f32 %v2841, %v2849
    %v2852 = vadd.f32 %v2842, %v2850
    %v2853 = vrot.slane %v2155, 6
    %v2854 = vrot.slane %v2156, 6
    %v2857 = vmul.f32 %v2767, %v2853
    %v2858 = vmul.f32 %v2771, %v2854
    %v2859 = vadd.f32 %v2851, %v2857
    %v2860 = vadd.f32 %v2852, %v2858
    %v2861 = vmul.f32 %v2724, %v2719
    %v2862 = vmul.f32 %v2729, %v2720
    %v2865 = vrot.slane %v2531, 7
    %v2866 = vrot.slane %v2532, 7
    %v2869 = vmul.f32 %v2737, %v2865
    %v2870 = vmul.f32 %v2741, %v2866
    %v2871 = vadd.f32 %v2861, %v2869
    %v2872 = vadd.f32 %v2862, %v2870
    %v2873 = vrot.slane %v2343, 6
    %v2874 = vrot.slane %v2344, 6
    %v2877 = vmul.f32 %v2767, %v2873
    %v2878 = vmul.f32 %v2771, %v2874
    %v2879 = vadd.f32 %v2871, %v2877
    %v2880 = vadd.f32 %v2872, %v2878
    %vm2881 = vcmask 1040384
    %v2882 = vsel %vm2881, %v2731, %v2751
    %v2883 = vsel %vm2881, %v2732, %v2752
    %v2884 = vsel %vm813, %v2882, %v2779
    %v2885 = vsel %vm813, %v2883, %v2780
    %vm2886 = vcmask 1042432
    %v2887 = vsel %vm2886, %v2884, %v2799
    %v2888 = vsel %vm2886, %v2885, %v2800
    %v2889 = vsel %vm576, %v2887, %v2819
    %v2890 = vsel %vm576, %v2888, %v2820
    %vm2891 = vcmask 1044480
    %v2892 = vsel %vm2891, %v2889, %v2839
    %v2893 = vsel %vm2891, %v2890, %v2840
    %v2894 = vsel %vm218, %v2892, %v2859
    %v2895 = vsel %vm218, %v2893, %v2860
    %vm2896 = vcmask 1046528
    %v2897 = vsel %vm2896, %v2894, %v2879
    %v2898 = vsel %vm2896, %v2895, %v2880
    %v2899 = vld [vmem:[%s21] sm:$0xff]
    %v2900 = vld [vmem:[%s21 + $0x8] sm:$0xff]
    %v2901 = vld [vmem:[%s21 + $0x10] sm:$0xff]
    %v2902 = vld [vmem:[%s21 + $0x18] sm:$0xff]
    %v2903 = vld [vmem:[%s21 + $0x20] sm:$0xff]
    %v2904 = vld [vmem:[%s21 + $0x28] sm:$0xff]
    %v2905 = vld [vmem:[%s21 + $0x30] sm:$0xff]
    %v2906 = vld [vmem:[%s21 + $0x38] sm:$0xff]
    %v2907 = vld [vmem:[%s21 + $0x40] sm:$0xff]
    %v2908 = vld [vmem:[%s21 + $0x48] sm:$0xff]
    %v2909 = vld [vmem:[%s21 + $0x50] sm:$0xff]
    %v2910 = vld [vmem:[%s21 + $0x58] sm:$0xff]
    %v2911 = vld [vmem:[%s21 + $0x60] sm:$0xff]
    %v2912 = vld [vmem:[%s21 + $0x68] sm:$0xff]
    %v2913 = vld [vmem:[%s21 + $0x70] sm:$0xff]
    %v2914 = vld [vmem:[%s21 + $0x78] sm:$0xff]
    %v2915 = vpack.c.bf16 %v2898, %v2897
    %v2916 = vpack.c.bf16 %v2900, %v2899
    %v2917 = vpack.c.bf16 %v2902, %v2901
    %v2918 = vpack.c.bf16 %v2904, %v2903
    %v2919 = vpack.c.bf16 %v2906, %v2905
    %v2920 = vpack.c.bf16 %v2908, %v2907
    %v2921 = vpack.c.bf16 %v2910, %v2909
    %v2922 = vpack.c.bf16 %v2912, %v2911
    %v2923 = vpack.c.bf16 %v2914, %v2913
    %v2924 = vld [vmem:[%s22] sm:$0x1]
    %v2926 = vlaneseq
    %v2927 = vshrl.u32 %v2926, 7
    %v2928 = vsub.s32 0, %v2927
    %v2929 = vrot.slane %v2924, %v2928
    %2931 = vmatprep.subr.bf16.mxu0 0
    %2932 = vmatpush1.bf16.msra.mxu0 %v2916
    %2933 = vmatprep.subr.bf16.mxu0 0
    %2934 = vmatpush1.bf16.msra.mxu0 %v2917
    %2935 = vmatprep.subr.bf16.mxu0 0
    %2936 = vmatpush1.bf16.msra.mxu0 %v2918
    %2937 = vmatprep.subr.bf16.mxu0 0
    %2938 = vmatpush1.bf16.msra.mxu0 %v2919
    %2939 = vmatprep.subr.bf16.mxu0 0
    %2940 = vmatpush1.bf16.msra.mxu0 %v2920
    %2941 = vmatprep.subr.bf16.mxu0 0
    %2942 = vmatpush1.bf16.msra.mxu0 %v2921
    %2943 = vmatprep.subr.bf16.mxu0 0
    %2944 = vmatpush1.bf16.msra.mxu0 %v2922
    %2945 = vmatprep.subr.bf16.mxu0 0
    %2946 = vmatpush1.bf16.msra.mxu0 %v2923
    %2947 = vmatprep.subr.bf16.mxu0 0
    %2948 = vmatpush1.bf16.msra.mxu0 0
    %2949 = vmatprep.subr.bf16.mxu0 0
    %2950 = vmatpush1.bf16.msra.mxu0 0
    %2951 = vmatprep.subr.bf16.mxu0 0
    %2952 = vmatpush1.bf16.msra.mxu0 0
    %2953 = vmatprep.subr.bf16.mxu0 0
    %2954 = vmatpush1.bf16.msra.mxu0 0
    %2955 = vmatprep.subr.bf16.mxu0 0
    %2956 = vmatpush1.bf16.msra.mxu0 0
    %2957 = vmatprep.subr.bf16.mxu0 0
    %2958 = vmatpush1.bf16.msra.mxu0 0
    %2959 = vmatprep.subr.bf16.mxu0 0
    %2960 = vmatpush1.bf16.msra.mxu0 0
    %2961 = vmatprep.subr.bf16.mxu0 0
    %2962 = vmatpush1.bf16.msra.mxu0 0
    %2963 = vmatprep.mubr.bf16.mxu0 0
    %2964 = vmatmul.mubr.bf16.gmra.mrb[0].mxu0 %v2915
    %v2965 = vpop.f32.mrb[0].mxu0
    %v2966 = vadd.f32 %v2929, %v2965
    %v2967 = vpop.f32.mrb[0].mxu0
    %v2968 = vpop.f32.mrb[0].mxu0
    %v2969 = vadd.f32 %v2929, %v2968
    %v2970 = vpop.f32.mrb[0].mxu0
    %2971 = vdwg.mxu0
    %v2972 = vmax.f32 %v2966, 0.0
    %v2973 = vmax.f32 %v2969, 0.0
    %v2974 = vld [vmem:[%s23] sm:$0xff]
    %v2975 = vld [vmem:[%s23 + $0x8] sm:$0xff]
    %v2976 = vld [vmem:[%s23 + $0x10] sm:$0xff]
    %v2977 = vld [vmem:[%s23 + $0x18] sm:$0xff]
    %v2978 = vpack.c.bf16 %v2973, %v2972
    %v2979 = vpack.c.bf16 %v2975, %v2974
    %v2980 = vpack.c.bf16 %v2977, %v2976
    %v2981 = vld [vmem:[%s24] sm:$0x1]
    %v2983 = vlaneseq
    %v2984 = vshrl.u32 %v2983, 7
    %v2985 = vsub.s32 0, %v2984
    %v2986 = vrot.slane %v2981, %v2985
    %v2989 = vsel %vm290, %v2978, 0
    %2991 = vmatprep.subr.bf16.mxu0 0
    %2992 = vmatpush1.bf16.msra.mxu0 %v2979
    %2993 = vmatprep.subr.bf16.mxu0 0
    %2994 = vmatpush1.bf16.msra.mxu0 %v2980
    %2995 = vmatprep.subr.bf16.mxu0 0
    %2996 = vmatpush1.bf16.msra.mxu0 0
    %2997 = vmatprep.subr.bf16.mxu0 0
    %2998 = vmatpush1.bf16.msra.mxu0 0
    %2999 = vmatprep.subr.bf16.mxu0 0
    %3000 = vmatpush1.bf16.msra.mxu0 0
    %3001 = vmatprep.subr.bf16.mxu0 0
    %3002 = vmatpush1.bf16.msra.mxu0 0
    %3003 = vmatprep.subr.bf16.mxu0 0
    %3004 = vmatpush1.bf16.msra.mxu0 0
    %3005 = vmatprep.subr.bf16.mxu0 0
    %3006 = vmatpush1.bf16.msra.mxu0 0
    %3007 = vmatprep.subr.bf16.mxu0 0
    %3008 = vmatpush1.bf16.msra.mxu0 0
    %3009 = vmatprep.subr.bf16.mxu0 0
    %3010 = vmatpush1.bf16.msra.mxu0 0
    %3011 = vmatprep.subr.bf16.mxu0 0
    %3012 = vmatpush1.bf16.msra.mxu0 0
    %3013 = vmatprep.subr.bf16.mxu0 0
    %3014 = vmatpush1.bf16.msra.mxu0 0
    %3015 = vmatprep.subr.bf16.mxu0 0
    %3016 = vmatpush1.bf16.msra.mxu0 0
    %3017 = vmatprep.subr.bf16.mxu0 0
    %3018 = vmatpush1.bf16.msra.mxu0 0
    %3019 = vmatprep.subr.bf16.mxu0 0
    %3020 = vmatpush1.bf16.msra.mxu0 0
    %3021 = vmatprep.subr.bf16.mxu0 0
    %3022 = vmatpush1.bf16.msra.mxu0 0
    %3023 = vmatprep.mubr.bf16.mxu0 0
    %3024 = vmatmul.mubr.bf16.gmra.mrb[0].mxu0 %v2989
    %v3025 = vpop.f32.mrb[0].mxu0
    %v3026 = vadd.f32 %v2986, %v3025
    %v3027 = vpop.f32.mrb[0].mxu0
    %v3028 = vpop.f32.mrb[0].mxu0
    %v3029 = vadd.f32 %v2986, %v3028
    %v3030 = vpop.f32.mrb[0].mxu0
    %3031 = vdwg.mxu0
    %v3032 = vld [vmem:[%s5] sm:$0xff]
    %v3033 = vld [vmem:[%s5 + $0x8] sm:$0xff]
    %3035 = vset.pattern.permute.xlu0 0
    %3036 = vperm.xlu0 %3035, %v3032
    %v3037 = vpop.permute.xlu0 %3036
    %3040 = vset.pattern.permute.xlu0 0
    %3041 = vperm.xlu0 %3040, %v3033
    %v3042 = vpop.permute.xlu0 %3041
    %v3044 = vmul.f32 %v3026, %v3037
    %v3045 = vmul.f32 %v3029, %v3042
    %3046 = vst [vmem:[#allocation7] sm:$0xff] %v3044
    %3047 = vst [vmem:[#allocation7 + $0x8] sm:$0xff] %v3045
    // Predicated region
    $region110: #{tpu_custom_call.1} parent=1 // pred_check
      _
    $region111: #{tpu_custom_call.1} parent=1 // pred_check_branch
      %3049 = sbr.rel (0) target = $region113
    $region112: #{tpu_custom_call.1} parent=1 // pred_region
      %s3051 = ssub.s32 256, 256
      %3052 = vsyncadd [#allocation4], %s3051
      %s3053 = sshll.u32 [#allocation7], 4
      %s3054 = int_to_ptr.vmem [resolvable:$true] %s3053
      %3059 = dma.vmem_to_hbm [thread:$0]  %s3054, 256, %s25, [#allocation4], 128, 128, 8
    $region113: #{tpu_custom_call.1} parent=1 // pred_fallthru
      _
    // Predicated region
    $region114: #{tpu_custom_call.1} parent=1 // pred_check
      _
    $region115: #{tpu_custom_call.1} parent=1 // pred_check_branch
      %3061 = sbr.rel (0) target = $region117
    $region116: #{tpu_custom_call.1} parent=1 // pred_region
      %3062 = dma.done [#allocation4], 256
    $region117: #{tpu_custom_call.1} parent=1 // pred_fallthru
      _
    %3063 = vsyncpa [#allocation3], 1
    %3064 = vsyncpa [#allocation6], 1
    %3065 = vsyncpa [#allocation4], 1

</llo_original>
